<compile_context>
chip_gen: v5e
topology: v5e:2x2
jax: 0.10.0
libtpu: 0.0.40
codegen_flags: <defaults>
</compile_context>

<pallas_src>
import jax
import jax.numpy as jnp
from jax.experimental import pallas as pl
from jax.experimental.pallas import tpu as pltpu

K = 7          # conv kernel size
PAD = 3        # padding for kernel_size=7
ROFF = 8       # sublane-aligned row offset of the interior inside scratch
COFF = 128     # lane-aligned col offset of the interior inside scratch


def _pick_channel_chunk(C, target=8):
    """Largest divisor of C that is <= target (keeps VMEM blocks small)."""
    for cc in range(min(C, target), 0, -1):
        if C % cc == 0:
            return cc
    return 1


def spatial_attention_kernel(x_ref, w_ref, o_ref, sum_ref, max_ref):
    # x_ref   : (1, Cc, H, W)  VMEM  -- one channel chunk of one batch element
    # w_ref   : (2*K*K,)       SMEM  -- conv taps; avg taps pre-scaled by 1/C
    #                                   index = ch*K*K + ky*K + kx (ch0=avg, ch1=max)
    # o_ref   : (1, 1, H, W)   VMEM  -- sigmoid(conv) output
    # sum_ref : (ROFF+H+PAD, COFF+W+PAD) f32 scratch, running channel SUM
    # max_ref : same shape               f32 scratch, running channel MAX
    #   The maps live at [ROFF:ROFF+H, COFF:COFF+W]; the rest of the buffer is
    #   kept at 0, which supplies the conv's zero padding (>= PAD on each side).
    c = pl.program_id(1)
    nc = pl.num_programs(1)
    Cc = x_ref.shape[1]
    H = o_ref.shape[2]
    W = o_ref.shape[3]

    # Incremental channel reduction of this chunk (small, bounded live range).
    x0 = x_ref[0, 0]
    chunk_sum = x0
    chunk_max = x0
    for i in range(1, Cc):
        xi = x_ref[0, i]
        chunk_sum = chunk_sum + xi
        chunk_max = jnp.maximum(chunk_max, xi)

    @pl.when(c == 0)
    def _init():
        sum_ref[...] = jnp.zeros_like(sum_ref)
        max_ref[...] = jnp.zeros_like(max_ref)
        sum_ref[ROFF:ROFF + H, COFF:COFF + W] = chunk_sum
        max_ref[ROFF:ROFF + H, COFF:COFF + W] = chunk_max

    @pl.when(c != 0)
    def _accumulate():
        sum_ref[ROFF:ROFF + H, COFF:COFF + W] = (
            sum_ref[ROFF:ROFF + H, COFF:COFF + W] + chunk_sum)
        max_ref[ROFF:ROFF + H, COFF:COFF + W] = jnp.maximum(
            max_ref[ROFF:ROFF + H, COFF:COFF + W], chunk_max)

    @pl.when(c == nc - 1)
    def _finalize():
        Wp = W + 2 * PAD
        c0 = COFF - PAD
        # Padded (zero-bordered) maps: columns [c0, c0+Wp) of the scratch,
        # rows ROFF-PAD .. ROFF+H+PAD-1 (we keep all rows; extra rows are 0).
        sum_p = sum_ref[:, c0:c0 + Wp]          # (ROFF+H+PAD, Wp)
        max_p = max_ref[:, c0:c0 + Wp]

        # 7x7 conv over the two reduced channels as shifted scale-accumulates.
        # One lane shift per kx per map (hoisted), cheap sublane slices per ky,
        # 4 independent accumulators for ILP.
        accs = [jnp.zeros((H, W), jnp.float32) for _ in range(4)]
        for kx in range(K):
            s_col = sum_p[:, kx:kx + W]
            m_col = max_p[:, kx:kx + W]
            a = 2 * (kx & 1)
            for ky in range(K):
                r0 = ROFF - PAD + ky
                w_avg = w_ref[ky * K + kx]              # already includes 1/C
                w_max = w_ref[K * K + ky * K + kx]
                accs[a] = accs[a] + w_avg * s_col[r0:r0 + H, :]
                accs[a + 1] = accs[a + 1] + w_max * m_col[r0:r0 + H, :]
        acc = (accs[0] + accs[1]) + (accs[2] + accs[3])
        # NOTE: for W << 128 this is a masked partial store; packing a
        # lane-dense output would need an in-kernel relayout and the kernel is
        # bound by reading x from HBM, so we keep the natural NCHW output.
        o_ref[0, 0] = jax.nn.sigmoid(acc).astype(o_ref.dtype)


def spatial_attention(x, conv_weight, *, channel_chunk=8):
    """x: (B, C, H, W) f32; conv_weight: (1, 2, K, K) f32 -> (B, 1, H, W) f32."""
    B, C, H, W = x.shape
    Cc = _pick_channel_chunk(C, channel_chunk)
    nc = C // Cc

    # Host-side constant fold: bake 1/C of the channel mean into the
    # avg-channel taps so the kernel only keeps a running channel SUM.
    w2 = conv_weight.astype(jnp.float32).reshape(2, K * K)
    w_flat = jnp.concatenate([w2[0] * (1.0 / C), w2[1]])    # (2*K*K,)

    return pl.pallas_call(
        spatial_attention_kernel,
        out_shape=jax.ShapeDtypeStruct((B, 1, H, W), jnp.float32),
        grid_spec=pltpu.PrefetchScalarGridSpec(
            num_scalar_prefetch=0,
            grid=(B, nc),                        # channel reduction axis last
            in_specs=[
                pl.BlockSpec((1, Cc, H, W), lambda b, c: (b, c, 0, 0)),
                pl.BlockSpec(memory_space=pltpu.MemorySpace.SMEM),
            ],
            out_specs=pl.BlockSpec((1, 1, H, W), lambda b, c: (b, 0, 0, 0)),
            scratch_shapes=[
                pltpu.VMEM((ROFF + H + PAD, COFF + W + PAD), jnp.float32),
                pltpu.VMEM((ROFF + H + PAD, COFF + W + PAD), jnp.float32),
            ],
        ),
        compiler_params=pltpu.CompilerParams(
            dimension_semantics=("parallel", "arbitrary"),
        ),
    )(x, w_flat)


def spatial_attention_ref(x, conv_weight):
    """Plain-JAX reference mirroring the PyTorch forward."""
    avg = jnp.mean(x, axis=1, keepdims=True)
    mx = jnp.max(x, axis=1, keepdims=True)
    cat = jnp.concatenate([avg, mx], axis=1)                 # (B, 2, H, W)
    y = jax.lax.conv_general_dilated(
        cat, conv_weight, window_strides=(1, 1),
        padding=((PAD, PAD), (PAD, PAD)),
        dimension_numbers=("NCHW", "OIHW", "NCHW"),
    )
    return jax.nn.sigmoid(y)


if __name__ == "__main__":
    key = jax.random.PRNGKey(0)
    key_x, key_w = jax.random.split(key)

    B, C, H, W = 2, 4, 16, 16
    x = jax.random.normal(key_x, (B, C, H, W), dtype=jnp.float32)
    # Conv weight, shape (out=1, in=2, K, K), no bias.
    conv_weight = 0.1 * jax.random.normal(key_w, (1, 2, K, K), dtype=jnp.float32)

    out = spatial_attention(x, conv_weight)
    out = jax.block_until_ready(out)

    ref = spatial_attention_ref(x, conv_weight)
    assert out.shape == (B, 1, H, W)
    assert jnp.allclose(out, ref, atol=1e-5, rtol=1e-5), "mismatch vs reference"

    print("KERNEL_OK")
</pallas_src>

<mosaic_0001>
module attributes {stable_mosaic.version = 11 : i64} {
  func.func @spatial_attention_kernel(%arg0: i32, %arg1: i32, %arg2: memref<1x4x16x16xf32, #tpu.memory_space<vmem>>, %arg3: memref<98xf32, #tpu.memory_space<smem>>, %arg4: memref<1x1x16x16xf32, #tpu.memory_space<vmem>>, %arg5: memref<27x147xf32, #tpu.memory_space<vmem>>, %arg6: memref<27x147xf32, #tpu.memory_space<vmem>>) attributes {dimension_semantics = [#tpu.dimension_semantics<parallel>, #tpu.dimension_semantics<arbitrary>], iteration_bounds = array<i64: 2, 1>, scalar_prefetch = 0 : i64, scratch_operands = 2 : i64, tpu.core_type = #tpu.core_type<tc>, window_params = [{transform_indices = @transform_0, window_bounds = array<i64: 1, 4, 16, 16>}, {transform_indices = @transform_1, window_bounds = array<i64: 98>}, {transform_indices = @transform_2, window_bounds = array<i64: 1, 1, 16, 16>}]} {
    %c0 = arith.constant 0 : index
    %c0_0 = arith.constant 0 : index
    %c0_1 = arith.constant 0 : index
    %c0_2 = arith.constant 0 : index
    %0 = vector.load %arg2[%c0, %c0_0, %c0_1, %c0_2] : memref<1x4x16x16xf32, #tpu.memory_space<vmem>>, vector<1x1x16x16xf32>
    %1 = vector.shape_cast %0 : vector<1x1x16x16xf32> to vector<16x16xf32>
    %c0_3 = arith.constant 0 : index
    %c1 = arith.constant 1 : index
    %c0_4 = arith.constant 0 : index
    %c0_5 = arith.constant 0 : index
    %2 = vector.load %arg2[%c0_3, %c1, %c0_4, %c0_5] : memref<1x4x16x16xf32, #tpu.memory_space<vmem>>, vector<1x1x16x16xf32>
    %3 = vector.shape_cast %2 : vector<1x1x16x16xf32> to vector<16x16xf32>
    %4 = arith.addf %1, %3 : vector<16x16xf32>
    %5 = arith.maximumf %1, %3 : vector<16x16xf32>
    %c0_6 = arith.constant 0 : index
    %c2 = arith.constant 2 : index
    %c0_7 = arith.constant 0 : index
    %c0_8 = arith.constant 0 : index
    %6 = vector.load %arg2[%c0_6, %c2, %c0_7, %c0_8] : memref<1x4x16x16xf32, #tpu.memory_space<vmem>>, vector<1x1x16x16xf32>
    %7 = vector.shape_cast %6 : vector<1x1x16x16xf32> to vector<16x16xf32>
    %8 = arith.addf %4, %7 : vector<16x16xf32>
    %9 = arith.maximumf %5, %7 : vector<16x16xf32>
    %c0_9 = arith.constant 0 : index
    %c3 = arith.constant 3 : index
    %c0_10 = arith.constant 0 : index
    %c0_11 = arith.constant 0 : index
    %10 = vector.load %arg2[%c0_9, %c3, %c0_10, %c0_11] : memref<1x4x16x16xf32, #tpu.memory_space<vmem>>, vector<1x1x16x16xf32>
    %11 = vector.shape_cast %10 : vector<1x1x16x16xf32> to vector<16x16xf32>
    %12 = arith.addf %8, %11 : vector<16x16xf32>
    %13 = arith.maximumf %9, %11 : vector<16x16xf32>
    %c0_i32 = arith.constant 0 : i32
    %14 = arith.cmpi eq, %arg1, %c0_i32 : i32
    %15 = arith.extui %14 : i1 to i32
    %c0_i32_12 = arith.constant 0 : i32
    %16 = arith.cmpi ne, %15, %c0_i32_12 : i32
    scf.if %16 {
      %cst = arith.constant 0.000000e+00 : f32
      %23 = vector.broadcast %cst : f32 to vector<27x147xf32>
      %c0_17 = arith.constant 0 : index
      %c0_18 = arith.constant 0 : index
      %24 = vector.load %arg5[%c0_17, %c0_18] : memref<27x147xf32, #tpu.memory_space<vmem>>, vector<27x147xf32>
      tpu.vector_store %arg5[%c0_17, %c0_18], %23 {strides = array<i32>} : memref<27x147xf32, #tpu.memory_space<vmem>>, vector<27x147xf32>,
      %cst_19 = arith.constant 0.000000e+00 : f32
      %25 = vector.broadcast %cst_19 : f32 to vector<27x147xf32>
      %c0_20 = arith.constant 0 : index
      %c0_21 = arith.constant 0 : index
      %26 = vector.load %arg6[%c0_20, %c0_21] : memref<27x147xf32, #tpu.memory_space<vmem>>, vector<27x147xf32>
      tpu.vector_store %arg6[%c0_20, %c0_21], %25 {strides = array<i32>} : memref<27x147xf32, #tpu.memory_space<vmem>>, vector<27x147xf32>,
      %c8 = arith.constant 8 : index
      %c128 = arith.constant 128 : index
      %27 = vector.load %arg5[%c8, %c128] : memref<27x147xf32, #tpu.memory_space<vmem>>, vector<16x16xf32>
      tpu.vector_store %arg5[%c8, %c128], %12 {strides = array<i32>} : memref<27x147xf32, #tpu.memory_space<vmem>>, vector<16x16xf32>,
      %c8_22 = arith.constant 8 : index
      %c128_23 = arith.constant 128 : index
      %28 = vector.load %arg6[%c8_22, %c128_23] : memref<27x147xf32, #tpu.memory_space<vmem>>, vector<16x16xf32>
      tpu.vector_store %arg6[%c8_22, %c128_23], %13 {strides = array<i32>} : memref<27x147xf32, #tpu.memory_space<vmem>>, vector<16x16xf32>,
    } else {
    }
    %c0_i32_13 = arith.constant 0 : i32
    %17 = arith.cmpi ne, %arg1, %c0_i32_13 : i32
    %18 = arith.extui %17 : i1 to i32
    %c0_i32_14 = arith.constant 0 : i32
    %19 = arith.cmpi ne, %18, %c0_i32_14 : i32
    scf.if %19 {
      %c8 = arith.constant 8 : index
      %c128 = arith.constant 128 : index
      %23 = vector.load %arg5[%c8, %c128] : memref<27x147xf32, #tpu.memory_space<vmem>>, vector<16x16xf32>
      %24 = arith.addf %23, %12 : vector<16x16xf32>
      %c8_17 = arith.constant 8 : index
      %c128_18 = arith.constant 128 : index
      %25 = vector.load %arg5[%c8_17, %c128_18] : memref<27x147xf32, #tpu.memory_space<vmem>>, vector<16x16xf32>
      tpu.vector_store %arg5[%c8_17, %c128_18], %24 {strides = array<i32>} : memref<27x147xf32, #tpu.memory_space<vmem>>, vector<16x16xf32>,
      %c8_19 = arith.constant 8 : index
      %c128_20 = arith.constant 128 : index
      %26 = vector.load %arg6[%c8_19, %c128_20] : memref<27x147xf32, #tpu.memory_space<vmem>>, vector<16x16xf32>
      %27 = arith.maximumf %26, %13 : vector<16x16xf32>
      %c8_21 = arith.constant 8 : index
      %c128_22 = arith.constant 128 : index
      %28 = vector.load %arg6[%c8_21, %c128_22] : memref<27x147xf32, #tpu.memory_space<vmem>>, vector<16x16xf32>
      tpu.vector_store %arg6[%c8_21, %c128_22], %27 {strides = array<i32>} : memref<27x147xf32, #tpu.memory_space<vmem>>, vector<16x16xf32>,
    } else {
    }
    %c0_i32_15 = arith.constant 0 : i32
    %20 = arith.cmpi eq, %arg1, %c0_i32_15 : i32
    %21 = arith.extui %20 : i1 to i32
    %c0_i32_16 = arith.constant 0 : i32
    %22 = arith.cmpi ne, %21, %c0_i32_16 : i32
    scf.if %22 {
      %c0_17 = arith.constant 0 : index
      %c125 = arith.constant 125 : index
      %23 = vector.load %arg5[%c0_17, %c125] : memref<27x147xf32, #tpu.memory_space<vmem>>, vector<27x22xf32>
      %c0_18 = arith.constant 0 : index
      %c125_19 = arith.constant 125 : index
      %24 = vector.load %arg6[%c0_18, %c125_19] : memref<27x147xf32, #tpu.memory_space<vmem>>, vector<27x22xf32>
      %cst = arith.constant 0.000000e+00 : f32
      %25 = vector.broadcast %cst : f32 to vector<16x16xf32>
      %cst_20 = arith.constant 0.000000e+00 : f32
      %26 = vector.broadcast %cst_20 : f32 to vector<16x16xf32>
      %cst_21 = arith.constant 0.000000e+00 : f32
      %27 = vector.broadcast %cst_21 : f32 to vector<16x16xf32>
      %cst_22 = arith.constant 0.000000e+00 : f32
      %28 = vector.broadcast %cst_22 : f32 to vector<16x16xf32>
      %29 = vector.extract_strided_slice %23 {offsets = [0, 0], sizes = [27, 16], strides = [1, 1]} : vector<27x22xf32> to vector<27x16xf32>
      %30 = vector.extract_strided_slice %24 {offsets = [0, 0], sizes = [27, 16], strides = [1, 1]} : vector<27x22xf32> to vector<27x16xf32>
      %c0_23 = arith.constant 0 : index
      %31 = memref.load %arg3[%c0_23] : memref<98xf32, #tpu.memory_space<smem>>
      %c49 = arith.constant 49 : index
      %32 = memref.load %arg3[%c49] : memref<98xf32, #tpu.memory_space<smem>>
      %33 = vector.extract_strided_slice %29 {offsets = [5, 0], sizes = [16, 16], strides = [1, 1]} : vector<27x16xf32> to vector<16x16xf32>
      %34 = vector.broadcast %31 : f32 to vector<16x16xf32>
      %35 = arith.mulf %34, %33 : vector<16x16xf32>
      %36 = arith.addf %25, %35 : vector<16x16xf32>
      %37 = vector.extract_strided_slice %30 {offsets = [5, 0], sizes = [16, 16], strides = [1, 1]} : vector<27x16xf32> to vector<16x16xf32>
      %38 = vector.broadcast %32 : f32 to vector<16x16xf32>
      %39 = arith.mulf %38, %37 : vector<16x16xf32>
      %40 = arith.addf %26, %39 : vector<16x16xf32>
      %c7 = arith.constant 7 : index
      %41 = memref.load %arg3[%c7] : memref<98xf32, #tpu.memory_space<smem>>
      %c56 = arith.constant 56 : index
      %42 = memref.load %arg3[%c56] : memref<98xf32, #tpu.memory_space<smem>>
      %43 = vector.extract_strided_slice %29 {offsets = [6, 0], sizes = [16, 16], strides = [1, 1]} : vector<27x16xf32> to vector<16x16xf32>
      %44 = vector.broadcast %41 : f32 to vector<16x16xf32>
      %45 = arith.mulf %44, %43 : vector<16x16xf32>
      %46 = arith.addf %36, %45 : vector<16x16xf32>
      %47 = vector.extract_strided_slice %30 {offsets = [6, 0], sizes = [16, 16], strides = [1, 1]} : vector<27x16xf32> to vector<16x16xf32>
      %48 = vector.broadcast %42 : f32 to vector<16x16xf32>
      %49 = arith.mulf %48, %47 : vector<16x16xf32>
      %50 = arith.addf %40, %49 : vector<16x16xf32>
      %c14 = arith.constant 14 : index
      %51 = memref.load %arg3[%c14] : memref<98xf32, #tpu.memory_space<smem>>
      %c63 = arith.constant 63 : index
      %52 = memref.load %arg3[%c63] : memref<98xf32, #tpu.memory_space<smem>>
      %53 = vector.extract_strided_slice %29 {offsets = [7, 0], sizes = [16, 16], strides = [1, 1]} : vector<27x16xf32> to vector<16x16xf32>
      %54 = vector.broadcast %51 : f32 to vector<16x16xf32>
      %55 = arith.mulf %54, %53 : vector<16x16xf32>
      %56 = arith.addf %46, %55 : vector<16x16xf32>
      %57 = vector.extract_strided_slice %30 {offsets = [7, 0], sizes = [16, 16], strides = [1, 1]} : vector<27x16xf32> to vector<16x16xf32>
      %58 = vector.broadcast %52 : f32 to vector<16x16xf32>
      %59 = arith.mulf %58, %57 : vector<16x16xf32>
      %60 = arith.addf %50, %59 : vector<16x16xf32>
      %c21 = arith.constant 21 : index
      %61 = memref.load %arg3[%c21] : memref<98xf32, #tpu.memory_space<smem>>
      %c70 = arith.constant 70 : index
      %62 = memref.load %arg3[%c70] : memref<98xf32, #tpu.memory_space<smem>>
      %63 = vector.extract_strided_slice %29 {offsets = [8, 0], sizes = [16, 16], strides = [1, 1]} : vector<27x16xf32> to vector<16x16xf32>
      %64 = vector.broadcast %61 : f32 to vector<16x16xf32>
      %65 = arith.mulf %64, %63 : vector<16x16xf32>
      %66 = arith.addf %56, %65 : vector<16x16xf32>
      %67 = vector.extract_strided_slice %30 {offsets = [8, 0], sizes = [16, 16], strides = [1, 1]} : vector<27x16xf32> to vector<16x16xf32>
      %68 = vector.broadcast %62 : f32 to vector<16x16xf32>
      %69 = arith.mulf %68, %67 : vector<16x16xf32>
      %70 = arith.addf %60, %69 : vector<16x16xf32>
      %c28 = arith.constant 28 : index
      %71 = memref.load %arg3[%c28] : memref<98xf32, #tpu.memory_space<smem>>
      %c77 = arith.constant 77 : index
      %72 = memref.load %arg3[%c77] : memref<98xf32, #tpu.memory_space<smem>>
      %73 = vector.extract_strided_slice %29 {offsets = [9, 0], sizes = [16, 16], strides = [1, 1]} : vector<27x16xf32> to vector<16x16xf32>
      %74 = vector.broadcast %71 : f32 to vector<16x16xf32>
      %75 = arith.mulf %74, %73 : vector<16x16xf32>
      %76 = arith.addf %66, %75 : vector<16x16xf32>
      %77 = vector.extract_strided_slice %30 {offsets = [9, 0], sizes = [16, 16], strides = [1, 1]} : vector<27x16xf32> to vector<16x16xf32>
      %78 = vector.broadcast %72 : f32 to vector<16x16xf32>
      %79 = arith.mulf %78, %77 : vector<16x16xf32>
      %80 = arith.addf %70, %79 : vector<16x16xf32>
      %c35 = arith.constant 35 : index
      %81 = memref.load %arg3[%c35] : memref<98xf32, #tpu.memory_space<smem>>
      %c84 = arith.constant 84 : index
      %82 = memref.load %arg3[%c84] : memref<98xf32, #tpu.memory_space<smem>>
      %83 = vector.extract_strided_slice %29 {offsets = [10, 0], sizes = [16, 16], strides = [1, 1]} : vector<27x16xf32> to vector<16x16xf32>
      %84 = vector.broadcast %81 : f32 to vector<16x16xf32>
      %85 = arith.mulf %84, %83 : vector<16x16xf32>
      %86 = arith.addf %76, %85 : vector<16x16xf32>
      %87 = vector.extract_strided_slice %30 {offsets = [10, 0], sizes = [16, 16], strides = [1, 1]} : vector<27x16xf32> to vector<16x16xf32>
      %88 = vector.broadcast %82 : f32 to vector<16x16xf32>
      %89 = arith.mulf %88, %87 : vector<16x16xf32>
      %90 = arith.addf %80, %89 : vector<16x16xf32>
      %c42 = arith.constant 42 : index
      %91 = memref.load %arg3[%c42] : memref<98xf32, #tpu.memory_space<smem>>
      %c91 = arith.constant 91 : index
      %92 = memref.load %arg3[%c91] : memref<98xf32, #tpu.memory_space<smem>>
      %93 = vector.extract_strided_slice %29 {offsets = [11, 0], sizes = [16, 16], strides = [1, 1]} : vector<27x16xf32> to vector<16x16xf32>
      %94 = vector.broadcast %91 : f32 to vector<16x16xf32>
      %95 = arith.mulf %94, %93 : vector<16x16xf32>
      %96 = arith.addf %86, %95 : vector<16x16xf32>
      %97 = vector.extract_strided_slice %30 {offsets = [11, 0], sizes = [16, 16], strides = [1, 1]} : vector<27x16xf32> to vector<16x16xf32>
      %98 = vector.broadcast %92 : f32 to vector<16x16xf32>
      %99 = arith.mulf %98, %97 : vector<16x16xf32>
      %100 = arith.addf %90, %99 : vector<16x16xf32>
      %101 = vector.extract_strided_slice %23 {offsets = [0, 1], sizes = [27, 16], strides = [1, 1]} : vector<27x22xf32> to vector<27x16xf32>
      %102 = vector.extract_strided_slice %24 {offsets = [0, 1], sizes = [27, 16], strides = [1, 1]} : vector<27x22xf32> to vector<27x16xf32>
      %c1_24 = arith.constant 1 : index
      %103 = memref.load %arg3[%c1_24] : memref<98xf32, #tpu.memory_space<smem>>
      %c50 = arith.constant 50 : index
      %104 = memref.load %arg3[%c50] : memref<98xf32, #tpu.memory_space<smem>>
      %105 = vector.extract_strided_slice %101 {offsets = [5, 0], sizes = [16, 16], strides = [1, 1]} : vector<27x16xf32> to vector<16x16xf32>
      %106 = vector.broadcast %103 : f32 to vector<16x16xf32>
      %107 = arith.mulf %106, %105 : vector<16x16xf32>
      %108 = arith.addf %27, %107 : vector<16x16xf32>
      %109 = vector.extract_strided_slice %102 {offsets = [5, 0], sizes = [16, 16], strides = [1, 1]} : vector<27x16xf32> to vector<16x16xf32>
      %110 = vector.broadcast %104 : f32 to vector<16x16xf32>
      %111 = arith.mulf %110, %109 : vector<16x16xf32>
      %112 = arith.addf %28, %111 : vector<16x16xf32>
      %c8 = arith.constant 8 : index
      %113 = memref.load %arg3[%c8] : memref<98xf32, #tpu.memory_space<smem>>
      %c57 = arith.constant 57 : index
      %114 = memref.load %arg3[%c57] : memref<98xf32, #tpu.memory_space<smem>>
      %115 = vector.extract_strided_slice %101 {offsets = [6, 0], sizes = [16, 16], strides = [1, 1]} : vector<27x16xf32> to vector<16x16xf32>
      %116 = vector.broadcast %113 : f32 to vector<16x16xf32>
      %117 = arith.mulf %116, %115 : vector<16x16xf32>
      %118 = arith.addf %108, %117 : vector<16x16xf32>
      %119 = vector.extract_strided_slice %102 {offsets = [6, 0], sizes = [16, 16], strides = [1, 1]} : vector<27x16xf32> to vector<16x16xf32>
      %120 = vector.broadcast %114 : f32 to vector<16x16xf32>
      %121 = arith.mulf %120, %119 : vector<16x16xf32>
      %122 = arith.addf %112, %121 : vector<16x16xf32>
      %c15 = arith.constant 15 : index
      %123 = memref.load %arg3[%c15] : memref<98xf32, #tpu.memory_space<smem>>
      %c64 = arith.constant 64 : index
      %124 = memref.load %arg3[%c64] : memref<98xf32, #tpu.memory_space<smem>>
      %125 = vector.extract_strided_slice %101 {offsets = [7, 0], sizes = [16, 16], strides = [1, 1]} : vector<27x16xf32> to vector<16x16xf32>
      %126 = vector.broadcast %123 : f32 to vector<16x16xf32>
      %127 = arith.mulf %126, %125 : vector<16x16xf32>
      %128 = arith.addf %118, %127 : vector<16x16xf32>
      %129 = vector.extract_strided_slice %102 {offsets = [7, 0], sizes = [16, 16], strides = [1, 1]} : vector<27x16xf32> to vector<16x16xf32>
      %130 = vector.broadcast %124 : f32 to vector<16x16xf32>
      %131 = arith.mulf %130, %129 : vector<16x16xf32>
      %132 = arith.addf %122, %131 : vector<16x16xf32>
      %c22 = arith.constant 22 : index
      %133 = memref.load %arg3[%c22] : memref<98xf32, #tpu.memory_space<smem>>
      %c71 = arith.constant 71 : index
      %134 = memref.load %arg3[%c71] : memref<98xf32, #tpu.memory_space<smem>>
      %135 = vector.extract_strided_slice %101 {offsets = [8, 0], sizes = [16, 16], strides = [1, 1]} : vector<27x16xf32> to vector<16x16xf32>
      %136 = vector.broadcast %133 : f32 to vector<16x16xf32>
      %137 = arith.mulf %136, %135 : vector<16x16xf32>
      %138 = arith.addf %128, %137 : vector<16x16xf32>
      %139 = vector.extract_strided_slice %102 {offsets = [8, 0], sizes = [16, 16], strides = [1, 1]} : vector<27x16xf32> to vector<16x16xf32>
      %140 = vector.broadcast %134 : f32 to vector<16x16xf32>
      %141 = arith.mulf %140, %139 : vector<16x16xf32>
      %142 = arith.addf %132, %141 : vector<16x16xf32>
      %c29 = arith.constant 29 : index
      %143 = memref.load %arg3[%c29] : memref<98xf32, #tpu.memory_space<smem>>
      %c78 = arith.constant 78 : index
      %144 = memref.load %arg3[%c78] : memref<98xf32, #tpu.memory_space<smem>>
      %145 = vector.extract_strided_slice %101 {offsets = [9, 0], sizes = [16, 16], strides = [1, 1]} : vector<27x16xf32> to vector<16x16xf32>
      %146 = vector.broadcast %143 : f32 to vector<16x16xf32>
      %147 = arith.mulf %146, %145 : vector<16x16xf32>
      %148 = arith.addf %138, %147 : vector<16x16xf32>
      %149 = vector.extract_strided_slice %102 {offsets = [9, 0], sizes = [16, 16], strides = [1, 1]} : vector<27x16xf32> to vector<16x16xf32>
      %150 = vector.broadcast %144 : f32 to vector<16x16xf32>
      %151 = arith.mulf %150, %149 : vector<16x16xf32>
      %152 = arith.addf %142, %151 : vector<16x16xf32>
      %c36 = arith.constant 36 : index
      %153 = memref.load %arg3[%c36] : memref<98xf32, #tpu.memory_space<smem>>
      %c85 = arith.constant 85 : index
      %154 = memref.load %arg3[%c85] : memref<98xf32, #tpu.memory_space<smem>>
      %155 = vector.extract_strided_slice %101 {offsets = [10, 0], sizes = [16, 16], strides = [1, 1]} : vector<27x16xf32> to vector<16x16xf32>
      %156 = vector.broadcast %153 : f32 to vector<16x16xf32>
      %157 = arith.mulf %156, %155 : vector<16x16xf32>
      %158 = arith.addf %148, %157 : vector<16x16xf32>
      %159 = vector.extract_strided_slice %102 {offsets = [10, 0], sizes = [16, 16], strides = [1, 1]} : vector<27x16xf32> to vector<16x16xf32>
      %160 = vector.broadcast %154 : f32 to vector<16x16xf32>
      %161 = arith.mulf %160, %159 : vector<16x16xf32>
      %162 = arith.addf %152, %161 : vector<16x16xf32>
      %c43 = arith.constant 43 : index
      %163 = memref.load %arg3[%c43] : memref<98xf32, #tpu.memory_space<smem>>
      %c92 = arith.constant 92 : index
      %164 = memref.load %arg3[%c92] : memref<98xf32, #tpu.memory_space<smem>>
      %165 = vector.extract_strided_slice %101 {offsets = [11, 0], sizes = [16, 16], strides = [1, 1]} : vector<27x16xf32> to vector<16x16xf32>
      %166 = vector.broadcast %163 : f32 to vector<16x16xf32>
      %167 = arith.mulf %166, %165 : vector<16x16xf32>
      %168 = arith.addf %158, %167 : vector<16x16xf32>
      %169 = vector.extract_strided_slice %102 {offsets = [11, 0], sizes = [16, 16], strides = [1, 1]} : vector<27x16xf32> to vector<16x16xf32>
      %170 = vector.broadcast %164 : f32 to vector<16x16xf32>
      %171 = arith.mulf %170, %169 : vector<16x16xf32>
      %172 = arith.addf %162, %171 : vector<16x16xf32>
      %173 = vector.extract_strided_slice %23 {offsets = [0, 2], sizes = [27, 16], strides = [1, 1]} : vector<27x22xf32> to vector<27x16xf32>
      %174 = vector.extract_strided_slice %24 {offsets = [0, 2], sizes = [27, 16], strides = [1, 1]} : vector<27x22xf32> to vector<27x16xf32>
      %c2_25 = arith.constant 2 : index
      %175 = memref.load %arg3[%c2_25] : memref<98xf32, #tpu.memory_space<smem>>
      %c51 = arith.constant 51 : index
      %176 = memref.load %arg3[%c51] : memref<98xf32, #tpu.memory_space<smem>>
      %177 = vector.extract_strided_slice %173 {offsets = [5, 0], sizes = [16, 16], strides = [1, 1]} : vector<27x16xf32> to vector<16x16xf32>
      %178 = vector.broadcast %175 : f32 to vector<16x16xf32>
      %179 = arith.mulf %178, %177 : vector<16x16xf32>
      %180 = arith.addf %96, %179 : vector<16x16xf32>
      %181 = vector.extract_strided_slice %174 {offsets = [5, 0], sizes = [16, 16], strides = [1, 1]} : vector<27x16xf32> to vector<16x16xf32>
      %182 = vector.broadcast %176 : f32 to vector<16x16xf32>
      %183 = arith.mulf %182, %181 : vector<16x16xf32>
      %184 = arith.addf %100, %183 : vector<16x16xf32>
      %c9 = arith.constant 9 : index
      %185 = memref.load %arg3[%c9] : memref<98xf32, #tpu.memory_space<smem>>
      %c58 = arith.constant 58 : index
      %186 = memref.load %arg3[%c58] : memref<98xf32, #tpu.memory_space<smem>>
      %187 = vector.extract_strided_slice %173 {offsets = [6, 0], sizes = [16, 16], strides = [1, 1]} : vector<27x16xf32> to vector<16x16xf32>
      %188 = vector.broadcast %185 : f32 to vector<16x16xf32>
      %189 = arith.mulf %188, %187 : vector<16x16xf32>
      %190 = arith.addf %180, %189 : vector<16x16xf32>
      %191 = vector.extract_strided_slice %174 {offsets = [6, 0], sizes = [16, 16], strides = [1, 1]} : vector<27x16xf32> to vector<16x16xf32>
      %192 = vector.broadcast %186 : f32 to vector<16x16xf32>
      %193 = arith.mulf %192, %191 : vector<16x16xf32>
      %194 = arith.addf %184, %193 : vector<16x16xf32>
      %c16 = arith.constant 16 : index
      %195 = memref.load %arg3[%c16] : memref<98xf32, #tpu.memory_space<smem>>
      %c65 = arith.constant 65 : index
      %196 = memref.load %arg3[%c65] : memref<98xf32, #tpu.memory_space<smem>>
      %197 = vector.extract_strided_slice %173 {offsets = [7, 0], sizes = [16, 16], strides = [1, 1]} : vector<27x16xf32> to vector<16x16xf32>
      %198 = vector.broadcast %195 : f32 to vector<16x16xf32>
      %199 = arith.mulf %198, %197 : vector<16x16xf32>
      %200 = arith.addf %190, %199 : vector<16x16xf32>
      %201 = vector.extract_strided_slice %174 {offsets = [7, 0], sizes = [16, 16], strides = [1, 1]} : vector<27x16xf32> to vector<16x16xf32>
      %202 = vector.broadcast %196 : f32 to vector<16x16xf32>
      %203 = arith.mulf %202, %201 : vector<16x16xf32>
      %204 = arith.addf %194, %203 : vector<16x16xf32>
      %c23 = arith.constant 23 : index
      %205 = memref.load %arg3[%c23] : memref<98xf32, #tpu.memory_space<smem>>
      %c72 = arith.constant 72 : index
      %206 = memref.load %arg3[%c72] : memref<98xf32, #tpu.memory_space<smem>>
      %207 = vector.extract_strided_slice %173 {offsets = [8, 0], sizes = [16, 16], strides = [1, 1]} : vector<27x16xf32> to vector<16x16xf32>
      %208 = vector.broadcast %205 : f32 to vector<16x16xf32>
      %209 = arith.mulf %208, %207 : vector<16x16xf32>
      %210 = arith.addf %200, %209 : vector<16x16xf32>
      %211 = vector.extract_strided_slice %174 {offsets = [8, 0], sizes = [16, 16], strides = [1, 1]} : vector<27x16xf32> to vector<16x16xf32>
      %212 = vector.broadcast %206 : f32 to vector<16x16xf32>
      %213 = arith.mulf %212, %211 : vector<16x16xf32>
      %214 = arith.addf %204, %213 : vector<16x16xf32>
      %c30 = arith.constant 30 : index
      %215 = memref.load %arg3[%c30] : memref<98xf32, #tpu.memory_space<smem>>
      %c79 = arith.constant 79 : index
      %216 = memref.load %arg3[%c79] : memref<98xf32, #tpu.memory_space<smem>>
      %217 = vector.extract_strided_slice %173 {offsets = [9, 0], sizes = [16, 16], strides = [1, 1]} : vector<27x16xf32> to vector<16x16xf32>
      %218 = vector.broadcast %215 : f32 to vector<16x16xf32>
      %219 = arith.mulf %218, %217 : vector<16x16xf32>
      %220 = arith.addf %210, %219 : vector<16x16xf32>
      %221 = vector.extract_strided_slice %174 {offsets = [9, 0], sizes = [16, 16], strides = [1, 1]} : vector<27x16xf32> to vector<16x16xf32>
      %222 = vector.broadcast %216 : f32 to vector<16x16xf32>
      %223 = arith.mulf %222, %221 : vector<16x16xf32>
      %224 = arith.addf %214, %223 : vector<16x16xf32>
      %c37 = arith.constant 37 : index
      %225 = memref.load %arg3[%c37] : memref<98xf32, #tpu.memory_space<smem>>
      %c86 = arith.constant 86 : index
      %226 = memref.load %arg3[%c86] : memref<98xf32, #tpu.memory_space<smem>>
      %227 = vector.extract_strided_slice %173 {offsets = [10, 0], sizes = [16, 16], strides = [1, 1]} : vector<27x16xf32> to vector<16x16xf32>
      %228 = vector.broadcast %225 : f32 to vector<16x16xf32>
      %229 = arith.mulf %228, %227 : vector<16x16xf32>
      %230 = arith.addf %220, %229 : vector<16x16xf32>
      %231 = vector.extract_strided_slice %174 {offsets = [10, 0], sizes = [16, 16], strides = [1, 1]} : vector<27x16xf32> to vector<16x16xf32>
      %232 = vector.broadcast %226 : f32 to vector<16x16xf32>
      %233 = arith.mulf %232, %231 : vector<16x16xf32>
      %234 = arith.addf %224, %233 : vector<16x16xf32>
      %c44 = arith.constant 44 : index
      %235 = memref.load %arg3[%c44] : memref<98xf32, #tpu.memory_space<smem>>
      %c93 = arith.constant 93 : index
      %236 = memref.load %arg3[%c93] : memref<98xf32, #tpu.memory_space<smem>>
      %237 = vector.extract_strided_slice %173 {offsets = [11, 0], sizes = [16, 16], strides = [1, 1]} : vector<27x16xf32> to vector<16x16xf32>
      %238 = vector.broadcast %235 : f32 to vector<16x16xf32>
      %239 = arith.mulf %238, %237 : vector<16x16xf32>
      %240 = arith.addf %230, %239 : vector<16x16xf32>
      %241 = vector.extract_strided_slice %174 {offsets = [11, 0], sizes = [16, 16], strides = [1, 1]} : vector<27x16xf32> to vector<16x16xf32>
      %242 = vector.broadcast %236 : f32 to vector<16x16xf32>
      %243 = arith.mulf %242, %241 : vector<16x16xf32>
      %244 = arith.addf %234, %243 : vector<16x16xf32>
      %245 = vector.extract_strided_slice %23 {offsets = [0, 3], sizes = [27, 16], strides = [1, 1]} : vector<27x22xf32> to vector<27x16xf32>
      %246 = vector.extract_strided_slice %24 {offsets = [0, 3], sizes = [27, 16], strides = [1, 1]} : vector<27x22xf32> to vector<27x16xf32>
      %c3_26 = arith.constant 3 : index
      %247 = memref.load %arg3[%c3_26] : memref<98xf32, #tpu.memory_space<smem>>
      %c52 = arith.constant 52 : index
      %248 = memref.load %arg3[%c52] : memref<98xf32, #tpu.memory_space<smem>>
      %249 = vector.extract_strided_slice %245 {offsets = [5, 0], sizes = [16, 16], strides = [1, 1]} : vector<27x16xf32> to vector<16x16xf32>
      %250 = vector.broadcast %247 : f32 to vector<16x16xf32>
      %251 = arith.mulf %250, %249 : vector<16x16xf32>
      %252 = arith.addf %168, %251 : vector<16x16xf32>
      %253 = vector.extract_strided_slice %246 {offsets = [5, 0], sizes = [16, 16], strides = [1, 1]} : vector<27x16xf32> to vector<16x16xf32>
      %254 = vector.broadcast %248 : f32 to vector<16x16xf32>
      %255 = arith.mulf %254, %253 : vector<16x16xf32>
      %256 = arith.addf %172, %255 : vector<16x16xf32>
      %c10 = arith.constant 10 : index
      %257 = memref.load %arg3[%c10] : memref<98xf32, #tpu.memory_space<smem>>
      %c59 = arith.constant 59 : index
      %258 = memref.load %arg3[%c59] : memref<98xf32, #tpu.memory_space<smem>>
      %259 = vector.extract_strided_slice %245 {offsets = [6, 0], sizes = [16, 16], strides = [1, 1]} : vector<27x16xf32> to vector<16x16xf32>
      %260 = vector.broadcast %257 : f32 to vector<16x16xf32>
      %261 = arith.mulf %260, %259 : vector<16x16xf32>
      %262 = arith.addf %252, %261 : vector<16x16xf32>
      %263 = vector.extract_strided_slice %246 {offsets = [6, 0], sizes = [16, 16], strides = [1, 1]} : vector<27x16xf32> to vector<16x16xf32>
      %264 = vector.broadcast %258 : f32 to vector<16x16xf32>
      %265 = arith.mulf %264, %263 : vector<16x16xf32>
      %266 = arith.addf %256, %265 : vector<16x16xf32>
      %c17 = arith.constant 17 : index
      %267 = memref.load %arg3[%c17] : memref<98xf32, #tpu.memory_space<smem>>
      %c66 = arith.constant 66 : index
      %268 = memref.load %arg3[%c66] : memref<98xf32, #tpu.memory_space<smem>>
      %269 = vector.extract_strided_slice %245 {offsets = [7, 0], sizes = [16, 16], strides = [1, 1]} : vector<27x16xf32> to vector<16x16xf32>
      %270 = vector.broadcast %267 : f32 to vector<16x16xf32>
      %271 = arith.mulf %270, %269 : vector<16x16xf32>
      %272 = arith.addf %262, %271 : vector<16x16xf32>
      %273 = vector.extract_strided_slice %246 {offsets = [7, 0], sizes = [16, 16], strides = [1, 1]} : vector<27x16xf32> to vector<16x16xf32>
      %274 = vector.broadcast %268 : f32 to vector<16x16xf32>
      %275 = arith.mulf %274, %273 : vector<16x16xf32>
      %276 = arith.addf %266, %275 : vector<16x16xf32>
      %c24 = arith.constant 24 : index
      %277 = memref.load %arg3[%c24] : memref<98xf32, #tpu.memory_space<smem>>
      %c73 = arith.constant 73 : index
      %278 = memref.load %arg3[%c73] : memref<98xf32, #tpu.memory_space<smem>>
      %279 = vector.extract_strided_slice %245 {offsets = [8, 0], sizes = [16, 16], strides = [1, 1]} : vector<27x16xf32> to vector<16x16xf32>
      %280 = vector.broadcast %277 : f32 to vector<16x16xf32>
      %281 = arith.mulf %280, %279 : vector<16x16xf32>
      %282 = arith.addf %272, %281 : vector<16x16xf32>
      %283 = vector.extract_strided_slice %246 {offsets = [8, 0], sizes = [16, 16], strides = [1, 1]} : vector<27x16xf32> to vector<16x16xf32>
      %284 = vector.broadcast %278 : f32 to vector<16x16xf32>
      %285 = arith.mulf %284, %283 : vector<16x16xf32>
      %286 = arith.addf %276, %285 : vector<16x16xf32>
      %c31 = arith.constant 31 : index
      %287 = memref.load %arg3[%c31] : memref<98xf32, #tpu.memory_space<smem>>
      %c80 = arith.constant 80 : index
      %288 = memref.load %arg3[%c80] : memref<98xf32, #tpu.memory_space<smem>>
      %289 = vector.extract_strided_slice %245 {offsets = [9, 0], sizes = [16, 16], strides = [1, 1]} : vector<27x16xf32> to vector<16x16xf32>
      %290 = vector.broadcast %287 : f32 to vector<16x16xf32>
      %291 = arith.mulf %290, %289 : vector<16x16xf32>
      %292 = arith.addf %282, %291 : vector<16x16xf32>
      %293 = vector.extract_strided_slice %246 {offsets = [9, 0], sizes = [16, 16], strides = [1, 1]} : vector<27x16xf32> to vector<16x16xf32>
      %294 = vector.broadcast %288 : f32 to vector<16x16xf32>
      %295 = arith.mulf %294, %293 : vector<16x16xf32>
      %296 = arith.addf %286, %295 : vector<16x16xf32>
      %c38 = arith.constant 38 : index
      %297 = memref.load %arg3[%c38] : memref<98xf32, #tpu.memory_space<smem>>
      %c87 = arith.constant 87 : index
      %298 = memref.load %arg3[%c87] : memref<98xf32, #tpu.memory_space<smem>>
      %299 = vector.extract_strided_slice %245 {offsets = [10, 0], sizes = [16, 16], strides = [1, 1]} : vector<27x16xf32> to vector<16x16xf32>
      %300 = vector.broadcast %297 : f32 to vector<16x16xf32>
      %301 = arith.mulf %300, %299 : vector<16x16xf32>
      %302 = arith.addf %292, %301 : vector<16x16xf32>
      %303 = vector.extract_strided_slice %246 {offsets = [10, 0], sizes = [16, 16], strides = [1, 1]} : vector<27x16xf32> to vector<16x16xf32>
      %304 = vector.broadcast %298 : f32 to vector<16x16xf32>
      %305 = arith.mulf %304, %303 : vector<16x16xf32>
      %306 = arith.addf %296, %305 : vector<16x16xf32>
      %c45 = arith.constant 45 : index
      %307 = memref.load %arg3[%c45] : memref<98xf32, #tpu.memory_space<smem>>
      %c94 = arith.constant 94 : index
      %308 = memref.load %arg3[%c94] : memref<98xf32, #tpu.memory_space<smem>>
      %309 = vector.extract_strided_slice %245 {offsets = [11, 0], sizes = [16, 16], strides = [1, 1]} : vector<27x16xf32> to vector<16x16xf32>
      %310 = vector.broadcast %307 : f32 to vector<16x16xf32>
      %311 = arith.mulf %310, %309 : vector<16x16xf32>
      %312 = arith.addf %302, %311 : vector<16x16xf32>
      %313 = vector.extract_strided_slice %246 {offsets = [11, 0], sizes = [16, 16], strides = [1, 1]} : vector<27x16xf32> to vector<16x16xf32>
      %314 = vector.broadcast %308 : f32 to vector<16x16xf32>
      %315 = arith.mulf %314, %313 : vector<16x16xf32>
      %316 = arith.addf %306, %315 : vector<16x16xf32>
      %317 = vector.extract_strided_slice %23 {offsets = [0, 4], sizes = [27, 16], strides = [1, 1]} : vector<27x22xf32> to vector<27x16xf32>
      %318 = vector.extract_strided_slice %24 {offsets = [0, 4], sizes = [27, 16], strides = [1, 1]} : vector<27x22xf32> to vector<27x16xf32>
      %c4 = arith.constant 4 : index
      %319 = memref.load %arg3[%c4] : memref<98xf32, #tpu.memory_space<smem>>
      %c53 = arith.constant 53 : index
      %320 = memref.load %arg3[%c53] : memref<98xf32, #tpu.memory_space<smem>>
      %321 = vector.extract_strided_slice %317 {offsets = [5, 0], sizes = [16, 16], strides = [1, 1]} : vector<27x16xf32> to vector<16x16xf32>
      %322 = vector.broadcast %319 : f32 to vector<16x16xf32>
      %323 = arith.mulf %322, %321 : vector<16x16xf32>
      %324 = arith.addf %240, %323 : vector<16x16xf32>
      %325 = vector.extract_strided_slice %318 {offsets = [5, 0], sizes = [16, 16], strides = [1, 1]} : vector<27x16xf32> to vector<16x16xf32>
      %326 = vector.broadcast %320 : f32 to vector<16x16xf32>
      %327 = arith.mulf %326, %325 : vector<16x16xf32>
      %328 = arith.addf %244, %327 : vector<16x16xf32>
      %c11 = arith.constant 11 : index
      %329 = memref.load %arg3[%c11] : memref<98xf32, #tpu.memory_space<smem>>
      %c60 = arith.constant 60 : index
      %330 = memref.load %arg3[%c60] : memref<98xf32, #tpu.memory_space<smem>>
      %331 = vector.extract_strided_slice %317 {offsets = [6, 0], sizes = [16, 16], strides = [1, 1]} : vector<27x16xf32> to vector<16x16xf32>
      %332 = vector.broadcast %329 : f32 to vector<16x16xf32>
      %333 = arith.mulf %332, %331 : vector<16x16xf32>
      %334 = arith.addf %324, %333 : vector<16x16xf32>
      %335 = vector.extract_strided_slice %318 {offsets = [6, 0], sizes = [16, 16], strides = [1, 1]} : vector<27x16xf32> to vector<16x16xf32>
      %336 = vector.broadcast %330 : f32 to vector<16x16xf32>
      %337 = arith.mulf %336, %335 : vector<16x16xf32>
      %338 = arith.addf %328, %337 : vector<16x16xf32>
      %c18 = arith.constant 18 : index
      %339 = memref.load %arg3[%c18] : memref<98xf32, #tpu.memory_space<smem>>
      %c67 = arith.constant 67 : index
      %340 = memref.load %arg3[%c67] : memref<98xf32, #tpu.memory_space<smem>>
      %341 = vector.extract_strided_slice %317 {offsets = [7, 0], sizes = [16, 16], strides = [1, 1]} : vector<27x16xf32> to vector<16x16xf32>
      %342 = vector.broadcast %339 : f32 to vector<16x16xf32>
      %343 = arith.mulf %342, %341 : vector<16x16xf32>
      %344 = arith.addf %334, %343 : vector<16x16xf32>
      %345 = vector.extract_strided_slice %318 {offsets = [7, 0], sizes = [16, 16], strides = [1, 1]} : vector<27x16xf32> to vector<16x16xf32>
      %346 = vector.broadcast %340 : f32 to vector<16x16xf32>
      %347 = arith.mulf %346, %345 : vector<16x16xf32>
      %348 = arith.addf %338, %347 : vector<16x16xf32>
      %c25 = arith.constant 25 : index
      %349 = memref.load %arg3[%c25] : memref<98xf32, #tpu.memory_space<smem>>
      %c74 = arith.constant 74 : index
      %350 = memref.load %arg3[%c74] : memref<98xf32, #tpu.memory_space<smem>>
      %351 = vector.extract_strided_slice %317 {offsets = [8, 0], sizes = [16, 16], strides = [1, 1]} : vector<27x16xf32> to vector<16x16xf32>
      %352 = vector.broadcast %349 : f32 to vector<16x16xf32>
      %353 = arith.mulf %352, %351 : vector<16x16xf32>
      %354 = arith.addf %344, %353 : vector<16x16xf32>
      %355 = vector.extract_strided_slice %318 {offsets = [8, 0], sizes = [16, 16], strides = [1, 1]} : vector<27x16xf32> to vector<16x16xf32>
      %356 = vector.broadcast %350 : f32 to vector<16x16xf32>
      %357 = arith.mulf %356, %355 : vector<16x16xf32>
      %358 = arith.addf %348, %357 : vector<16x16xf32>
      %c32 = arith.constant 32 : index
      %359 = memref.load %arg3[%c32] : memref<98xf32, #tpu.memory_space<smem>>
      %c81 = arith.constant 81 : index
      %360 = memref.load %arg3[%c81] : memref<98xf32, #tpu.memory_space<smem>>
      %361 = vector.extract_strided_slice %317 {offsets = [9, 0], sizes = [16, 16], strides = [1, 1]} : vector<27x16xf32> to vector<16x16xf32>
      %362 = vector.broadcast %359 : f32 to vector<16x16xf32>
      %363 = arith.mulf %362, %361 : vector<16x16xf32>
      %364 = arith.addf %354, %363 : vector<16x16xf32>
      %365 = vector.extract_strided_slice %318 {offsets = [9, 0], sizes = [16, 16], strides = [1, 1]} : vector<27x16xf32> to vector<16x16xf32>
      %366 = vector.broadcast %360 : f32 to vector<16x16xf32>
      %367 = arith.mulf %366, %365 : vector<16x16xf32>
      %368 = arith.addf %358, %367 : vector<16x16xf32>
      %c39 = arith.constant 39 : index
      %369 = memref.load %arg3[%c39] : memref<98xf32, #tpu.memory_space<smem>>
      %c88 = arith.constant 88 : index
      %370 = memref.load %arg3[%c88] : memref<98xf32, #tpu.memory_space<smem>>
      %371 = vector.extract_strided_slice %317 {offsets = [10, 0], sizes = [16, 16], strides = [1, 1]} : vector<27x16xf32> to vector<16x16xf32>
      %372 = vector.broadcast %369 : f32 to vector<16x16xf32>
      %373 = arith.mulf %372, %371 : vector<16x16xf32>
      %374 = arith.addf %364, %373 : vector<16x16xf32>
      %375 = vector.extract_strided_slice %318 {offsets = [10, 0], sizes = [16, 16], strides = [1, 1]} : vector<27x16xf32> to vector<16x16xf32>
      %376 = vector.broadcast %370 : f32 to vector<16x16xf32>
      %377 = arith.mulf %376, %375 : vector<16x16xf32>
      %378 = arith.addf %368, %377 : vector<16x16xf32>
      %c46 = arith.constant 46 : index
      %379 = memref.load %arg3[%c46] : memref<98xf32, #tpu.memory_space<smem>>
      %c95 = arith.constant 95 : index
      %380 = memref.load %arg3[%c95] : memref<98xf32, #tpu.memory_space<smem>>
      %381 = vector.extract_strided_slice %317 {offsets = [11, 0], sizes = [16, 16], strides = [1, 1]} : vector<27x16xf32> to vector<16x16xf32>
      %382 = vector.broadcast %379 : f32 to vector<16x16xf32>
      %383 = arith.mulf %382, %381 : vector<16x16xf32>
      %384 = arith.addf %374, %383 : vector<16x16xf32>
      %385 = vector.extract_strided_slice %318 {offsets = [11, 0], sizes = [16, 16], strides = [1, 1]} : vector<27x16xf32> to vector<16x16xf32>
      %386 = vector.broadcast %380 : f32 to vector<16x16xf32>
      %387 = arith.mulf %386, %385 : vector<16x16xf32>
      %388 = arith.addf %378, %387 : vector<16x16xf32>
      %389 = vector.extract_strided_slice %23 {offsets = [0, 5], sizes = [27, 16], strides = [1, 1]} : vector<27x22xf32> to vector<27x16xf32>
      %390 = vector.extract_strided_slice %24 {offsets = [0, 5], sizes = [27, 16], strides = [1, 1]} : vector<27x22xf32> to vector<27x16xf32>
      %c5 = arith.constant 5 : index
      %391 = memref.load %arg3[%c5] : memref<98xf32, #tpu.memory_space<smem>>
      %c54 = arith.constant 54 : index
      %392 = memref.load %arg3[%c54] : memref<98xf32, #tpu.memory_space<smem>>
      %393 = vector.extract_strided_slice %389 {offsets = [5, 0], sizes = [16, 16], strides = [1, 1]} : vector<27x16xf32> to vector<16x16xf32>
      %394 = vector.broadcast %391 : f32 to vector<16x16xf32>
      %395 = arith.mulf %394, %393 : vector<16x16xf32>
      %396 = arith.addf %312, %395 : vector<16x16xf32>
      %397 = vector.extract_strided_slice %390 {offsets = [5, 0], sizes = [16, 16], strides = [1, 1]} : vector<27x16xf32> to vector<16x16xf32>
      %398 = vector.broadcast %392 : f32 to vector<16x16xf32>
      %399 = arith.mulf %398, %397 : vector<16x16xf32>
      %400 = arith.addf %316, %399 : vector<16x16xf32>
      %c12 = arith.constant 12 : index
      %401 = memref.load %arg3[%c12] : memref<98xf32, #tpu.memory_space<smem>>
      %c61 = arith.constant 61 : index
      %402 = memref.load %arg3[%c61] : memref<98xf32, #tpu.memory_space<smem>>
      %403 = vector.extract_strided_slice %389 {offsets = [6, 0], sizes = [16, 16], strides = [1, 1]} : vector<27x16xf32> to vector<16x16xf32>
      %404 = vector.broadcast %401 : f32 to vector<16x16xf32>
      %405 = arith.mulf %404, %403 : vector<16x16xf32>
      %406 = arith.addf %396, %405 : vector<16x16xf32>
      %407 = vector.extract_strided_slice %390 {offsets = [6, 0], sizes = [16, 16], strides = [1, 1]} : vector<27x16xf32> to vector<16x16xf32>
      %408 = vector.broadcast %402 : f32 to vector<16x16xf32>
      %409 = arith.mulf %408, %407 : vector<16x16xf32>
      %410 = arith.addf %400, %409 : vector<16x16xf32>
      %c19 = arith.constant 19 : index
      %411 = memref.load %arg3[%c19] : memref<98xf32, #tpu.memory_space<smem>>
      %c68 = arith.constant 68 : index
      %412 = memref.load %arg3[%c68] : memref<98xf32, #tpu.memory_space<smem>>
      %413 = vector.extract_strided_slice %389 {offsets = [7, 0], sizes = [16, 16], strides = [1, 1]} : vector<27x16xf32> to vector<16x16xf32>
      %414 = vector.broadcast %411 : f32 to vector<16x16xf32>
      %415 = arith.mulf %414, %413 : vector<16x16xf32>
      %416 = arith.addf %406, %415 : vector<16x16xf32>
      %417 = vector.extract_strided_slice %390 {offsets = [7, 0], sizes = [16, 16], strides = [1, 1]} : vector<27x16xf32> to vector<16x16xf32>
      %418 = vector.broadcast %412 : f32 to vector<16x16xf32>
      %419 = arith.mulf %418, %417 : vector<16x16xf32>
      %420 = arith.addf %410, %419 : vector<16x16xf32>
      %c26 = arith.constant 26 : index
      %421 = memref.load %arg3[%c26] : memref<98xf32, #tpu.memory_space<smem>>
      %c75 = arith.constant 75 : index
      %422 = memref.load %arg3[%c75] : memref<98xf32, #tpu.memory_space<smem>>
      %423 = vector.extract_strided_slice %389 {offsets = [8, 0], sizes = [16, 16], strides = [1, 1]} : vector<27x16xf32> to vector<16x16xf32>
      %424 = vector.broadcast %421 : f32 to vector<16x16xf32>
      %425 = arith.mulf %424, %423 : vector<16x16xf32>
      %426 = arith.addf %416, %425 : vector<16x16xf32>
      %427 = vector.extract_strided_slice %390 {offsets = [8, 0], sizes = [16, 16], strides = [1, 1]} : vector<27x16xf32> to vector<16x16xf32>
      %428 = vector.broadcast %422 : f32 to vector<16x16xf32>
      %429 = arith.mulf %428, %427 : vector<16x16xf32>
      %430 = arith.addf %420, %429 : vector<16x16xf32>
      %c33 = arith.constant 33 : index
      %431 = memref.load %arg3[%c33] : memref<98xf32, #tpu.memory_space<smem>>
      %c82 = arith.constant 82 : index
      %432 = memref.load %arg3[%c82] : memref<98xf32, #tpu.memory_space<smem>>
      %433 = vector.extract_strided_slice %389 {offsets = [9, 0], sizes = [16, 16], strides = [1, 1]} : vector<27x16xf32> to vector<16x16xf32>
      %434 = vector.broadcast %431 : f32 to vector<16x16xf32>
      %435 = arith.mulf %434, %433 : vector<16x16xf32>
      %436 = arith.addf %426, %435 : vector<16x16xf32>
      %437 = vector.extract_strided_slice %390 {offsets = [9, 0], sizes = [16, 16], strides = [1, 1]} : vector<27x16xf32> to vector<16x16xf32>
      %438 = vector.broadcast %432 : f32 to vector<16x16xf32>
      %439 = arith.mulf %438, %437 : vector<16x16xf32>
      %440 = arith.addf %430, %439 : vector<16x16xf32>
      %c40 = arith.constant 40 : index
      %441 = memref.load %arg3[%c40] : memref<98xf32, #tpu.memory_space<smem>>
      %c89 = arith.constant 89 : index
      %442 = memref.load %arg3[%c89] : memref<98xf32, #tpu.memory_space<smem>>
      %443 = vector.extract_strided_slice %389 {offsets = [10, 0], sizes = [16, 16], strides = [1, 1]} : vector<27x16xf32> to vector<16x16xf32>
      %444 = vector.broadcast %441 : f32 to vector<16x16xf32>
      %445 = arith.mulf %444, %443 : vector<16x16xf32>
      %446 = arith.addf %436, %445 : vector<16x16xf32>
      %447 = vector.extract_strided_slice %390 {offsets = [10, 0], sizes = [16, 16], strides = [1, 1]} : vector<27x16xf32> to vector<16x16xf32>
      %448 = vector.broadcast %442 : f32 to vector<16x16xf32>
      %449 = arith.mulf %448, %447 : vector<16x16xf32>
      %450 = arith.addf %440, %449 : vector<16x16xf32>
      %c47 = arith.constant 47 : index
      %451 = memref.load %arg3[%c47] : memref<98xf32, #tpu.memory_space<smem>>
      %c96 = arith.constant 96 : index
      %452 = memref.load %arg3[%c96] : memref<98xf32, #tpu.memory_space<smem>>
      %453 = vector.extract_strided_slice %389 {offsets = [11, 0], sizes = [16, 16], strides = [1, 1]} : vector<27x16xf32> to vector<16x16xf32>
      %454 = vector.broadcast %451 : f32 to vector<16x16xf32>
      %455 = arith.mulf %454, %453 : vector<16x16xf32>
      %456 = arith.addf %446, %455 : vector<16x16xf32>
      %457 = vector.extract_strided_slice %390 {offsets = [11, 0], sizes = [16, 16], strides = [1, 1]} : vector<27x16xf32> to vector<16x16xf32>
      %458 = vector.broadcast %452 : f32 to vector<16x16xf32>
      %459 = arith.mulf %458, %457 : vector<16x16xf32>
      %460 = arith.addf %450, %459 : vector<16x16xf32>
      %461 = vector.extract_strided_slice %23 {offsets = [0, 6], sizes = [27, 16], strides = [1, 1]} : vector<27x22xf32> to vector<27x16xf32>
      %462 = vector.extract_strided_slice %24 {offsets = [0, 6], sizes = [27, 16], strides = [1, 1]} : vector<27x22xf32> to vector<27x16xf32>
      %c6 = arith.constant 6 : index
      %463 = memref.load %arg3[%c6] : memref<98xf32, #tpu.memory_space<smem>>
      %c55 = arith.constant 55 : index
      %464 = memref.load %arg3[%c55] : memref<98xf32, #tpu.memory_space<smem>>
      %465 = vector.extract_strided_slice %461 {offsets = [5, 0], sizes = [16, 16], strides = [1, 1]} : vector<27x16xf32> to vector<16x16xf32>
      %466 = vector.broadcast %463 : f32 to vector<16x16xf32>
      %467 = arith.mulf %466, %465 : vector<16x16xf32>
      %468 = arith.addf %384, %467 : vector<16x16xf32>
      %469 = vector.extract_strided_slice %462 {offsets = [5, 0], sizes = [16, 16], strides = [1, 1]} : vector<27x16xf32> to vector<16x16xf32>
      %470 = vector.broadcast %464 : f32 to vector<16x16xf32>
      %471 = arith.mulf %470, %469 : vector<16x16xf32>
      %472 = arith.addf %388, %471 : vector<16x16xf32>
      %c13 = arith.constant 13 : index
      %473 = memref.load %arg3[%c13] : memref<98xf32, #tpu.memory_space<smem>>
      %c62 = arith.constant 62 : index
      %474 = memref.load %arg3[%c62] : memref<98xf32, #tpu.memory_space<smem>>
      %475 = vector.extract_strided_slice %461 {offsets = [6, 0], sizes = [16, 16], strides = [1, 1]} : vector<27x16xf32> to vector<16x16xf32>
      %476 = vector.broadcast %473 : f32 to vector<16x16xf32>
      %477 = arith.mulf %476, %475 : vector<16x16xf32>
      %478 = arith.addf %468, %477 : vector<16x16xf32>
      %479 = vector.extract_strided_slice %462 {offsets = [6, 0], sizes = [16, 16], strides = [1, 1]} : vector<27x16xf32> to vector<16x16xf32>
      %480 = vector.broadcast %474 : f32 to vector<16x16xf32>
      %481 = arith.mulf %480, %479 : vector<16x16xf32>
      %482 = arith.addf %472, %481 : vector<16x16xf32>
      %c20 = arith.constant 20 : index
      %483 = memref.load %arg3[%c20] : memref<98xf32, #tpu.memory_space<smem>>
      %c69 = arith.constant 69 : index
      %484 = memref.load %arg3[%c69] : memref<98xf32, #tpu.memory_space<smem>>
      %485 = vector.extract_strided_slice %461 {offsets = [7, 0], sizes = [16, 16], strides = [1, 1]} : vector<27x16xf32> to vector<16x16xf32>
      %486 = vector.broadcast %483 : f32 to vector<16x16xf32>
      %487 = arith.mulf %486, %485 : vector<16x16xf32>
      %488 = arith.addf %478, %487 : vector<16x16xf32>
      %489 = vector.extract_strided_slice %462 {offsets = [7, 0], sizes = [16, 16], strides = [1, 1]} : vector<27x16xf32> to vector<16x16xf32>
      %490 = vector.broadcast %484 : f32 to vector<16x16xf32>
      %491 = arith.mulf %490, %489 : vector<16x16xf32>
      %492 = arith.addf %482, %491 : vector<16x16xf32>
      %c27 = arith.constant 27 : index
      %493 = memref.load %arg3[%c27] : memref<98xf32, #tpu.memory_space<smem>>
      %c76 = arith.constant 76 : index
      %494 = memref.load %arg3[%c76] : memref<98xf32, #tpu.memory_space<smem>>
      %495 = vector.extract_strided_slice %461 {offsets = [8, 0], sizes = [16, 16], strides = [1, 1]} : vector<27x16xf32> to vector<16x16xf32>
      %496 = vector.broadcast %493 : f32 to vector<16x16xf32>
      %497 = arith.mulf %496, %495 : vector<16x16xf32>
      %498 = arith.addf %488, %497 : vector<16x16xf32>
      %499 = vector.extract_strided_slice %462 {offsets = [8, 0], sizes = [16, 16], strides = [1, 1]} : vector<27x16xf32> to vector<16x16xf32>
      %500 = vector.broadcast %494 : f32 to vector<16x16xf32>
      %501 = arith.mulf %500, %499 : vector<16x16xf32>
      %502 = arith.addf %492, %501 : vector<16x16xf32>
      %c34 = arith.constant 34 : index
      %503 = memref.load %arg3[%c34] : memref<98xf32, #tpu.memory_space<smem>>
      %c83 = arith.constant 83 : index
      %504 = memref.load %arg3[%c83] : memref<98xf32, #tpu.memory_space<smem>>
      %505 = vector.extract_strided_slice %461 {offsets = [9, 0], sizes = [16, 16], strides = [1, 1]} : vector<27x16xf32> to vector<16x16xf32>
      %506 = vector.broadcast %503 : f32 to vector<16x16xf32>
      %507 = arith.mulf %506, %505 : vector<16x16xf32>
      %508 = arith.addf %498, %507 : vector<16x16xf32>
      %509 = vector.extract_strided_slice %462 {offsets = [9, 0], sizes = [16, 16], strides = [1, 1]} : vector<27x16xf32> to vector<16x16xf32>
      %510 = vector.broadcast %504 : f32 to vector<16x16xf32>
      %511 = arith.mulf %510, %509 : vector<16x16xf32>
      %512 = arith.addf %502, %511 : vector<16x16xf32>
      %c41 = arith.constant 41 : index
      %513 = memref.load %arg3[%c41] : memref<98xf32, #tpu.memory_space<smem>>
      %c90 = arith.constant 90 : index
      %514 = memref.load %arg3[%c90] : memref<98xf32, #tpu.memory_space<smem>>
      %515 = vector.extract_strided_slice %461 {offsets = [10, 0], sizes = [16, 16], strides = [1, 1]} : vector<27x16xf32> to vector<16x16xf32>
      %516 = vector.broadcast %513 : f32 to vector<16x16xf32>
      %517 = arith.mulf %516, %515 : vector<16x16xf32>
      %518 = arith.addf %508, %517 : vector<16x16xf32>
      %519 = vector.extract_strided_slice %462 {offsets = [10, 0], sizes = [16, 16], strides = [1, 1]} : vector<27x16xf32> to vector<16x16xf32>
      %520 = vector.broadcast %514 : f32 to vector<16x16xf32>
      %521 = arith.mulf %520, %519 : vector<16x16xf32>
      %522 = arith.addf %512, %521 : vector<16x16xf32>
      %c48 = arith.constant 48 : index
      %523 = memref.load %arg3[%c48] : memref<98xf32, #tpu.memory_space<smem>>
      %c97 = arith.constant 97 : index
      %524 = memref.load %arg3[%c97] : memref<98xf32, #tpu.memory_space<smem>>
      %525 = vector.extract_strided_slice %461 {offsets = [11, 0], sizes = [16, 16], strides = [1, 1]} : vector<27x16xf32> to vector<16x16xf32>
      %526 = vector.broadcast %523 : f32 to vector<16x16xf32>
      %527 = arith.mulf %526, %525 : vector<16x16xf32>
      %528 = arith.addf %518, %527 : vector<16x16xf32>
      %529 = vector.extract_strided_slice %462 {offsets = [11, 0], sizes = [16, 16], strides = [1, 1]} : vector<27x16xf32> to vector<16x16xf32>
      %530 = vector.broadcast %524 : f32 to vector<16x16xf32>
      %531 = arith.mulf %530, %529 : vector<16x16xf32>
      %532 = arith.addf %522, %531 : vector<16x16xf32>
      %533 = arith.addf %528, %532 : vector<16x16xf32>
      %534 = arith.addf %456, %460 : vector<16x16xf32>
      %535 = arith.addf %533, %534 : vector<16x16xf32>
      %536 = arith.negf %535 : vector<16x16xf32>
      %537 = math.exp %536 : vector<16x16xf32>
      %cst_27 = arith.constant 1.000000e+00 : f32
      %538 = vector.broadcast %cst_27 : f32 to vector<16x16xf32>
      %539 = arith.addf %538, %537 : vector<16x16xf32>
      %540 = arith.divf %538, %539 : vector<16x16xf32>
      %c0_28 = arith.constant 0 : index
      %c0_29 = arith.constant 0 : index
      %c0_30 = arith.constant 0 : index
      %c0_31 = arith.constant 0 : index
      %541 = vector.load %arg4[%c0_28, %c0_29, %c0_30, %c0_31] : memref<1x1x16x16xf32, #tpu.memory_space<vmem>>, vector<1x1x16x16xf32>
      %542 = vector.shape_cast %541 : vector<1x1x16x16xf32> to vector<16x16xf32>
      %543 = vector.shape_cast %540 : vector<16x16xf32> to vector<1x1x16x16xf32>
      tpu.vector_store %arg4[%c0_28, %c0_29, %c0_30, %c0_31], %543 {strides = array<i32>} : memref<1x1x16x16xf32, #tpu.memory_space<vmem>>, vector<1x1x16x16xf32>,
    } else {
    }
    return
  }
  func.func @transform_0(%arg0: i32, %arg1: i32) -> (i32, i32, i32, i32) {
    %c0_i32 = arith.constant 0 : i32
    %c0_i32_0 = arith.constant 0 : i32
    %c0_i32_1 = arith.constant 0 : i32
    return %arg0, %arg1, %c0_i32, %c0_i32_0 : i32, i32, i32, i32
  }
  func.func @transform_1(%arg0: i32, %arg1: i32) -> i32 {
    %c0_i32 = arith.constant 0 : i32
    %c0_i32_0 = arith.constant 0 : i32
    return %c0_i32 : i32
  }
  func.func @transform_2(%arg0: i32, %arg1: i32) -> (i32, i32, i32, i32) {
    %c0_i32 = arith.constant 0 : i32
    %c0_i32_0 = arith.constant 0 : i32
    %c0_i32_1 = arith.constant 0 : i32
    %c0_i32_2 = arith.constant 0 : i32
    return %arg0, %c0_i32, %c0_i32_0, %c0_i32_1 : i32, i32, i32, i32
  }
}

</mosaic_0001>

<llo_original>
// kernel: tpu_custom_call.1
$region0: #{tpu_custom_call.1}
  #allocation0 [shape = 'u32[]', space=smem, size = 0x4, offset = 0x4, fixed_abs, tag = 'smem constant byte address 0x4 - core index']
  #allocation1 [shape = 'u32[72,128]{1,0:T(1,128)}', space=vmem, size = 0x9000, scoped, tag = 'internal scratch']
  #allocation2 [shape = 'f32[27,147]{1,0:T(8,128)}', space=vmem, size = 0x8000, scoped, tag = 'scratch operand']
  #allocation3 [shape = 'f32[27,147]{1,0:T(8,128)}', space=vmem, size = 0x8000, scoped, tag = 'scratch operand']
  %s0 = inlined_call_operand.hbm [shape: f32[2,4,16,16], index: 0, kind: input, shape index: {}]
  %s1 = inlined_call_operand.hbm [shape: f32[98], index: 1, kind: input, shape index: {}]
  %s2 = inlined_call_operand.hbm [shape: f32[2,1,16,16], index: 2, kind: output, shape index: {}]
  %s3 = sld [smem:[#allocation0]]
  $region61: #{tpu_custom_call.1} parent=0
    _
  %s5 = ssub.s32 1, %s3
  %s6 = scalar_select 0, %s5, %s3
  $region1: #{tpu_custom_call.1} parent=0
    #allocation4 [shape = 'u8[65536]{0}', space=vmem, size = 0x10000, scoped, tag = 'input window, operand 0']
    #allocation5 [shape = 's32[2]{0}', space=sflag, size = 0x8, scoped, tag = 'scoped memory for tpu_custom_call.1']
    #allocation6 [shape = 's32[2]{0}', space=sflag, size = 0x8, scoped, tag = 'scoped memory for tpu_custom_call.1']
    #allocation7 [shape = 's32[2]{0}', space=sflag, size = 0x8, scoped, tag = 'scoped memory for tpu_custom_call.1']
    #allocation8 [shape = 'u8[512]{0}', space=smem, size = 0x200, scoped, tag = 'input window, operand 1, single buffered']
    #allocation9 [shape = 'u8[16384]{0}', space=vmem, size = 0x4000, scoped, tag = 'output window, operand 0']
    %7 = vsyncpa [#allocation5], 0
    %s8 = scalar_lea.sflag [#allocation5], 1
    %9 = vsyncpa %s8, 0
    %10 = vsyncpa [#allocation7], 0
    %11 = vsyncpa [#allocation6], 0
    %s12 = scalar_lea.sflag [#allocation6], 1
    %13 = vsyncpa %s12, 0
    loop: start=0, step=1, limit=4
    $region2: #{tpu_custom_call.1} parent=1 // loop_pre_header
      _
    $region3: #{tpu_custom_call.1} parent=1 // loop_header
      %s15 = sphi 0, %s19
      %p16 = scmp.ge.s32.totalorder %s15, 4
      %s22 = sphi 0, %s34
      %s23 = sphi 0, %s30
      %s24 = sphi 0, %s22
      %s25 = sphi 0, %s23
      %s26 = sphi 0, %s24
      %s27 = sphi 0, %s25
      %s39 = sphi 0, %s41
      %s42 = sphi 0, %s39
      %s43 = sphi 0, %s42
      %s59 = sphi 0, %s43
      %s63 = sphi 0, %s63
      %s65 = sphi 0, %s63
      %s66 = sphi 0, %s65
      %s80 = sphi 0, %s66
      %s86 = sphi 0, %s88
      %s89 = sphi 0, %s86
      %s90 = sphi 0, %s89
      %s106 = sphi 0, %s90
    $region4: #{tpu_custom_call.1} parent=1 // loop_header_branch
      %18 = sbr.rel (%p16) target = $region8
    $region5: #{tpu_custom_call.1} parent=1 // loop_body
      %s20 = ssub.s32 %s15, 1
      %s21 = ssub.s32 %s15, 2
      %s28 = sadd.s32 1, %s23
      %p29 = scmp.ge.s32.totalorder %s28, 1
      %s30 = scalar_select %p29, 0, %s28
      %s31 = sadd.s32 1, %s22
      %s32 = scalar_select %p29, %s31, %s22
      %p33 = scmp.ge.s32.totalorder %s32, 2
      %s34 = scalar_select %p33, 0, %s32
      %s35 = ssub.s32 %s22, %s34
      %s36 = ssub.s32 %s23, %s30
      %s37 = sor.u32 %s35, %s36
      %p38 = scmp.eq.s32.totalorder %s37, 0
      %s40 = sadd.s32 %s39, 1
      %s41 = scalar_select %p38, %s39, %s40
      %p44 = pneg %p38
      %p45 = scmp.eq.s32.totalorder %s15, 1
      %p46 = por %p44, %p45
      %p47 = scmp.ne.s32.totalorder %s39, %s42
      %p48 = scmp.eq.s32.totalorder %s15, 0
      %p49 = por %p47, %p48
      %p50 = scmp.ne.s32.totalorder %s39, %s42
      %p51 = scmp.eq.s32.totalorder %s20, 1
      %p52 = por %p50, %p51
      %p53 = scmp.ne.s32.totalorder %s42, %s43
      %p54 = scmp.eq.s32.totalorder %s20, 0
      %p55 = por %p53, %p54
      %p56 = scmp.ne.s32.totalorder %s42, %s43
      %p57 = scmp.eq.s32.totalorder %s21, 1
      %p58 = por %p56, %p57
      %p60 = scmp.ne.s32.totalorder %s43, %s59
      %p61 = scmp.eq.s32.totalorder %s21, 0
      %p62 = por %p60, %p61
      %s64 = sadd.s32 %s63, 1
      %p67 = scmp.eq.s32.totalorder %s15, 1
      %p68 = scmp.ne.s32.totalorder %s63, %s65
      %p69 = scmp.eq.s32.totalorder %s15, 0
      %p70 = por %p68, %p69
      %p71 = scmp.ne.s32.totalorder %s63, %s65
      %p72 = scmp.eq.s32.totalorder %s20, 1
      %p73 = por %p71, %p72
      %p74 = scmp.ne.s32.totalorder %s65, %s66
      %p75 = scmp.eq.s32.totalorder %s20, 0
      %p76 = por %p74, %p75
      %p77 = scmp.ne.s32.totalorder %s65, %s66
      %p78 = scmp.eq.s32.totalorder %s21, 1
      %p79 = por %p77, %p78
      %p81 = scmp.ne.s32.totalorder %s66, %s80
      %p82 = scmp.eq.s32.totalorder %s21, 0
      %p83 = por %p81, %p82
      %s84 = ssub.s32 %s22, %s34
      %p85 = scmp.eq.s32.totalorder %s84, 0
      %s87 = sadd.s32 %s86, 1
      %s88 = scalar_select %p85, %s86, %s87
      %p91 = pneg %p85
      %p92 = scmp.eq.s32.totalorder %s15, 1
      %p93 = por %p91, %p92
      %p94 = scmp.ne.s32.totalorder %s86, %s89
      %p95 = scmp.eq.s32.totalorder %s15, 0
      %p96 = por %p94, %p95
      %p97 = scmp.ne.s32.totalorder %s86, %s89
      %p98 = scmp.eq.s32.totalorder %s20, 1
      %p99 = por %p97, %p98
      %p100 = scmp.ne.s32.totalorder %s89, %s90
      %p101 = scmp.eq.s32.totalorder %s20, 0
      %p102 = por %p100, %p101
      %p103 = scmp.ne.s32.totalorder %s89, %s90
      %p104 = scmp.eq.s32.totalorder %s21, 1
      %p105 = por %p103, %p104
      %p107 = scmp.ne.s32.totalorder %s90, %s106
      %p108 = scmp.eq.s32.totalorder %s21, 0
      %p109 = por %p107, %p108
      %p110 = scmp.le.s32.totalorder 1, %s15
      %p111 = scmp.lt.s32.totalorder %s15, 3
      %p112 = pnand %p110, %p111
      %p113 = pneg %p112
      // Predicated region
      $region9: #{tpu_custom_call.1} parent=5 // pred_check
        _
      $region10: #{tpu_custom_call.1} parent=5 // pred_check_branch
        %115 = sbr.rel (%p112) target = $region12
      $region11: #{tpu_custom_call.1} parent=5 // pred_region
        %s116 = ssub.s32 %s15, 1
        // Predicated region
        $region13: #{tpu_custom_call.1} parent=11 // pred_check
          %p117 = pneg %p76
        $region14: #{tpu_custom_call.1} parent=11 // pred_check_branch
          %119 = sbr.rel (%p117) target = $region16
        $region15: #{tpu_custom_call.1} parent=11 // pred_region
          %121 = vsyncadd [#allocation7], 0
          %s123 = sshll.u32 %s1, 4
          %s124 = int_to_ptr.hbm [resolvable:$true] %s123
          %126 = dma.hbm_to_smem %s124, 16, [#allocation8], [#allocation7]
        $region16: #{tpu_custom_call.1} parent=11 // pred_fallthru
          _
      $region12: #{tpu_custom_call.1} parent=5 // pred_fallthru
        _
      %p127 = scmp.lt.s32.totalorder %s15, 2
      // Predicated region
      $region17: #{tpu_custom_call.1} parent=5 // pred_check
        %p128 = pneg %p127
      $region18: #{tpu_custom_call.1} parent=5 // pred_check_branch
        %130 = sbr.rel (%p128) target = $region20
      $region19: #{tpu_custom_call.1} parent=5 // pred_region
        // Predicated region
        $region21: #{tpu_custom_call.1} parent=19 // pred_check
          %p131 = pneg %p49
        $region22: #{tpu_custom_call.1} parent=19 // pred_check_branch
          %133 = sbr.rel (%p131) target = $region24
        $region23: #{tpu_custom_call.1} parent=19 // pred_region
          %s134 = sand.u32 %s39, 1
          %s135 = scalar_lea.sflag [#allocation5], %s134
          %s136 = sand.u32 %s39, 1
          %s137 = smul.addr %s136, 64
          %s138 = scalar_lea.vmem [#allocation4], %s137
          %s139 = smul.u32 4, %s23
          %141 = vsyncadd %s135, 0
          %s142 = smul.addr %s139, 2
          %s143 = smul.addr %s22, 8
          %s144 = sadd.s32 %s142, %s143
          %s145 = smul.addr %s144, 8
          %s146 = scalar_lea.hbm %s0, %s145
          %s147 = sshll.u32 %s146, 4
          %s148 = int_to_ptr.hbm [resolvable:$true] %s147
          %s149 = sshll.u32 %s138, 4
          %s150 = int_to_ptr.vmem [resolvable:$true] %s149
          %155 = dma.hbm_to_vmem [thread:$0]  %s148, 1024, %s150, %s135, 128, 128, 8
        $region24: #{tpu_custom_call.1} parent=19 // pred_fallthru
          _
      $region20: #{tpu_custom_call.1} parent=5 // pred_fallthru
        _
      %p156 = scmp.le.s32.totalorder 1, %s15
      %p157 = scmp.lt.s32.totalorder %s15, 3
      %p158 = pnand %p156, %p157
      %p159 = pneg %p158
      // Predicated region
      $region25: #{tpu_custom_call.1} parent=5 // pred_check
        _
      $region26: #{tpu_custom_call.1} parent=5 // pred_check_branch
        %161 = sbr.rel (%p158) target = $region28
      $region27: #{tpu_custom_call.1} parent=5 // pred_region
        %s162 = ssub.s32 %s15, 1
        %s163 = sand.u32 %s42, 1
        %s164 = scalar_lea.sflag [#allocation5], %s163
        %s165 = sand.u32 %s42, 1
        %s166 = smul.addr %s165, 64
        %s167 = scalar_lea.vmem [#allocation4], %s166
        // Predicated region
        $region29: #{tpu_custom_call.1} parent=27 // pred_check
          %p168 = pneg %p55
        $region30: #{tpu_custom_call.1} parent=27 // pred_check_branch
          %170 = sbr.rel (%p168) target = $region32
        $region31: #{tpu_custom_call.1} parent=27 // pred_region
          %172 = dma.done %s164, 1024
        $region32: #{tpu_custom_call.1} parent=27 // pred_fallthru
          _
        // Predicated region
        $region33: #{tpu_custom_call.1} parent=27 // pred_check
          %p173 = pneg %p76
        $region34: #{tpu_custom_call.1} parent=27 // pred_check_branch
          %175 = sbr.rel (%p173) target = $region36
        $region35: #{tpu_custom_call.1} parent=27 // pred_region
          %177 = dma.done [#allocation7], 16
        $region36: #{tpu_custom_call.1} parent=27 // pred_fallthru
          _
        %178 = sfence
        %s179 = sand.u32 %s42, 1
        %s180 = scalar_lea.sflag [#allocation5], %s179
        %s181 = sand.u32 %s42, 1
        %s182 = smul.addr %s181, 64
        %s183 = scalar_lea.vmem [#allocation4], %s182
        %p184 = pneg %p55
        %p185 = pneg %p52
        %p186 = pneg %p76
        %p187 = pneg %p73
        %p188 = pneg %p102
        %p189 = pneg %p99
        %s190 = sand.u32 %s89, 1
        %s191 = scalar_lea.sflag [#allocation6], %s190
        %s192 = sand.u32 %s89, 1
        %s193 = smul.addr %s192, 16
        %s194 = scalar_lea.vmem [#allocation9], %s193
        %s195 = smul.u32 4, %s25
        %v196 = vld [vmem:[%s167] sm:$0xff]
        %v197 = vld [vmem:[%s167 + $0x8] sm:$0xff]
        %s198 = scalar_lea.vmem %s167, 16 [#allocation4]
        %v199 = vld [vmem:[%s198] sm:$0xff]
        %v200 = vld [vmem:[%s198 + $0x8] sm:$0xff]
        %v201 = vadd.f32 %v196, %v199
        %v202 = vadd.f32 %v197, %v200
        %v203 = vmax.f32 %v196, %v199
        %v204 = vmax.f32 %v197, %v200
        %s205 = scalar_lea.vmem %s167, 32 [#allocation4]
        %v206 = vld [vmem:[%s205] sm:$0xff]
        %v207 = vld [vmem:[%s205 + $0x8] sm:$0xff]
        %v208 = vadd.f32 %v201, %v206
        %v209 = vadd.f32 %v202, %v207
        %v210 = vmax.f32 %v203, %v206
        %v211 = vmax.f32 %v204, %v207
        %s212 = scalar_lea.vmem %s167, 48 [#allocation4]
        %v213 = vld [vmem:[%s212] sm:$0xff]
        %v214 = vld [vmem:[%s212 + $0x8] sm:$0xff]
        %v215 = vadd.f32 %v208, %v213
        %v216 = vadd.f32 %v209, %v214
        %v217 = vmax.f32 %v210, %v213
        %v218 = vmax.f32 %v211, %v214
        %p219 = scmp.eq.s32.totalorder %s25, 0
        // Predicated region
        $region37: #{tpu_custom_call.1} parent=27 // pred_check
          %p220 = pneg %p219
        $region38: #{tpu_custom_call.1} parent=27 // pred_check_branch
          %222 = sbr.rel (%p220) target = $region40
        $region39: #{tpu_custom_call.1} parent=27 // pred_region
          %223 = vst [vmem:[#allocation2] sm:$0xff] 0.0
          %vm224 = vcmask 154624
          %225 = vst.msk [vmem:[#allocation2 + $0x8] sm:$0xff] %vm224, 0.0
          %226 = vst [vmem:[#allocation2 + $0x10] sm:$0xff] 0.0
          %227 = vst.msk [vmem:[#allocation2 + $0x18] sm:$0xff] %vm224, 0.0
          %228 = vst [vmem:[#allocation2 + $0x20] sm:$0xff] 0.0
          %229 = vst.msk [vmem:[#allocation2 + $0x28] sm:$0xff] %vm224, 0.0
          %230 = vst [vmem:[#allocation2 + $0x30] sm:$0x7] 0.0
          %vm231 = vcmask 149504
          %232 = vst.msk [vmem:[#allocation2 + $0x38] sm:$0x7] %vm231, 0.0
          %233 = vst [vmem:[#allocation3] sm:$0xff] 0.0
          %234 = vst.msk [vmem:[#allocation3 + $0x8] sm:$0xff] %vm224, 0.0
          %235 = vst [vmem:[#allocation3 + $0x10] sm:$0xff] 0.0
          %236 = vst.msk [vmem:[#allocation3 + $0x18] sm:$0xff] %vm224, 0.0
          %237 = vst [vmem:[#allocation3 + $0x20] sm:$0xff] 0.0
          %238 = vst.msk [vmem:[#allocation3 + $0x28] sm:$0xff] %vm224, 0.0
          %239 = vst [vmem:[#allocation3 + $0x30] sm:$0x7] 0.0
          %240 = vst.msk [vmem:[#allocation3 + $0x38] sm:$0x7] %vm231, 0.0
          %vm241 = vcmask 130048
          %242 = vst.msk [vmem:[#allocation2 + $0x18] sm:$0xff] %vm241, %v215
          %243 = vst.msk [vmem:[#allocation2 + $0x28] sm:$0xff] %vm241, %v216
          %244 = vst.msk [vmem:[#allocation3 + $0x18] sm:$0xff] %vm241, %v217
          %245 = vst.msk [vmem:[#allocation3 + $0x28] sm:$0xff] %vm241, %v218
        $region40: #{tpu_custom_call.1} parent=27 // pred_fallthru
          _
        %p246 = scmp.ne.s32.totalorder %s25, 0
        // Predicated region
        $region41: #{tpu_custom_call.1} parent=27 // pred_check
          %p247 = pneg %p246
        $region42: #{tpu_custom_call.1} parent=27 // pred_check_branch
          %249 = sbr.rel (%p247) target = $region44
        $region43: #{tpu_custom_call.1} parent=27 // pred_region
          %v250 = vld [vmem:[#allocation2 + $0x18] sm:$0xff]
          %v251 = vld [vmem:[#allocation2 + $0x28] sm:$0xff]
          %v252 = vadd.f32 %v250, %v215
          %v253 = vadd.f32 %v251, %v216
          %vm254 = vcmask 130048
          %255 = vst.msk [vmem:[#allocation2 + $0x18] sm:$0xff] %vm254, %v252
          %256 = vst.msk [vmem:[#allocation2 + $0x28] sm:$0xff] %vm254, %v253
          %v257 = vld [vmem:[#allocation3 + $0x18] sm:$0xff]
          %v258 = vld [vmem:[#allocation3 + $0x28] sm:$0xff]
          %v259 = vmax.f32 %v257, %v217
          %v260 = vmax.f32 %v258, %v218
          %261 = vst.msk [vmem:[#allocation3 + $0x18] sm:$0xff] %vm254, %v259
          %262 = vst.msk [vmem:[#allocation3 + $0x28] sm:$0xff] %vm254, %v260
        $region44: #{tpu_custom_call.1} parent=27 // pred_fallthru
          _
        // Predicated region
        $region45: #{tpu_custom_call.1} parent=27 // pred_check
          %p263 = pneg %p219
        $region46: #{tpu_custom_call.1} parent=27 // pred_check_branch
          %265 = sbr.rel (%p263) target = $region48
        $region47: #{tpu_custom_call.1} parent=27 // pred_region
          %v266 = vld [vmem:[#allocation2] sm:$0xff]
          %v267 = vld [vmem:[#allocation2 + $0x8] sm:$0xff]
          %v268 = vld [vmem:[#allocation2 + $0x10] sm:$0xff]
          %v269 = vld [vmem:[#allocation2 + $0x18] sm:$0xff]
          %v270 = vld [vmem:[#allocation2 + $0x20] sm:$0xff]
          %v271 = vld [vmem:[#allocation2 + $0x28] sm:$0xff]
          %v272 = vld [vmem:[#allocation2 + $0x30] sm:$0x7]
          %v273 = vld [vmem:[#allocation2 + $0x38] sm:$0x7]
          %v274 = vld [vmem:[#allocation3] sm:$0xff]
          %v275 = vld [vmem:[#allocation3 + $0x8] sm:$0xff]
          %v276 = vld [vmem:[#allocation3 + $0x10] sm:$0xff]
          %v277 = vld [vmem:[#allocation3 + $0x18] sm:$0xff]
          %v278 = vld [vmem:[#allocation3 + $0x20] sm:$0xff]
          %v279 = vld [vmem:[#allocation3 + $0x28] sm:$0xff]
          %v280 = vld [vmem:[#allocation3 + $0x30] sm:$0x7]
          %v281 = vld [vmem:[#allocation3 + $0x38] sm:$0x7]
          %s282 = sld [smem:[#allocation8]]
          %s283 = sld [smem:[#allocation8 + $0x31]]
          %v284 = vstv %s282
          %v285 = vmul.f32 %v284, %v266
          %v286 = vmul.f32 %v284, %v267
          %v287 = vmul.f32 %v284, %v268
          %v288 = vmul.f32 %v284, %v269
          %v289 = vmul.f32 %v284, %v270
          %v290 = vmul.f32 %v284, %v271
          %v291 = vadd.f32 %v285, 0.0
          %v292 = vadd.f32 %v286, 0.0
          %v293 = vadd.f32 %v287, 0.0
          %v294 = vadd.f32 %v288, 0.0
          %v295 = vadd.f32 %v289, 0.0
          %v296 = vadd.f32 %v290, 0.0
          %v297 = vstv %s283
          %v298 = vmul.f32 %v297, %v274
          %v299 = vmul.f32 %v297, %v275
          %v300 = vmul.f32 %v297, %v276
          %v301 = vmul.f32 %v297, %v277
          %v302 = vmul.f32 %v297, %v278
          %v303 = vmul.f32 %v297, %v279
          %v304 = vadd.f32 %v298, 0.0
          %v305 = vadd.f32 %v299, 0.0
          %v306 = vadd.f32 %v300, 0.0
          %v307 = vadd.f32 %v301, 0.0
          %v308 = vadd.f32 %v302, 0.0
          %v309 = vadd.f32 %v303, 0.0
          %s310 = sld [smem:[#allocation8 + $0x7]]
          %s311 = sld [smem:[#allocation8 + $0x38]]
          %v312 = vstv %s310
          %v313 = vmul.f32 %v312, %v266
          %v314 = vmul.f32 %v312, %v267
          %v315 = vmul.f32 %v312, %v268
          %v316 = vmul.f32 %v312, %v269
          %v317 = vmul.f32 %v312, %v270
          %v318 = vmul.f32 %v312, %v271
          %vm325 = vcmask 1046528
          %v326 = vrot.slane %v313, 1
          %v327 = vrot.slane %v315, 1
          %v328 = vsel %vm325, %v326, %v327
          %v329 = vrot.slane %v314, 1
          %v330 = vrot.slane %v316, 1
          %v331 = vsel %vm325, %v329, %v330
          %v332 = vrot.slane %v317, 1
          %v333 = vsel %vm325, %v327, %v332
          %v334 = vrot.slane %v318, 1
          %v335 = vsel %vm325, %v330, %v334
          %v342 = vadd.f32 %v291, %v328
          %v343 = vadd.f32 %v292, %v331
          %v344 = vadd.f32 %v293, %v333
          %v345 = vadd.f32 %v294, %v335
          %v346 = vadd.f32 %v295, %v332
          %v347 = vadd.f32 %v296, %v334
          %v348 = vstv %s311
          %v349 = vmul.f32 %v348, %v274
          %v350 = vmul.f32 %v348, %v275
          %v351 = vmul.f32 %v348, %v276
          %v352 = vmul.f32 %v348, %v277
          %v353 = vmul.f32 %v348, %v278
          %v354 = vmul.f32 %v348, %v279
          %v361 = vrot.slane %v349, 1
          %v362 = vrot.slane %v351, 1
          %v363 = vsel %vm325, %v361, %v362
          %v364 = vrot.slane %v350, 1
          %v365 = vrot.slane %v352, 1
          %v366 = vsel %vm325, %v364, %v365
          %v367 = vrot.slane %v353, 1
          %v368 = vsel %vm325, %v362, %v367
          %v369 = vrot.slane %v354, 1
          %v370 = vsel %vm325, %v365, %v369
          %v377 = vadd.f32 %v304, %v363
          %v378 = vadd.f32 %v305, %v366
          %v379 = vadd.f32 %v306, %v368
          %v380 = vadd.f32 %v307, %v370
          %v381 = vadd.f32 %v308, %v367
          %v382 = vadd.f32 %v309, %v369
          %s383 = sld [smem:[#allocation8 + $0xe]]
          %s384 = sld [smem:[#allocation8 + $0x3f]]
          %v385 = vstv %s383
          %v386 = vmul.f32 %v385, %v266
          %v387 = vmul.f32 %v385, %v267
          %v388 = vmul.f32 %v385, %v268
          %v389 = vmul.f32 %v385, %v269
          %v390 = vmul.f32 %v385, %v270
          %v391 = vmul.f32 %v385, %v271
          %vm398 = vcmask 1045504
          %v399 = vrot.slane %v386, 2
          %v400 = vrot.slane %v388, 2
          %v401 = vsel %vm398, %v399, %v400
          %v402 = vrot.slane %v387, 2
          %v403 = vrot.slane %v389, 2
          %v404 = vsel %vm398, %v402, %v403
          %v405 = vrot.slane %v390, 2
          %v406 = vsel %vm398, %v400, %v405
          %v407 = vrot.slane %v391, 2
          %v408 = vsel %vm398, %v403, %v407
          %v415 = vadd.f32 %v342, %v401
          %v416 = vadd.f32 %v343, %v404
          %v417 = vadd.f32 %v344, %v406
          %v418 = vadd.f32 %v345, %v408
          %v419 = vadd.f32 %v346, %v405
          %v420 = vadd.f32 %v347, %v407
          %v421 = vstv %s384
          %v422 = vmul.f32 %v421, %v274
          %v423 = vmul.f32 %v421, %v275
          %v424 = vmul.f32 %v421, %v276
          %v425 = vmul.f32 %v421, %v277
          %v426 = vmul.f32 %v421, %v278
          %v427 = vmul.f32 %v421, %v279
          %v434 = vrot.slane %v422, 2
          %v435 = vrot.slane %v424, 2
          %v436 = vsel %vm398, %v434, %v435
          %v437 = vrot.slane %v423, 2
          %v438 = vrot.slane %v425, 2
          %v439 = vsel %vm398, %v437, %v438
          %v440 = vrot.slane %v426, 2
          %v441 = vsel %vm398, %v435, %v440
          %v442 = vrot.slane %v427, 2
          %v443 = vsel %vm398, %v438, %v442
          %v450 = vadd.f32 %v377, %v436
          %v451 = vadd.f32 %v378, %v439
          %v452 = vadd.f32 %v379, %v441
          %v453 = vadd.f32 %v380, %v443
          %v454 = vadd.f32 %v381, %v440
          %v455 = vadd.f32 %v382, %v442
          %s456 = sld [smem:[#allocation8 + $0x15]]
          %s457 = sld [smem:[#allocation8 + $0x46]]
          %v458 = vstv %s456
          %v459 = vmul.f32 %v458, %v268
          %v460 = vmul.f32 %v458, %v269
          %v461 = vmul.f32 %v458, %v270
          %v462 = vmul.f32 %v458, %v271
          %vm467 = vcmask 1044480
          %v468 = vrot.slane %v459, 3
          %v469 = vrot.slane %v460, 3
          %v470 = vrot.slane %v461, 3
          %v471 = vsel %vm467, %v468, %v470
          %v472 = vrot.slane %v462, 3
          %v473 = vsel %vm467, %v469, %v472
          %v480 = vadd.f32 %v415, %v468
          %v481 = vadd.f32 %v416, %v469
          %v482 = vadd.f32 %v417, %v471
          %v483 = vadd.f32 %v418, %v473
          %v484 = vadd.f32 %v419, %v470
          %v485 = vadd.f32 %v420, %v472
          %v486 = vstv %s457
          %v487 = vmul.f32 %v486, %v276
          %v488 = vmul.f32 %v486, %v277
          %v489 = vmul.f32 %v486, %v278
          %v490 = vmul.f32 %v486, %v279
          %v495 = vrot.slane %v487, 3
          %v496 = vrot.slane %v488, 3
          %v497 = vrot.slane %v489, 3
          %v498 = vsel %vm467, %v495, %v497
          %v499 = vrot.slane %v490, 3
          %v500 = vsel %vm467, %v496, %v499
          %v507 = vadd.f32 %v450, %v495
          %v508 = vadd.f32 %v451, %v496
          %v509 = vadd.f32 %v452, %v498
          %v510 = vadd.f32 %v453, %v500
          %v511 = vadd.f32 %v454, %v497
          %v512 = vadd.f32 %v455, %v499
          %s513 = sld [smem:[#allocation8 + $0x1c]]
          %s514 = sld [smem:[#allocation8 + $0x4d]]
          %v515 = vstv %s513
          %v516 = vmul.f32 %v515, %v268
          %v517 = vmul.f32 %v515, %v269
          %v518 = vmul.f32 %v515, %v270
          %v519 = vmul.f32 %v515, %v271
          %v520 = vmul.f32 %v515, %v272
          %v521 = vmul.f32 %v515, %v273
          %vm528 = vcmask 1043456
          %v529 = vrot.slane %v516, 4
          %v530 = vrot.slane %v517, 4
          %v531 = vrot.slane %v518, 4
          %v532 = vsel %vm528, %v529, %v531
          %v533 = vrot.slane %v519, 4
          %v534 = vsel %vm528, %v530, %v533
          %v535 = vrot.slane %v520, 4
          %v536 = vsel %vm528, %v531, %v535
          %v537 = vrot.slane %v521, 4
          %v538 = vsel %vm528, %v533, %v537
          %v545 = vadd.f32 %v480, %v529
          %v546 = vadd.f32 %v481, %v530
          %v547 = vadd.f32 %v482, %v532
          %v548 = vadd.f32 %v483, %v534
          %v549 = vadd.f32 %v484, %v536
          %v550 = vadd.f32 %v485, %v538
          %v551 = vstv %s514
          %v552 = vmul.f32 %v551, %v276
          %v553 = vmul.f32 %v551, %v277
          %v554 = vmul.f32 %v551, %v278
          %v555 = vmul.f32 %v551, %v279
          %v556 = vmul.f32 %v551, %v280
          %v557 = vmul.f32 %v551, %v281
          %v564 = vrot.slane %v552, 4
          %v565 = vrot.slane %v553, 4
          %v566 = vrot.slane %v554, 4
          %v567 = vsel %vm528, %v564, %v566
          %v568 = vrot.slane %v555, 4
          %v569 = vsel %vm528, %v565, %v568
          %v570 = vrot.slane %v556, 4
          %v571 = vsel %vm528, %v566, %v570
          %v572 = vrot.slane %v557, 4
          %v573 = vsel %vm528, %v568, %v572
          %v580 = vadd.f32 %v507, %v564
          %v581 = vadd.f32 %v508, %v565
          %v582 = vadd.f32 %v509, %v567
          %v583 = vadd.f32 %v510, %v569
          %v584 = vadd.f32 %v511, %v571
          %v585 = vadd.f32 %v512, %v573
          %s586 = sld [smem:[#allocation8 + $0x23]]
          %s587 = sld [smem:[#allocation8 + $0x54]]
          %v588 = vstv %s586
          %v589 = vmul.f32 %v588, %v268
          %v590 = vmul.f32 %v588, %v269
          %v591 = vmul.f32 %v588, %v270
          %v592 = vmul.f32 %v588, %v271
          %v593 = vmul.f32 %v588, %v272
          %v594 = vmul.f32 %v588, %v273
          %vm601 = vcmask 1042432
          %v602 = vrot.slane %v589, 5
          %v603 = vrot.slane %v590, 5
          %v604 = vrot.slane %v591, 5
          %v605 = vsel %vm601, %v602, %v604
          %v606 = vrot.slane %v592, 5
          %v607 = vsel %vm601, %v603, %v606
          %v608 = vrot.slane %v593, 5
          %v609 = vsel %vm601, %v604, %v608
          %v610 = vrot.slane %v594, 5
          %v611 = vsel %vm601, %v606, %v610
          %v618 = vadd.f32 %v545, %v602
          %v619 = vadd.f32 %v546, %v603
          %v620 = vadd.f32 %v547, %v605
          %v621 = vadd.f32 %v548, %v607
          %v622 = vadd.f32 %v549, %v609
          %v623 = vadd.f32 %v550, %v611
          %v624 = vstv %s587
          %v625 = vmul.f32 %v624, %v276
          %v626 = vmul.f32 %v624, %v277
          %v627 = vmul.f32 %v624, %v278
          %v628 = vmul.f32 %v624, %v279
          %v629 = vmul.f32 %v624, %v280
          %v630 = vmul.f32 %v624, %v281
          %v637 = vrot.slane %v625, 5
          %v638 = vrot.slane %v626, 5
          %v639 = vrot.slane %v627, 5
          %v640 = vsel %vm601, %v637, %v639
          %v641 = vrot.slane %v628, 5
          %v642 = vsel %vm601, %v638, %v641
          %v643 = vrot.slane %v629, 5
          %v644 = vsel %vm601, %v639, %v643
          %v645 = vrot.slane %v630, 5
          %v646 = vsel %vm601, %v641, %v645
          %v653 = vadd.f32 %v580, %v637
          %v654 = vadd.f32 %v581, %v638
          %v655 = vadd.f32 %v582, %v640
          %v656 = vadd.f32 %v583, %v642
          %v657 = vadd.f32 %v584, %v644
          %v658 = vadd.f32 %v585, %v646
          %s659 = sld [smem:[#allocation8 + $0x2a]]
          %s660 = sld [smem:[#allocation8 + $0x5b]]
          %v661 = vstv %s659
          %v662 = vmul.f32 %v661, %v268
          %v663 = vmul.f32 %v661, %v269
          %v664 = vmul.f32 %v661, %v270
          %v665 = vmul.f32 %v661, %v271
          %v666 = vmul.f32 %v661, %v272
          %v667 = vmul.f32 %v661, %v273
          %vm674 = vcmask 1041408
          %v675 = vrot.slane %v662, 6
          %v676 = vrot.slane %v663, 6
          %v677 = vrot.slane %v664, 6
          %v678 = vsel %vm674, %v675, %v677
          %v679 = vrot.slane %v665, 6
          %v680 = vsel %vm674, %v676, %v679
          %v681 = vrot.slane %v666, 6
          %v682 = vsel %vm674, %v677, %v681
          %v683 = vrot.slane %v667, 6
          %v684 = vsel %vm674, %v679, %v683
          %v691 = vadd.f32 %v618, %v675
          %v692 = vadd.f32 %v619, %v676
          %v693 = vadd.f32 %v620, %v678
          %v694 = vadd.f32 %v621, %v680
          %v695 = vadd.f32 %v622, %v682
          %v696 = vadd.f32 %v623, %v684
          %v697 = vstv %s660
          %v698 = vmul.f32 %v697, %v276
          %v699 = vmul.f32 %v697, %v277
          %v700 = vmul.f32 %v697, %v278
          %v701 = vmul.f32 %v697, %v279
          %v702 = vmul.f32 %v697, %v280
          %v703 = vmul.f32 %v697, %v281
          %v710 = vrot.slane %v698, 6
          %v711 = vrot.slane %v699, 6
          %v712 = vrot.slane %v700, 6
          %v713 = vsel %vm674, %v710, %v712
          %v714 = vrot.slane %v701, 6
          %v715 = vsel %vm674, %v711, %v714
          %v716 = vrot.slane %v702, 6
          %v717 = vsel %vm674, %v712, %v716
          %v718 = vrot.slane %v703, 6
          %v719 = vsel %vm674, %v714, %v718
          %v726 = vadd.f32 %v653, %v710
          %v727 = vadd.f32 %v654, %v711
          %v728 = vadd.f32 %v655, %v713
          %v729 = vadd.f32 %v656, %v715
          %v730 = vadd.f32 %v657, %v717
          %v731 = vadd.f32 %v658, %v719
          %s732 = sld [smem:[#allocation8 + $0x1]]
          %s733 = sld [smem:[#allocation8 + $0x32]]
          %v734 = vstv %s732
          %v735 = vmul.f32 %v734, %v266
          %v736 = vmul.f32 %v734, %v267
          %v737 = vmul.f32 %v734, %v268
          %v738 = vmul.f32 %v734, %v269
          %v739 = vmul.f32 %v734, %v270
          %v740 = vmul.f32 %v734, %v271
          %v741 = vadd.f32 %v735, 0.0
          %v742 = vadd.f32 %v736, 0.0
          %v743 = vadd.f32 %v737, 0.0
          %v744 = vadd.f32 %v738, 0.0
          %v745 = vadd.f32 %v739, 0.0
          %v746 = vadd.f32 %v740, 0.0
          %v747 = vstv %s733
          %v748 = vmul.f32 %v747, %v274
          %v749 = vmul.f32 %v747, %v275
          %v750 = vmul.f32 %v747, %v276
          %v751 = vmul.f32 %v747, %v277
          %v752 = vmul.f32 %v747, %v278
          %v753 = vmul.f32 %v747, %v279
          %v754 = vadd.f32 %v748, 0.0
          %v755 = vadd.f32 %v749, 0.0
          %v756 = vadd.f32 %v750, 0.0
          %v757 = vadd.f32 %v751, 0.0
          %v758 = vadd.f32 %v752, 0.0
          %v759 = vadd.f32 %v753, 0.0
          %s760 = sld [smem:[#allocation8 + $0x8]]
          %s761 = sld [smem:[#allocation8 + $0x39]]
          %v762 = vstv %s760
          %v763 = vmul.f32 %v762, %v266
          %v764 = vmul.f32 %v762, %v267
          %v765 = vmul.f32 %v762, %v268
          %v766 = vmul.f32 %v762, %v269
          %v767 = vmul.f32 %v762, %v270
          %v768 = vmul.f32 %v762, %v271
          %v775 = vrot.slane %v763, 1
          %v776 = vrot.slane %v765, 1
          %v777 = vsel %vm325, %v775, %v776
          %v778 = vrot.slane %v764, 1
          %v779 = vrot.slane %v766, 1
          %v780 = vsel %vm325, %v778, %v779
          %v781 = vrot.slane %v767, 1
          %v782 = vsel %vm325, %v776, %v781
          %v783 = vrot.slane %v768, 1
          %v784 = vsel %vm325, %v779, %v783
          %v791 = vadd.f32 %v741, %v777
          %v792 = vadd.f32 %v742, %v780
          %v793 = vadd.f32 %v743, %v782
          %v794 = vadd.f32 %v744, %v784
          %v795 = vadd.f32 %v745, %v781
          %v796 = vadd.f32 %v746, %v783
          %v797 = vstv %s761
          %v798 = vmul.f32 %v797, %v274
          %v799 = vmul.f32 %v797, %v275
          %v800 = vmul.f32 %v797, %v276
          %v801 = vmul.f32 %v797, %v277
          %v802 = vmul.f32 %v797, %v278
          %v803 = vmul.f32 %v797, %v279
          %v810 = vrot.slane %v798, 1
          %v811 = vrot.slane %v800, 1
          %v812 = vsel %vm325, %v810, %v811
          %v813 = vrot.slane %v799, 1
          %v814 = vrot.slane %v801, 1
          %v815 = vsel %vm325, %v813, %v814
          %v816 = vrot.slane %v802, 1
          %v817 = vsel %vm325, %v811, %v816
          %v818 = vrot.slane %v803, 1
          %v819 = vsel %vm325, %v814, %v818
          %v826 = vadd.f32 %v754, %v812
          %v827 = vadd.f32 %v755, %v815
          %v828 = vadd.f32 %v756, %v817
          %v829 = vadd.f32 %v757, %v819
          %v830 = vadd.f32 %v758, %v816
          %v831 = vadd.f32 %v759, %v818
          %s832 = sld [smem:[#allocation8 + $0xf]]
          %s833 = sld [smem:[#allocation8 + $0x40]]
          %v834 = vstv %s832
          %v835 = vmul.f32 %v834, %v266
          %v836 = vmul.f32 %v834, %v267
          %v837 = vmul.f32 %v834, %v268
          %v838 = vmul.f32 %v834, %v269
          %v839 = vmul.f32 %v834, %v270
          %v840 = vmul.f32 %v834, %v271
          %v847 = vrot.slane %v835, 2
          %v848 = vrot.slane %v837, 2
          %v849 = vsel %vm398, %v847, %v848
          %v850 = vrot.slane %v836, 2
          %v851 = vrot.slane %v838, 2
          %v852 = vsel %vm398, %v850, %v851
          %v853 = vrot.slane %v839, 2
          %v854 = vsel %vm398, %v848, %v853
          %v855 = vrot.slane %v840, 2
          %v856 = vsel %vm398, %v851, %v855
          %v863 = vadd.f32 %v791, %v849
          %v864 = vadd.f32 %v792, %v852
          %v865 = vadd.f32 %v793, %v854
          %v866 = vadd.f32 %v794, %v856
          %v867 = vadd.f32 %v795, %v853
          %v868 = vadd.f32 %v796, %v855
          %v869 = vstv %s833
          %v870 = vmul.f32 %v869, %v274
          %v871 = vmul.f32 %v869, %v275
          %v872 = vmul.f32 %v869, %v276
          %v873 = vmul.f32 %v869, %v277
          %v874 = vmul.f32 %v869, %v278
          %v875 = vmul.f32 %v869, %v279
          %v882 = vrot.slane %v870, 2
          %v883 = vrot.slane %v872, 2
          %v884 = vsel %vm398, %v882, %v883
          %v885 = vrot.slane %v871, 2
          %v886 = vrot.slane %v873, 2
          %v887 = vsel %vm398, %v885, %v886
          %v888 = vrot.slane %v874, 2
          %v889 = vsel %vm398, %v883, %v888
          %v890 = vrot.slane %v875, 2
          %v891 = vsel %vm398, %v886, %v890
          %v898 = vadd.f32 %v826, %v884
          %v899 = vadd.f32 %v827, %v887
          %v900 = vadd.f32 %v828, %v889
          %v901 = vadd.f32 %v829, %v891
          %v902 = vadd.f32 %v830, %v888
          %v903 = vadd.f32 %v831, %v890
          %s904 = sld [smem:[#allocation8 + $0x16]]
          %s905 = sld [smem:[#allocation8 + $0x47]]
          %v906 = vstv %s904
          %v907 = vmul.f32 %v906, %v268
          %v908 = vmul.f32 %v906, %v269
          %v909 = vmul.f32 %v906, %v270
          %v910 = vmul.f32 %v906, %v271
          %v915 = vrot.slane %v907, 3
          %v916 = vrot.slane %v908, 3
          %v917 = vrot.slane %v909, 3
          %v918 = vsel %vm467, %v915, %v917
          %v919 = vrot.slane %v910, 3
          %v920 = vsel %vm467, %v916, %v919
          %v927 = vadd.f32 %v863, %v915
          %v928 = vadd.f32 %v864, %v916
          %v929 = vadd.f32 %v865, %v918
          %v930 = vadd.f32 %v866, %v920
          %v931 = vadd.f32 %v867, %v917
          %v932 = vadd.f32 %v868, %v919
          %v933 = vstv %s905
          %v934 = vmul.f32 %v933, %v276
          %v935 = vmul.f32 %v933, %v277
          %v936 = vmul.f32 %v933, %v278
          %v937 = vmul.f32 %v933, %v279
          %v942 = vrot.slane %v934, 3
          %v943 = vrot.slane %v935, 3
          %v944 = vrot.slane %v936, 3
          %v945 = vsel %vm467, %v942, %v944
          %v946 = vrot.slane %v937, 3
          %v947 = vsel %vm467, %v943, %v946
          %v954 = vadd.f32 %v898, %v942
          %v955 = vadd.f32 %v899, %v943
          %v956 = vadd.f32 %v900, %v945
          %v957 = vadd.f32 %v901, %v947
          %v958 = vadd.f32 %v902, %v944
          %v959 = vadd.f32 %v903, %v946
          %s960 = sld [smem:[#allocation8 + $0x1d]]
          %s961 = sld [smem:[#allocation8 + $0x4e]]
          %v962 = vstv %s960
          %v963 = vmul.f32 %v962, %v268
          %v964 = vmul.f32 %v962, %v269
          %v965 = vmul.f32 %v962, %v270
          %v966 = vmul.f32 %v962, %v271
          %v967 = vmul.f32 %v962, %v272
          %v968 = vmul.f32 %v962, %v273
          %v975 = vrot.slane %v963, 4
          %v976 = vrot.slane %v964, 4
          %v977 = vrot.slane %v965, 4
          %v978 = vsel %vm528, %v975, %v977
          %v979 = vrot.slane %v966, 4
          %v980 = vsel %vm528, %v976, %v979
          %v981 = vrot.slane %v967, 4
          %v982 = vsel %vm528, %v977, %v981
          %v983 = vrot.slane %v968, 4
          %v984 = vsel %vm528, %v979, %v983
          %v991 = vadd.f32 %v927, %v975
          %v992 = vadd.f32 %v928, %v976
          %v993 = vadd.f32 %v929, %v978
          %v994 = vadd.f32 %v930, %v980
          %v995 = vadd.f32 %v931, %v982
          %v996 = vadd.f32 %v932, %v984
          %v997 = vstv %s961
          %v998 = vmul.f32 %v997, %v276
          %v999 = vmul.f32 %v997, %v277
          %v1000 = vmul.f32 %v997, %v278
          %v1001 = vmul.f32 %v997, %v279
          %v1002 = vmul.f32 %v997, %v280
          %v1003 = vmul.f32 %v997, %v281
          %v1010 = vrot.slane %v998, 4
          %v1011 = vrot.slane %v999, 4
          %v1012 = vrot.slane %v1000, 4
          %v1013 = vsel %vm528, %v1010, %v1012
          %v1014 = vrot.slane %v1001, 4
          %v1015 = vsel %vm528, %v1011, %v1014
          %v1016 = vrot.slane %v1002, 4
          %v1017 = vsel %vm528, %v1012, %v1016
          %v1018 = vrot.slane %v1003, 4
          %v1019 = vsel %vm528, %v1014, %v1018
          %v1026 = vadd.f32 %v954, %v1010
          %v1027 = vadd.f32 %v955, %v1011
          %v1028 = vadd.f32 %v956, %v1013
          %v1029 = vadd.f32 %v957, %v1015
          %v1030 = vadd.f32 %v958, %v1017
          %v1031 = vadd.f32 %v959, %v1019
          %s1032 = sld [smem:[#allocation8 + $0x24]]
          %s1033 = sld [smem:[#allocation8 + $0x55]]
          %v1034 = vstv %s1032
          %v1035 = vmul.f32 %v1034, %v268
          %v1036 = vmul.f32 %v1034, %v269
          %v1037 = vmul.f32 %v1034, %v270
          %v1038 = vmul.f32 %v1034, %v271
          %v1039 = vmul.f32 %v1034, %v272
          %v1040 = vmul.f32 %v1034, %v273
          %v1047 = vrot.slane %v1035, 5
          %v1048 = vrot.slane %v1036, 5
          %v1049 = vrot.slane %v1037, 5
          %v1050 = vsel %vm601, %v1047, %v1049
          %v1051 = vrot.slane %v1038, 5
          %v1052 = vsel %vm601, %v1048, %v1051
          %v1053 = vrot.slane %v1039, 5
          %v1054 = vsel %vm601, %v1049, %v1053
          %v1055 = vrot.slane %v1040, 5
          %v1056 = vsel %vm601, %v1051, %v1055
          %v1063 = vadd.f32 %v991, %v1047
          %v1064 = vadd.f32 %v992, %v1048
          %v1065 = vadd.f32 %v993, %v1050
          %v1066 = vadd.f32 %v994, %v1052
          %v1067 = vadd.f32 %v995, %v1054
          %v1068 = vadd.f32 %v996, %v1056
          %v1069 = vstv %s1033
          %v1070 = vmul.f32 %v1069, %v276
          %v1071 = vmul.f32 %v1069, %v277
          %v1072 = vmul.f32 %v1069, %v278
          %v1073 = vmul.f32 %v1069, %v279
          %v1074 = vmul.f32 %v1069, %v280
          %v1075 = vmul.f32 %v1069, %v281
          %v1082 = vrot.slane %v1070, 5
          %v1083 = vrot.slane %v1071, 5
          %v1084 = vrot.slane %v1072, 5
          %v1085 = vsel %vm601, %v1082, %v1084
          %v1086 = vrot.slane %v1073, 5
          %v1087 = vsel %vm601, %v1083, %v1086
          %v1088 = vrot.slane %v1074, 5
          %v1089 = vsel %vm601, %v1084, %v1088
          %v1090 = vrot.slane %v1075, 5
          %v1091 = vsel %vm601, %v1086, %v1090
          %v1098 = vadd.f32 %v1026, %v1082
          %v1099 = vadd.f32 %v1027, %v1083
          %v1100 = vadd.f32 %v1028, %v1085
          %v1101 = vadd.f32 %v1029, %v1087
          %v1102 = vadd.f32 %v1030, %v1089
          %v1103 = vadd.f32 %v1031, %v1091
          %s1104 = sld [smem:[#allocation8 + $0x2b]]
          %s1105 = sld [smem:[#allocation8 + $0x5c]]
          %v1106 = vstv %s1104
          %v1107 = vmul.f32 %v1106, %v268
          %v1108 = vmul.f32 %v1106, %v269
          %v1109 = vmul.f32 %v1106, %v270
          %v1110 = vmul.f32 %v1106, %v271
          %v1111 = vmul.f32 %v1106, %v272
          %v1112 = vmul.f32 %v1106, %v273
          %v1119 = vrot.slane %v1107, 6
          %v1120 = vrot.slane %v1108, 6
          %v1121 = vrot.slane %v1109, 6
          %v1122 = vsel %vm674, %v1119, %v1121
          %v1123 = vrot.slane %v1110, 6
          %v1124 = vsel %vm674, %v1120, %v1123
          %v1125 = vrot.slane %v1111, 6
          %v1126 = vsel %vm674, %v1121, %v1125
          %v1127 = vrot.slane %v1112, 6
          %v1128 = vsel %vm674, %v1123, %v1127
          %v1135 = vadd.f32 %v1063, %v1119
          %v1136 = vadd.f32 %v1064, %v1120
          %v1137 = vadd.f32 %v1065, %v1122
          %v1138 = vadd.f32 %v1066, %v1124
          %v1139 = vadd.f32 %v1067, %v1126
          %v1140 = vadd.f32 %v1068, %v1128
          %v1141 = vstv %s1105
          %v1142 = vmul.f32 %v1141, %v276
          %v1143 = vmul.f32 %v1141, %v277
          %v1144 = vmul.f32 %v1141, %v278
          %v1145 = vmul.f32 %v1141, %v279
          %v1146 = vmul.f32 %v1141, %v280
          %v1147 = vmul.f32 %v1141, %v281
          %v1154 = vrot.slane %v1142, 6
          %v1155 = vrot.slane %v1143, 6
          %v1156 = vrot.slane %v1144, 6
          %v1157 = vsel %vm674, %v1154, %v1156
          %v1158 = vrot.slane %v1145, 6
          %v1159 = vsel %vm674, %v1155, %v1158
          %v1160 = vrot.slane %v1146, 6
          %v1161 = vsel %vm674, %v1156, %v1160
          %v1162 = vrot.slane %v1147, 6
          %v1163 = vsel %vm674, %v1158, %v1162
          %v1170 = vadd.f32 %v1098, %v1154
          %v1171 = vadd.f32 %v1099, %v1155
          %v1172 = vadd.f32 %v1100, %v1157
          %v1173 = vadd.f32 %v1101, %v1159
          %v1174 = vadd.f32 %v1102, %v1161
          %v1175 = vadd.f32 %v1103, %v1163
          %s1176 = sld [smem:[#allocation8 + $0x2]]
          %s1177 = sld [smem:[#allocation8 + $0x33]]
          %v1178 = vstv %s1176
          %v1179 = vmul.f32 %v1178, %v266
          %v1180 = vmul.f32 %v1178, %v267
          %v1181 = vmul.f32 %v1178, %v268
          %v1182 = vmul.f32 %v1178, %v269
          %v1183 = vmul.f32 %v1178, %v270
          %v1184 = vmul.f32 %v1178, %v271
          %1191 = vrot.lane.b32.xlu0 %v1179, 126
          %v1192 = vpop.permute.xlu0 %1191
          %1193 = vrot.lane.b32.xlu0 %v1180, 126
          %v1194 = vpop.permute.xlu0 %1193
          %1195 = vrot.lane.b32.xlu0 %v1181, 126
          %v1196 = vpop.permute.xlu0 %1195
          %1197 = vrot.lane.b32.xlu0 %v1182, 126
          %v1198 = vpop.permute.xlu0 %1197
          %1199 = vrot.lane.b32.xlu0 %v1183, 126
          %v1200 = vpop.permute.xlu0 %1199
          %1201 = vrot.lane.b32.xlu0 %v1184, 126
          %v1202 = vpop.permute.xlu0 %1201
          %vm1203 = vcmask 1031168
          %v1204 = vsel %vm1203, %v1192, %v1194
          %v1205 = vsel %vm1203, %v1196, %v1198
          %v1206 = vsel %vm1203, %v1200, %v1202
          %v1213 = vadd.f32 %v691, %v1204
          %v1214 = vadd.f32 %v692, %v1194
          %v1215 = vadd.f32 %v693, %v1205
          %v1216 = vadd.f32 %v694, %v1198
          %v1217 = vadd.f32 %v695, %v1206
          %v1218 = vadd.f32 %v696, %v1202
          %v1219 = vstv %s1177
          %v1220 = vmul.f32 %v1219, %v274
          %v1221 = vmul.f32 %v1219, %v275
          %v1222 = vmul.f32 %v1219, %v276
          %v1223 = vmul.f32 %v1219, %v277
          %v1224 = vmul.f32 %v1219, %v278
          %v1225 = vmul.f32 %v1219, %v279
          %1232 = vrot.lane.b32.xlu0 %v1220, 126
          %v1233 = vpop.permute.xlu0 %1232
          %1234 = vrot.lane.b32.xlu0 %v1221, 126
          %v1235 = vpop.permute.xlu0 %1234
          %1236 = vrot.lane.b32.xlu0 %v1222, 126
          %v1237 = vpop.permute.xlu0 %1236
          %1238 = vrot.lane.b32.xlu0 %v1223, 126
          %v1239 = vpop.permute.xlu0 %1238
          %1240 = vrot.lane.b32.xlu0 %v1224, 126
          %v1241 = vpop.permute.xlu0 %1240
          %1242 = vrot.lane.b32.xlu0 %v1225, 126
          %v1243 = vpop.permute.xlu0 %1242
          %v1244 = vsel %vm1203, %v1233, %v1235
          %v1245 = vsel %vm1203, %v1237, %v1239
          %v1246 = vsel %vm1203, %v1241, %v1243
          %v1253 = vadd.f32 %v726, %v1244
          %v1254 = vadd.f32 %v727, %v1235
          %v1255 = vadd.f32 %v728, %v1245
          %v1256 = vadd.f32 %v729, %v1239
          %v1257 = vadd.f32 %v730, %v1246
          %v1258 = vadd.f32 %v731, %v1243
          %s1259 = sld [smem:[#allocation8 + $0x9]]
          %s1260 = sld [smem:[#allocation8 + $0x3a]]
          %v1261 = vstv %s1259
          %v1262 = vmul.f32 %v1261, %v266
          %v1263 = vmul.f32 %v1261, %v267
          %v1264 = vmul.f32 %v1261, %v268
          %v1265 = vmul.f32 %v1261, %v269
          %v1266 = vmul.f32 %v1261, %v270
          %v1267 = vmul.f32 %v1261, %v271
          %v1274 = vrot.slane %v1262, 1
          %v1275 = vrot.slane %v1264, 1
          %v1276 = vsel %vm325, %v1274, %v1275
          %v1277 = vrot.slane %v1263, 1
          %v1278 = vrot.slane %v1265, 1
          %v1279 = vsel %vm325, %v1277, %v1278
          %v1280 = vrot.slane %v1266, 1
          %v1281 = vsel %vm325, %v1275, %v1280
          %v1282 = vrot.slane %v1267, 1
          %v1283 = vsel %vm325, %v1278, %v1282
          %1284 = vrot.lane.b32.xlu0 %v1276, 126
          %v1285 = vpop.permute.xlu0 %1284
          %1286 = vrot.lane.b32.xlu0 %v1279, 126
          %v1287 = vpop.permute.xlu0 %1286
          %1288 = vrot.lane.b32.xlu0 %v1281, 126
          %v1289 = vpop.permute.xlu0 %1288
          %1290 = vrot.lane.b32.xlu0 %v1283, 126
          %v1291 = vpop.permute.xlu0 %1290
          %1292 = vrot.lane.b32.xlu0 %v1280, 126
          %v1293 = vpop.permute.xlu0 %1292
          %1294 = vrot.lane.b32.xlu0 %v1282, 126
          %v1295 = vpop.permute.xlu0 %1294
          %v1296 = vsel %vm1203, %v1285, %v1287
          %v1297 = vsel %vm1203, %v1289, %v1291
          %v1298 = vsel %vm1203, %v1293, %v1295
          %v1305 = vadd.f32 %v1213, %v1296
          %v1306 = vadd.f32 %v1214, %v1287
          %v1307 = vadd.f32 %v1215, %v1297
          %v1308 = vadd.f32 %v1216, %v1291
          %v1309 = vadd.f32 %v1217, %v1298
          %v1310 = vadd.f32 %v1218, %v1295
          %v1311 = vstv %s1260
          %v1312 = vmul.f32 %v1311, %v274
          %v1313 = vmul.f32 %v1311, %v275
          %v1314 = vmul.f32 %v1311, %v276
          %v1315 = vmul.f32 %v1311, %v277
          %v1316 = vmul.f32 %v1311, %v278
          %v1317 = vmul.f32 %v1311, %v279
          %v1324 = vrot.slane %v1312, 1
          %v1325 = vrot.slane %v1314, 1
          %v1326 = vsel %vm325, %v1324, %v1325
          %v1327 = vrot.slane %v1313, 1
          %v1328 = vrot.slane %v1315, 1
          %v1329 = vsel %vm325, %v1327, %v1328
          %v1330 = vrot.slane %v1316, 1
          %v1331 = vsel %vm325, %v1325, %v1330
          %v1332 = vrot.slane %v1317, 1
          %v1333 = vsel %vm325, %v1328, %v1332
          %1334 = vrot.lane.b32.xlu0 %v1326, 126
          %v1335 = vpop.permute.xlu0 %1334
          %1336 = vrot.lane.b32.xlu0 %v1329, 126
          %v1337 = vpop.permute.xlu0 %1336
          %1338 = vrot.lane.b32.xlu0 %v1331, 126
          %v1339 = vpop.permute.xlu0 %1338
          %1340 = vrot.lane.b32.xlu0 %v1333, 126
          %v1341 = vpop.permute.xlu0 %1340
          %1342 = vrot.lane.b32.xlu0 %v1330, 126
          %v1343 = vpop.permute.xlu0 %1342
          %1344 = vrot.lane.b32.xlu0 %v1332, 126
          %v1345 = vpop.permute.xlu0 %1344
          %v1346 = vsel %vm1203, %v1335, %v1337
          %v1347 = vsel %vm1203, %v1339, %v1341
          %v1348 = vsel %vm1203, %v1343, %v1345
          %v1355 = vadd.f32 %v1253, %v1346
          %v1356 = vadd.f32 %v1254, %v1337
          %v1357 = vadd.f32 %v1255, %v1347
          %v1358 = vadd.f32 %v1256, %v1341
          %v1359 = vadd.f32 %v1257, %v1348
          %v1360 = vadd.f32 %v1258, %v1345
          %s1361 = sld [smem:[#allocation8 + $0x10]]
          %s1362 = sld [smem:[#allocation8 + $0x41]]
          %v1363 = vstv %s1361
          %v1364 = vmul.f32 %v1363, %v266
          %v1365 = vmul.f32 %v1363, %v267
          %v1366 = vmul.f32 %v1363, %v268
          %v1367 = vmul.f32 %v1363, %v269
          %v1368 = vmul.f32 %v1363, %v270
          %v1369 = vmul.f32 %v1363, %v271
          %v1376 = vrot.slane %v1364, 2
          %v1377 = vrot.slane %v1366, 2
          %v1378 = vsel %vm398, %v1376, %v1377
          %v1379 = vrot.slane %v1365, 2
          %v1380 = vrot.slane %v1367, 2
          %v1381 = vsel %vm398, %v1379, %v1380
          %v1382 = vrot.slane %v1368, 2
          %v1383 = vsel %vm398, %v1377, %v1382
          %v1384 = vrot.slane %v1369, 2
          %v1385 = vsel %vm398, %v1380, %v1384
          %1386 = vrot.lane.b32.xlu0 %v1378, 126
          %v1387 = vpop.permute.xlu0 %1386
          %1388 = vrot.lane.b32.xlu0 %v1381, 126
          %v1389 = vpop.permute.xlu0 %1388
          %1390 = vrot.lane.b32.xlu0 %v1383, 126
          %v1391 = vpop.permute.xlu0 %1390
          %1392 = vrot.lane.b32.xlu0 %v1385, 126
          %v1393 = vpop.permute.xlu0 %1392
          %1394 = vrot.lane.b32.xlu0 %v1382, 126
          %v1395 = vpop.permute.xlu0 %1394
          %1396 = vrot.lane.b32.xlu0 %v1384, 126
          %v1397 = vpop.permute.xlu0 %1396
          %v1398 = vsel %vm1203, %v1387, %v1389
          %v1399 = vsel %vm1203, %v1391, %v1393
          %v1400 = vsel %vm1203, %v1395, %v1397
          %v1407 = vadd.f32 %v1305, %v1398
          %v1408 = vadd.f32 %v1306, %v1389
          %v1409 = vadd.f32 %v1307, %v1399
          %v1410 = vadd.f32 %v1308, %v1393
          %v1411 = vadd.f32 %v1309, %v1400
          %v1412 = vadd.f32 %v1310, %v1397
          %v1413 = vstv %s1362
          %v1414 = vmul.f32 %v1413, %v274
          %v1415 = vmul.f32 %v1413, %v275
          %v1416 = vmul.f32 %v1413, %v276
          %v1417 = vmul.f32 %v1413, %v277
          %v1418 = vmul.f32 %v1413, %v278
          %v1419 = vmul.f32 %v1413, %v279
          %v1426 = vrot.slane %v1414, 2
          %v1427 = vrot.slane %v1416, 2
          %v1428 = vsel %vm398, %v1426, %v1427
          %v1429 = vrot.slane %v1415, 2
          %v1430 = vrot.slane %v1417, 2
          %v1431 = vsel %vm398, %v1429, %v1430
          %v1432 = vrot.slane %v1418, 2
          %v1433 = vsel %vm398, %v1427, %v1432
          %v1434 = vrot.slane %v1419, 2
          %v1435 = vsel %vm398, %v1430, %v1434
          %1436 = vrot.lane.b32.xlu0 %v1428, 126
          %v1437 = vpop.permute.xlu0 %1436
          %1438 = vrot.lane.b32.xlu0 %v1431, 126
          %v1439 = vpop.permute.xlu0 %1438
          %1440 = vrot.lane.b32.xlu0 %v1433, 126
          %v1441 = vpop.permute.xlu0 %1440
          %1442 = vrot.lane.b32.xlu0 %v1435, 126
          %v1443 = vpop.permute.xlu0 %1442
          %1444 = vrot.lane.b32.xlu0 %v1432, 126
          %v1445 = vpop.permute.xlu0 %1444
          %1446 = vrot.lane.b32.xlu0 %v1434, 126
          %v1447 = vpop.permute.xlu0 %1446
          %v1448 = vsel %vm1203, %v1437, %v1439
          %v1449 = vsel %vm1203, %v1441, %v1443
          %v1450 = vsel %vm1203, %v1445, %v1447
          %v1457 = vadd.f32 %v1355, %v1448
          %v1458 = vadd.f32 %v1356, %v1439
          %v1459 = vadd.f32 %v1357, %v1449
          %v1460 = vadd.f32 %v1358, %v1443
          %v1461 = vadd.f32 %v1359, %v1450
          %v1462 = vadd.f32 %v1360, %v1447
          %s1463 = sld [smem:[#allocation8 + $0x17]]
          %s1464 = sld [smem:[#allocation8 + $0x48]]
          %v1465 = vstv %s1463
          %v1466 = vmul.f32 %v1465, %v268
          %v1467 = vmul.f32 %v1465, %v269
          %v1468 = vmul.f32 %v1465, %v270
          %v1469 = vmul.f32 %v1465, %v271
          %v1474 = vrot.slane %v1466, 3
          %v1475 = vrot.slane %v1467, 3
          %v1476 = vrot.slane %v1468, 3
          %v1477 = vsel %vm467, %v1474, %v1476
          %v1478 = vrot.slane %v1469, 3
          %v1479 = vsel %vm467, %v1475, %v1478
          %1480 = vrot.lane.b32.xlu0 %v1474, 126
          %v1481 = vpop.permute.xlu0 %1480
          %1482 = vrot.lane.b32.xlu0 %v1475, 126
          %v1483 = vpop.permute.xlu0 %1482
          %1484 = vrot.lane.b32.xlu0 %v1477, 126
          %v1485 = vpop.permute.xlu0 %1484
          %1486 = vrot.lane.b32.xlu0 %v1479, 126
          %v1487 = vpop.permute.xlu0 %1486
          %1488 = vrot.lane.b32.xlu0 %v1476, 126
          %v1489 = vpop.permute.xlu0 %1488
          %1490 = vrot.lane.b32.xlu0 %v1478, 126
          %v1491 = vpop.permute.xlu0 %1490
          %v1492 = vsel %vm1203, %v1481, %v1483
          %v1493 = vsel %vm1203, %v1485, %v1487
          %v1494 = vsel %vm1203, %v1489, %v1491
          %v1501 = vadd.f32 %v1407, %v1492
          %v1502 = vadd.f32 %v1408, %v1483
          %v1503 = vadd.f32 %v1409, %v1493
          %v1504 = vadd.f32 %v1410, %v1487
          %v1505 = vadd.f32 %v1411, %v1494
          %v1506 = vadd.f32 %v1412, %v1491
          %v1507 = vstv %s1464
          %v1508 = vmul.f32 %v1507, %v276
          %v1509 = vmul.f32 %v1507, %v277
          %v1510 = vmul.f32 %v1507, %v278
          %v1511 = vmul.f32 %v1507, %v279
          %v1516 = vrot.slane %v1508, 3
          %v1517 = vrot.slane %v1509, 3
          %v1518 = vrot.slane %v1510, 3
          %v1519 = vsel %vm467, %v1516, %v1518
          %v1520 = vrot.slane %v1511, 3
          %v1521 = vsel %vm467, %v1517, %v1520
          %1522 = vrot.lane.b32.xlu0 %v1516, 126
          %v1523 = vpop.permute.xlu0 %1522
          %1524 = vrot.lane.b32.xlu0 %v1517, 126
          %v1525 = vpop.permute.xlu0 %1524
          %1526 = vrot.lane.b32.xlu0 %v1519, 126
          %v1527 = vpop.permute.xlu0 %1526
          %1528 = vrot.lane.b32.xlu0 %v1521, 126
          %v1529 = vpop.permute.xlu0 %1528
          %1530 = vrot.lane.b32.xlu0 %v1518, 126
          %v1531 = vpop.permute.xlu0 %1530
          %1532 = vrot.lane.b32.xlu0 %v1520, 126
          %v1533 = vpop.permute.xlu0 %1532
          %v1534 = vsel %vm1203, %v1523, %v1525
          %v1535 = vsel %vm1203, %v1527, %v1529
          %v1536 = vsel %vm1203, %v1531, %v1533
          %v1543 = vadd.f32 %v1457, %v1534
          %v1544 = vadd.f32 %v1458, %v1525
          %v1545 = vadd.f32 %v1459, %v1535
          %v1546 = vadd.f32 %v1460, %v1529
          %v1547 = vadd.f32 %v1461, %v1536
          %v1548 = vadd.f32 %v1462, %v1533
          %s1549 = sld [smem:[#allocation8 + $0x1e]]
          %s1550 = sld [smem:[#allocation8 + $0x4f]]
          %v1551 = vstv %s1549
          %v1552 = vmul.f32 %v1551, %v268
          %v1553 = vmul.f32 %v1551, %v269
          %v1554 = vmul.f32 %v1551, %v270
          %v1555 = vmul.f32 %v1551, %v271
          %v1556 = vmul.f32 %v1551, %v272
          %v1557 = vmul.f32 %v1551, %v273
          %v1564 = vrot.slane %v1552, 4
          %v1565 = vrot.slane %v1553, 4
          %v1566 = vrot.slane %v1554, 4
          %v1567 = vsel %vm528, %v1564, %v1566
          %v1568 = vrot.slane %v1555, 4
          %v1569 = vsel %vm528, %v1565, %v1568
          %v1570 = vrot.slane %v1556, 4
          %v1571 = vsel %vm528, %v1566, %v1570
          %v1572 = vrot.slane %v1557, 4
          %v1573 = vsel %vm528, %v1568, %v1572
          %1574 = vrot.lane.b32.xlu0 %v1564, 126
          %v1575 = vpop.permute.xlu0 %1574
          %1576 = vrot.lane.b32.xlu0 %v1565, 126
          %v1577 = vpop.permute.xlu0 %1576
          %1578 = vrot.lane.b32.xlu0 %v1567, 126
          %v1579 = vpop.permute.xlu0 %1578
          %1580 = vrot.lane.b32.xlu0 %v1569, 126
          %v1581 = vpop.permute.xlu0 %1580
          %1582 = vrot.lane.b32.xlu0 %v1571, 126
          %v1583 = vpop.permute.xlu0 %1582
          %1584 = vrot.lane.b32.xlu0 %v1573, 126
          %v1585 = vpop.permute.xlu0 %1584
          %v1586 = vsel %vm1203, %v1575, %v1577
          %v1587 = vsel %vm1203, %v1579, %v1581
          %v1588 = vsel %vm1203, %v1583, %v1585
          %v1595 = vadd.f32 %v1501, %v1586
          %v1596 = vadd.f32 %v1502, %v1577
          %v1597 = vadd.f32 %v1503, %v1587
          %v1598 = vadd.f32 %v1504, %v1581
          %v1599 = vadd.f32 %v1505, %v1588
          %v1600 = vadd.f32 %v1506, %v1585
          %v1601 = vstv %s1550
          %v1602 = vmul.f32 %v1601, %v276
          %v1603 = vmul.f32 %v1601, %v277
          %v1604 = vmul.f32 %v1601, %v278
          %v1605 = vmul.f32 %v1601, %v279
          %v1606 = vmul.f32 %v1601, %v280
          %v1607 = vmul.f32 %v1601, %v281
          %v1614 = vrot.slane %v1602, 4
          %v1615 = vrot.slane %v1603, 4
          %v1616 = vrot.slane %v1604, 4
          %v1617 = vsel %vm528, %v1614, %v1616
          %v1618 = vrot.slane %v1605, 4
          %v1619 = vsel %vm528, %v1615, %v1618
          %v1620 = vrot.slane %v1606, 4
          %v1621 = vsel %vm528, %v1616, %v1620
          %v1622 = vrot.slane %v1607, 4
          %v1623 = vsel %vm528, %v1618, %v1622
          %1624 = vrot.lane.b32.xlu0 %v1614, 126
          %v1625 = vpop.permute.xlu0 %1624
          %1626 = vrot.lane.b32.xlu0 %v1615, 126
          %v1627 = vpop.permute.xlu0 %1626
          %1628 = vrot.lane.b32.xlu0 %v1617, 126
          %v1629 = vpop.permute.xlu0 %1628
          %1630 = vrot.lane.b32.xlu0 %v1619, 126
          %v1631 = vpop.permute.xlu0 %1630
          %1632 = vrot.lane.b32.xlu0 %v1621, 126
          %v1633 = vpop.permute.xlu0 %1632
          %1634 = vrot.lane.b32.xlu0 %v1623, 126
          %v1635 = vpop.permute.xlu0 %1634
          %v1636 = vsel %vm1203, %v1625, %v1627
          %v1637 = vsel %vm1203, %v1629, %v1631
          %v1638 = vsel %vm1203, %v1633, %v1635
          %v1645 = vadd.f32 %v1543, %v1636
          %v1646 = vadd.f32 %v1544, %v1627
          %v1647 = vadd.f32 %v1545, %v1637
          %v1648 = vadd.f32 %v1546, %v1631
          %v1649 = vadd.f32 %v1547, %v1638
          %v1650 = vadd.f32 %v1548, %v1635
          %s1651 = sld [smem:[#allocation8 + $0x25]]
          %s1652 = sld [smem:[#allocation8 + $0x56]]
          %v1653 = vstv %s1651
          %v1654 = vmul.f32 %v1653, %v268
          %v1655 = vmul.f32 %v1653, %v269
          %v1656 = vmul.f32 %v1653, %v270
          %v1657 = vmul.f32 %v1653, %v271
          %v1658 = vmul.f32 %v1653, %v272
          %v1659 = vmul.f32 %v1653, %v273
          %v1666 = vrot.slane %v1654, 5
          %v1667 = vrot.slane %v1655, 5
          %v1668 = vrot.slane %v1656, 5
          %v1669 = vsel %vm601, %v1666, %v1668
          %v1670 = vrot.slane %v1657, 5
          %v1671 = vsel %vm601, %v1667, %v1670
          %v1672 = vrot.slane %v1658, 5
          %v1673 = vsel %vm601, %v1668, %v1672
          %v1674 = vrot.slane %v1659, 5
          %v1675 = vsel %vm601, %v1670, %v1674
          %1676 = vrot.lane.b32.xlu0 %v1666, 126
          %v1677 = vpop.permute.xlu0 %1676
          %1678 = vrot.lane.b32.xlu0 %v1667, 126
          %v1679 = vpop.permute.xlu0 %1678
          %1680 = vrot.lane.b32.xlu0 %v1669, 126
          %v1681 = vpop.permute.xlu0 %1680
          %1682 = vrot.lane.b32.xlu0 %v1671, 126
          %v1683 = vpop.permute.xlu0 %1682
          %1684 = vrot.lane.b32.xlu0 %v1673, 126
          %v1685 = vpop.permute.xlu0 %1684
          %1686 = vrot.lane.b32.xlu0 %v1675, 126
          %v1687 = vpop.permute.xlu0 %1686
          %v1688 = vsel %vm1203, %v1677, %v1679
          %v1689 = vsel %vm1203, %v1681, %v1683
          %v1690 = vsel %vm1203, %v1685, %v1687
          %v1697 = vadd.f32 %v1595, %v1688
          %v1698 = vadd.f32 %v1596, %v1679
          %v1699 = vadd.f32 %v1597, %v1689
          %v1700 = vadd.f32 %v1598, %v1683
          %v1701 = vadd.f32 %v1599, %v1690
          %v1702 = vadd.f32 %v1600, %v1687
          %v1703 = vstv %s1652
          %v1704 = vmul.f32 %v1703, %v276
          %v1705 = vmul.f32 %v1703, %v277
          %v1706 = vmul.f32 %v1703, %v278
          %v1707 = vmul.f32 %v1703, %v279
          %v1708 = vmul.f32 %v1703, %v280
          %v1709 = vmul.f32 %v1703, %v281
          %v1716 = vrot.slane %v1704, 5
          %v1717 = vrot.slane %v1705, 5
          %v1718 = vrot.slane %v1706, 5
          %v1719 = vsel %vm601, %v1716, %v1718
          %v1720 = vrot.slane %v1707, 5
          %v1721 = vsel %vm601, %v1717, %v1720
          %v1722 = vrot.slane %v1708, 5
          %v1723 = vsel %vm601, %v1718, %v1722
          %v1724 = vrot.slane %v1709, 5
          %v1725 = vsel %vm601, %v1720, %v1724
          %1726 = vrot.lane.b32.xlu0 %v1716, 126
          %v1727 = vpop.permute.xlu0 %1726
          %1728 = vrot.lane.b32.xlu0 %v1717, 126
          %v1729 = vpop.permute.xlu0 %1728
          %1730 = vrot.lane.b32.xlu0 %v1719, 126
          %v1731 = vpop.permute.xlu0 %1730
          %1732 = vrot.lane.b32.xlu0 %v1721, 126
          %v1733 = vpop.permute.xlu0 %1732
          %1734 = vrot.lane.b32.xlu0 %v1723, 126
          %v1735 = vpop.permute.xlu0 %1734
          %1736 = vrot.lane.b32.xlu0 %v1725, 126
          %v1737 = vpop.permute.xlu0 %1736
          %v1738 = vsel %vm1203, %v1727, %v1729
          %v1739 = vsel %vm1203, %v1731, %v1733
          %v1740 = vsel %vm1203, %v1735, %v1737
          %v1747 = vadd.f32 %v1645, %v1738
          %v1748 = vadd.f32 %v1646, %v1729
          %v1749 = vadd.f32 %v1647, %v1739
          %v1750 = vadd.f32 %v1648, %v1733
          %v1751 = vadd.f32 %v1649, %v1740
          %v1752 = vadd.f32 %v1650, %v1737
          %s1753 = sld [smem:[#allocation8 + $0x2c]]
          %s1754 = sld [smem:[#allocation8 + $0x5d]]
          %v1755 = vstv %s1753
          %v1756 = vmul.f32 %v1755, %v268
          %v1757 = vmul.f32 %v1755, %v269
          %v1758 = vmul.f32 %v1755, %v270
          %v1759 = vmul.f32 %v1755, %v271
          %v1760 = vmul.f32 %v1755, %v272
          %v1761 = vmul.f32 %v1755, %v273
          %v1768 = vrot.slane %v1756, 6
          %v1769 = vrot.slane %v1757, 6
          %v1770 = vrot.slane %v1758, 6
          %v1771 = vsel %vm674, %v1768, %v1770
          %v1772 = vrot.slane %v1759, 6
          %v1773 = vsel %vm674, %v1769, %v1772
          %v1774 = vrot.slane %v1760, 6
          %v1775 = vsel %vm674, %v1770, %v1774
          %v1776 = vrot.slane %v1761, 6
          %v1777 = vsel %vm674, %v1772, %v1776
          %1778 = vrot.lane.b32.xlu0 %v1768, 126
          %v1779 = vpop.permute.xlu0 %1778
          %1780 = vrot.lane.b32.xlu0 %v1769, 126
          %v1781 = vpop.permute.xlu0 %1780
          %1782 = vrot.lane.b32.xlu0 %v1771, 126
          %v1783 = vpop.permute.xlu0 %1782
          %1784 = vrot.lane.b32.xlu0 %v1773, 126
          %v1785 = vpop.permute.xlu0 %1784
          %1786 = vrot.lane.b32.xlu0 %v1775, 126
          %v1787 = vpop.permute.xlu0 %1786
          %1788 = vrot.lane.b32.xlu0 %v1777, 126
          %v1789 = vpop.permute.xlu0 %1788
          %v1790 = vsel %vm1203, %v1779, %v1781
          %v1791 = vsel %vm1203, %v1783, %v1785
          %v1792 = vsel %vm1203, %v1787, %v1789
          %v1799 = vadd.f32 %v1697, %v1790
          %v1800 = vadd.f32 %v1698, %v1781
          %v1801 = vadd.f32 %v1699, %v1791
          %v1802 = vadd.f32 %v1700, %v1785
          %v1803 = vadd.f32 %v1701, %v1792
          %v1804 = vadd.f32 %v1702, %v1789
          %v1805 = vstv %s1754
          %v1806 = vmul.f32 %v1805, %v276
          %v1807 = vmul.f32 %v1805, %v277
          %v1808 = vmul.f32 %v1805, %v278
          %v1809 = vmul.f32 %v1805, %v279
          %v1810 = vmul.f32 %v1805, %v280
          %v1811 = vmul.f32 %v1805, %v281
          %v1818 = vrot.slane %v1806, 6
          %v1819 = vrot.slane %v1807, 6
          %v1820 = vrot.slane %v1808, 6
          %v1821 = vsel %vm674, %v1818, %v1820
          %v1822 = vrot.slane %v1809, 6
          %v1823 = vsel %vm674, %v1819, %v1822
          %v1824 = vrot.slane %v1810, 6
          %v1825 = vsel %vm674, %v1820, %v1824
          %v1826 = vrot.slane %v1811, 6
          %v1827 = vsel %vm674, %v1822, %v1826
          %1828 = vrot.lane.b32.xlu0 %v1818, 126
          %v1829 = vpop.permute.xlu0 %1828
          %1830 = vrot.lane.b32.xlu0 %v1819, 126
          %v1831 = vpop.permute.xlu0 %1830
          %1832 = vrot.lane.b32.xlu0 %v1821, 126
          %v1833 = vpop.permute.xlu0 %1832
          %1834 = vrot.lane.b32.xlu0 %v1823, 126
          %v1835 = vpop.permute.xlu0 %1834
          %1836 = vrot.lane.b32.xlu0 %v1825, 126
          %v1837 = vpop.permute.xlu0 %1836
          %1838 = vrot.lane.b32.xlu0 %v1827, 126
          %v1839 = vpop.permute.xlu0 %1838
          %v1840 = vsel %vm1203, %v1829, %v1831
          %v1841 = vsel %vm1203, %v1833, %v1835
          %v1842 = vsel %vm1203, %v1837, %v1839
          %v1849 = vadd.f32 %v1747, %v1840
          %v1850 = vadd.f32 %v1748, %v1831
          %v1851 = vadd.f32 %v1749, %v1841
          %v1852 = vadd.f32 %v1750, %v1835
          %v1853 = vadd.f32 %v1751, %v1842
          %v1854 = vadd.f32 %v1752, %v1839
          %s1855 = sld [smem:[#allocation8 + $0x3]]
          %s1856 = sld [smem:[#allocation8 + $0x34]]
          %v1857 = vstv %s1855
          %v1858 = vmul.f32 %v1857, %v267
          %v1859 = vmul.f32 %v1857, %v269
          %v1860 = vmul.f32 %v1857, %v271
          %1864 = vrot.lane.b32.xlu0 %v1858, 126
          %v1865 = vpop.permute.xlu0 %1864
          %1866 = vrot.lane.b32.xlu0 %v1859, 126
          %v1867 = vpop.permute.xlu0 %1866
          %1868 = vrot.lane.b32.xlu0 %v1860, 126
          %v1869 = vpop.permute.xlu0 %1868
          %v1873 = vadd.f32 %v1135, %v1865
          %v1874 = vadd.f32 %v1136, %v1865
          %v1875 = vadd.f32 %v1137, %v1867
          %v1876 = vadd.f32 %v1138, %v1867
          %v1877 = vadd.f32 %v1139, %v1869
          %v1878 = vadd.f32 %v1140, %v1869
          %v1879 = vstv %s1856
          %v1880 = vmul.f32 %v1879, %v275
          %v1881 = vmul.f32 %v1879, %v277
          %v1882 = vmul.f32 %v1879, %v279
          %1886 = vrot.lane.b32.xlu0 %v1880, 126
          %v1887 = vpop.permute.xlu0 %1886
          %1888 = vrot.lane.b32.xlu0 %v1881, 126
          %v1889 = vpop.permute.xlu0 %1888
          %1890 = vrot.lane.b32.xlu0 %v1882, 126
          %v1891 = vpop.permute.xlu0 %1890
          %v1895 = vadd.f32 %v1170, %v1887
          %v1896 = vadd.f32 %v1171, %v1887
          %v1897 = vadd.f32 %v1172, %v1889
          %v1898 = vadd.f32 %v1173, %v1889
          %v1899 = vadd.f32 %v1174, %v1891
          %v1900 = vadd.f32 %v1175, %v1891
          %s1901 = sld [smem:[#allocation8 + $0xa]]
          %s1902 = sld [smem:[#allocation8 + $0x3b]]
          %v1903 = vstv %s1901
          %v1904 = vmul.f32 %v1903, %v267
          %v1905 = vmul.f32 %v1903, %v269
          %v1906 = vmul.f32 %v1903, %v271
          %v1910 = vrot.slane %v1904, 1
          %v1911 = vrot.slane %v1905, 1
          %v1912 = vsel %vm325, %v1910, %v1911
          %v1913 = vrot.slane %v1906, 1
          %v1914 = vsel %vm325, %v1911, %v1913
          %1915 = vrot.lane.b32.xlu0 %v1912, 126
          %v1916 = vpop.permute.xlu0 %1915
          %1917 = vrot.lane.b32.xlu0 %v1914, 126
          %v1918 = vpop.permute.xlu0 %1917
          %1919 = vrot.lane.b32.xlu0 %v1913, 126
          %v1920 = vpop.permute.xlu0 %1919
          %v1924 = vadd.f32 %v1873, %v1916
          %v1925 = vadd.f32 %v1874, %v1916
          %v1926 = vadd.f32 %v1875, %v1918
          %v1927 = vadd.f32 %v1876, %v1918
          %v1928 = vadd.f32 %v1877, %v1920
          %v1929 = vadd.f32 %v1878, %v1920
          %v1930 = vstv %s1902
          %v1931 = vmul.f32 %v1930, %v275
          %v1932 = vmul.f32 %v1930, %v277
          %v1933 = vmul.f32 %v1930, %v279
          %v1937 = vrot.slane %v1931, 1
          %v1938 = vrot.slane %v1932, 1
          %v1939 = vsel %vm325, %v1937, %v1938
          %v1940 = vrot.slane %v1933, 1
          %v1941 = vsel %vm325, %v1938, %v1940
          %1942 = vrot.lane.b32.xlu0 %v1939, 126
          %v1943 = vpop.permute.xlu0 %1942
          %1944 = vrot.lane.b32.xlu0 %v1941, 126
          %v1945 = vpop.permute.xlu0 %1944
          %1946 = vrot.lane.b32.xlu0 %v1940, 126
          %v1947 = vpop.permute.xlu0 %1946
          %v1951 = vadd.f32 %v1895, %v1943
          %v1952 = vadd.f32 %v1896, %v1943
          %v1953 = vadd.f32 %v1897, %v1945
          %v1954 = vadd.f32 %v1898, %v1945
          %v1955 = vadd.f32 %v1899, %v1947
          %v1956 = vadd.f32 %v1900, %v1947
          %s1957 = sld [smem:[#allocation8 + $0x11]]
          %s1958 = sld [smem:[#allocation8 + $0x42]]
          %v1959 = vstv %s1957
          %v1960 = vmul.f32 %v1959, %v267
          %v1961 = vmul.f32 %v1959, %v269
          %v1962 = vmul.f32 %v1959, %v271
          %v1966 = vrot.slane %v1960, 2
          %v1967 = vrot.slane %v1961, 2
          %v1968 = vsel %vm398, %v1966, %v1967
          %v1969 = vrot.slane %v1962, 2
          %v1970 = vsel %vm398, %v1967, %v1969
          %1971 = vrot.lane.b32.xlu0 %v1968, 126
          %v1972 = vpop.permute.xlu0 %1971
          %1973 = vrot.lane.b32.xlu0 %v1970, 126
          %v1974 = vpop.permute.xlu0 %1973
          %1975 = vrot.lane.b32.xlu0 %v1969, 126
          %v1976 = vpop.permute.xlu0 %1975
          %v1980 = vadd.f32 %v1924, %v1972
          %v1981 = vadd.f32 %v1925, %v1972
          %v1982 = vadd.f32 %v1926, %v1974
          %v1983 = vadd.f32 %v1927, %v1974
          %v1984 = vadd.f32 %v1928, %v1976
          %v1985 = vadd.f32 %v1929, %v1976
          %v1986 = vstv %s1958
          %v1987 = vmul.f32 %v1986, %v275
          %v1988 = vmul.f32 %v1986, %v277
          %v1989 = vmul.f32 %v1986, %v279
          %v1993 = vrot.slane %v1987, 2
          %v1994 = vrot.slane %v1988, 2
          %v1995 = vsel %vm398, %v1993, %v1994
          %v1996 = vrot.slane %v1989, 2
          %v1997 = vsel %vm398, %v1994, %v1996
          %1998 = vrot.lane.b32.xlu0 %v1995, 126
          %v1999 = vpop.permute.xlu0 %1998
          %2000 = vrot.lane.b32.xlu0 %v1997, 126
          %v2001 = vpop.permute.xlu0 %2000
          %2002 = vrot.lane.b32.xlu0 %v1996, 126
          %v2003 = vpop.permute.xlu0 %2002
          %v2007 = vadd.f32 %v1951, %v1999
          %v2008 = vadd.f32 %v1952, %v1999
          %v2009 = vadd.f32 %v1953, %v2001
          %v2010 = vadd.f32 %v1954, %v2001
          %v2011 = vadd.f32 %v1955, %v2003
          %v2012 = vadd.f32 %v1956, %v2003
          %s2013 = sld [smem:[#allocation8 + $0x18]]
          %s2014 = sld [smem:[#allocation8 + $0x49]]
          %v2015 = vstv %s2013
          %v2016 = vmul.f32 %v2015, %v269
          %v2017 = vmul.f32 %v2015, %v271
          %v2020 = vrot.slane %v2016, 3
          %v2021 = vrot.slane %v2017, 3
          %v2022 = vsel %vm467, %v2020, %v2021
          %2023 = vrot.lane.b32.xlu0 %v2020, 126
          %v2024 = vpop.permute.xlu0 %2023
          %2025 = vrot.lane.b32.xlu0 %v2022, 126
          %v2026 = vpop.permute.xlu0 %2025
          %2027 = vrot.lane.b32.xlu0 %v2021, 126
          %v2028 = vpop.permute.xlu0 %2027
          %v2032 = vadd.f32 %v1980, %v2024
          %v2033 = vadd.f32 %v1981, %v2024
          %v2034 = vadd.f32 %v1982, %v2026
          %v2035 = vadd.f32 %v1983, %v2026
          %v2036 = vadd.f32 %v1984, %v2028
          %v2037 = vadd.f32 %v1985, %v2028
          %v2038 = vstv %s2014
          %v2039 = vmul.f32 %v2038, %v277
          %v2040 = vmul.f32 %v2038, %v279
          %v2043 = vrot.slane %v2039, 3
          %v2044 = vrot.slane %v2040, 3
          %v2045 = vsel %vm467, %v2043, %v2044
          %2046 = vrot.lane.b32.xlu0 %v2043, 126
          %v2047 = vpop.permute.xlu0 %2046
          %2048 = vrot.lane.b32.xlu0 %v2045, 126
          %v2049 = vpop.permute.xlu0 %2048
          %2050 = vrot.lane.b32.xlu0 %v2044, 126
          %v2051 = vpop.permute.xlu0 %2050
          %v2055 = vadd.f32 %v2007, %v2047
          %v2056 = vadd.f32 %v2008, %v2047
          %v2057 = vadd.f32 %v2009, %v2049
          %v2058 = vadd.f32 %v2010, %v2049
          %v2059 = vadd.f32 %v2011, %v2051
          %v2060 = vadd.f32 %v2012, %v2051
          %s2061 = sld [smem:[#allocation8 + $0x1f]]
          %s2062 = sld [smem:[#allocation8 + $0x50]]
          %v2063 = vstv %s2061
          %v2064 = vmul.f32 %v2063, %v269
          %v2065 = vmul.f32 %v2063, %v271
          %v2066 = vmul.f32 %v2063, %v273
          %v2070 = vrot.slane %v2064, 4
          %v2071 = vrot.slane %v2065, 4
          %v2072 = vsel %vm528, %v2070, %v2071
          %v2073 = vrot.slane %v2066, 4
          %v2074 = vsel %vm528, %v2071, %v2073
          %2075 = vrot.lane.b32.xlu0 %v2070, 126
          %v2076 = vpop.permute.xlu0 %2075
          %2077 = vrot.lane.b32.xlu0 %v2072, 126
          %v2078 = vpop.permute.xlu0 %2077
          %2079 = vrot.lane.b32.xlu0 %v2074, 126
          %v2080 = vpop.permute.xlu0 %2079
          %v2084 = vadd.f32 %v2032, %v2076
          %v2085 = vadd.f32 %v2033, %v2076
          %v2086 = vadd.f32 %v2034, %v2078
          %v2087 = vadd.f32 %v2035, %v2078
          %v2088 = vadd.f32 %v2036, %v2080
          %v2089 = vadd.f32 %v2037, %v2080
          %v2090 = vstv %s2062
          %v2091 = vmul.f32 %v2090, %v277
          %v2092 = vmul.f32 %v2090, %v279
          %v2093 = vmul.f32 %v2090, %v281
          %v2097 = vrot.slane %v2091, 4
          %v2098 = vrot.slane %v2092, 4
          %v2099 = vsel %vm528, %v2097, %v2098
          %v2100 = vrot.slane %v2093, 4
          %v2101 = vsel %vm528, %v2098, %v2100
          %2102 = vrot.lane.b32.xlu0 %v2097, 126
          %v2103 = vpop.permute.xlu0 %2102
          %2104 = vrot.lane.b32.xlu0 %v2099, 126
          %v2105 = vpop.permute.xlu0 %2104
          %2106 = vrot.lane.b32.xlu0 %v2101, 126
          %v2107 = vpop.permute.xlu0 %2106
          %v2111 = vadd.f32 %v2055, %v2103
          %v2112 = vadd.f32 %v2056, %v2103
          %v2113 = vadd.f32 %v2057, %v2105
          %v2114 = vadd.f32 %v2058, %v2105
          %v2115 = vadd.f32 %v2059, %v2107
          %v2116 = vadd.f32 %v2060, %v2107
          %s2117 = sld [smem:[#allocation8 + $0x26]]
          %s2118 = sld [smem:[#allocation8 + $0x57]]
          %v2119 = vstv %s2117
          %v2120 = vmul.f32 %v2119, %v269
          %v2121 = vmul.f32 %v2119, %v271
          %v2122 = vmul.f32 %v2119, %v273
          %v2126 = vrot.slane %v2120, 5
          %v2127 = vrot.slane %v2121, 5
          %v2128 = vsel %vm601, %v2126, %v2127
          %v2129 = vrot.slane %v2122, 5
          %v2130 = vsel %vm601, %v2127, %v2129
          %2131 = vrot.lane.b32.xlu0 %v2126, 126
          %v2132 = vpop.permute.xlu0 %2131
          %2133 = vrot.lane.b32.xlu0 %v2128, 126
          %v2134 = vpop.permute.xlu0 %2133
          %2135 = vrot.lane.b32.xlu0 %v2130, 126
          %v2136 = vpop.permute.xlu0 %2135
          %v2140 = vadd.f32 %v2084, %v2132
          %v2141 = vadd.f32 %v2085, %v2132
          %v2142 = vadd.f32 %v2086, %v2134
          %v2143 = vadd.f32 %v2087, %v2134
          %v2144 = vadd.f32 %v2088, %v2136
          %v2145 = vadd.f32 %v2089, %v2136
          %v2146 = vstv %s2118
          %v2147 = vmul.f32 %v2146, %v277
          %v2148 = vmul.f32 %v2146, %v279
          %v2149 = vmul.f32 %v2146, %v281
          %v2153 = vrot.slane %v2147, 5
          %v2154 = vrot.slane %v2148, 5
          %v2155 = vsel %vm601, %v2153, %v2154
          %v2156 = vrot.slane %v2149, 5
          %v2157 = vsel %vm601, %v2154, %v2156
          %2158 = vrot.lane.b32.xlu0 %v2153, 126
          %v2159 = vpop.permute.xlu0 %2158
          %2160 = vrot.lane.b32.xlu0 %v2155, 126
          %v2161 = vpop.permute.xlu0 %2160
          %2162 = vrot.lane.b32.xlu0 %v2157, 126
          %v2163 = vpop.permute.xlu0 %2162
          %v2167 = vadd.f32 %v2111, %v2159
          %v2168 = vadd.f32 %v2112, %v2159
          %v2169 = vadd.f32 %v2113, %v2161
          %v2170 = vadd.f32 %v2114, %v2161
          %v2171 = vadd.f32 %v2115, %v2163
          %v2172 = vadd.f32 %v2116, %v2163
          %s2173 = sld [smem:[#allocation8 + $0x2d]]
          %s2174 = sld [smem:[#allocation8 + $0x5e]]
          %v2175 = vstv %s2173
          %v2176 = vmul.f32 %v2175, %v269
          %v2177 = vmul.f32 %v2175, %v271
          %v2178 = vmul.f32 %v2175, %v273
          %v2182 = vrot.slane %v2176, 6
          %v2183 = vrot.slane %v2177, 6
          %v2184 = vsel %vm674, %v2182, %v2183
          %v2185 = vrot.slane %v2178, 6
          %v2186 = vsel %vm674, %v2183, %v2185
          %2187 = vrot.lane.b32.xlu0 %v2182, 126
          %v2188 = vpop.permute.xlu0 %2187
          %2189 = vrot.lane.b32.xlu0 %v2184, 126
          %v2190 = vpop.permute.xlu0 %2189
          %2191 = vrot.lane.b32.xlu0 %v2186, 126
          %v2192 = vpop.permute.xlu0 %2191
          %v2196 = vadd.f32 %v2140, %v2188
          %v2197 = vadd.f32 %v2141, %v2188
          %v2198 = vadd.f32 %v2142, %v2190
          %v2199 = vadd.f32 %v2143, %v2190
          %v2200 = vadd.f32 %v2144, %v2192
          %v2201 = vadd.f32 %v2145, %v2192
          %v2202 = vstv %s2174
          %v2203 = vmul.f32 %v2202, %v277
          %v2204 = vmul.f32 %v2202, %v279
          %v2205 = vmul.f32 %v2202, %v281
          %v2209 = vrot.slane %v2203, 6
          %v2210 = vrot.slane %v2204, 6
          %v2211 = vsel %vm674, %v2209, %v2210
          %v2212 = vrot.slane %v2205, 6
          %v2213 = vsel %vm674, %v2210, %v2212
          %2214 = vrot.lane.b32.xlu0 %v2209, 126
          %v2215 = vpop.permute.xlu0 %2214
          %2216 = vrot.lane.b32.xlu0 %v2211, 126
          %v2217 = vpop.permute.xlu0 %2216
          %2218 = vrot.lane.b32.xlu0 %v2213, 126
          %v2219 = vpop.permute.xlu0 %2218
          %v2223 = vadd.f32 %v2167, %v2215
          %v2224 = vadd.f32 %v2168, %v2215
          %v2225 = vadd.f32 %v2169, %v2217
          %v2226 = vadd.f32 %v2170, %v2217
          %v2227 = vadd.f32 %v2171, %v2219
          %v2228 = vadd.f32 %v2172, %v2219
          %s2229 = sld [smem:[#allocation8 + $0x4]]
          %s2230 = sld [smem:[#allocation8 + $0x35]]
          %v2231 = vstv %s2229
          %v2232 = vmul.f32 %v2231, %v267
          %v2233 = vmul.f32 %v2231, %v269
          %v2234 = vmul.f32 %v2231, %v271
          %2238 = vrot.lane.b32.xlu0 %v2232, 124
          %v2239 = vpop.permute.xlu0 %2238
          %2240 = vrot.lane.b32.xlu0 %v2233, 124
          %v2241 = vpop.permute.xlu0 %2240
          %2242 = vrot.lane.b32.xlu0 %v2234, 124
          %v2243 = vpop.permute.xlu0 %2242
          %v2247 = vadd.f32 %v1799, %v2239
          %v2248 = vadd.f32 %v1800, %v2239
          %v2249 = vadd.f32 %v1801, %v2241
          %v2250 = vadd.f32 %v1802, %v2241
          %v2251 = vadd.f32 %v1803, %v2243
          %v2252 = vadd.f32 %v1804, %v2243
          %v2253 = vstv %s2230
          %v2254 = vmul.f32 %v2253, %v275
          %v2255 = vmul.f32 %v2253, %v277
          %v2256 = vmul.f32 %v2253, %v279
          %2260 = vrot.lane.b32.xlu0 %v2254, 124
          %v2261 = vpop.permute.xlu0 %2260
          %2262 = vrot.lane.b32.xlu0 %v2255, 124
          %v2263 = vpop.permute.xlu0 %2262
          %2264 = vrot.lane.b32.xlu0 %v2256, 124
          %v2265 = vpop.permute.xlu0 %2264
          %v2269 = vadd.f32 %v1849, %v2261
          %v2270 = vadd.f32 %v1850, %v2261
          %v2271 = vadd.f32 %v1851, %v2263
          %v2272 = vadd.f32 %v1852, %v2263
          %v2273 = vadd.f32 %v1853, %v2265
          %v2274 = vadd.f32 %v1854, %v2265
          %s2275 = sld [smem:[#allocation8 + $0xb]]
          %s2276 = sld [smem:[#allocation8 + $0x3c]]
          %v2277 = vstv %s2275
          %v2278 = vmul.f32 %v2277, %v267
          %v2279 = vmul.f32 %v2277, %v269
          %v2280 = vmul.f32 %v2277, %v271
          %v2284 = vrot.slane %v2278, 1
          %v2285 = vrot.slane %v2279, 1
          %v2286 = vsel %vm325, %v2284, %v2285
          %v2287 = vrot.slane %v2280, 1
          %v2288 = vsel %vm325, %v2285, %v2287
          %2289 = vrot.lane.b32.xlu0 %v2286, 124
          %v2290 = vpop.permute.xlu0 %2289
          %2291 = vrot.lane.b32.xlu0 %v2288, 124
          %v2292 = vpop.permute.xlu0 %2291
          %2293 = vrot.lane.b32.xlu0 %v2287, 124
          %v2294 = vpop.permute.xlu0 %2293
          %v2298 = vadd.f32 %v2247, %v2290
          %v2299 = vadd.f32 %v2248, %v2290
          %v2300 = vadd.f32 %v2249, %v2292
          %v2301 = vadd.f32 %v2250, %v2292
          %v2302 = vadd.f32 %v2251, %v2294
          %v2303 = vadd.f32 %v2252, %v2294
          %v2304 = vstv %s2276
          %v2305 = vmul.f32 %v2304, %v275
          %v2306 = vmul.f32 %v2304, %v277
          %v2307 = vmul.f32 %v2304, %v279
          %v2311 = vrot.slane %v2305, 1
          %v2312 = vrot.slane %v2306, 1
          %v2313 = vsel %vm325, %v2311, %v2312
          %v2314 = vrot.slane %v2307, 1
          %v2315 = vsel %vm325, %v2312, %v2314
          %2316 = vrot.lane.b32.xlu0 %v2313, 124
          %v2317 = vpop.permute.xlu0 %2316
          %2318 = vrot.lane.b32.xlu0 %v2315, 124
          %v2319 = vpop.permute.xlu0 %2318
          %2320 = vrot.lane.b32.xlu0 %v2314, 124
          %v2321 = vpop.permute.xlu0 %2320
          %v2325 = vadd.f32 %v2269, %v2317
          %v2326 = vadd.f32 %v2270, %v2317
          %v2327 = vadd.f32 %v2271, %v2319
          %v2328 = vadd.f32 %v2272, %v2319
          %v2329 = vadd.f32 %v2273, %v2321
          %v2330 = vadd.f32 %v2274, %v2321
          %s2331 = sld [smem:[#allocation8 + $0x12]]
          %s2332 = sld [smem:[#allocation8 + $0x43]]
          %v2333 = vstv %s2331
          %v2334 = vmul.f32 %v2333, %v267
          %v2335 = vmul.f32 %v2333, %v269
          %v2336 = vmul.f32 %v2333, %v271
          %v2340 = vrot.slane %v2334, 2
          %v2341 = vrot.slane %v2335, 2
          %v2342 = vsel %vm398, %v2340, %v2341
          %v2343 = vrot.slane %v2336, 2
          %v2344 = vsel %vm398, %v2341, %v2343
          %2345 = vrot.lane.b32.xlu0 %v2342, 124
          %v2346 = vpop.permute.xlu0 %2345
          %2347 = vrot.lane.b32.xlu0 %v2344, 124
          %v2348 = vpop.permute.xlu0 %2347
          %2349 = vrot.lane.b32.xlu0 %v2343, 124
          %v2350 = vpop.permute.xlu0 %2349
          %v2354 = vadd.f32 %v2298, %v2346
          %v2355 = vadd.f32 %v2299, %v2346
          %v2356 = vadd.f32 %v2300, %v2348
          %v2357 = vadd.f32 %v2301, %v2348
          %v2358 = vadd.f32 %v2302, %v2350
          %v2359 = vadd.f32 %v2303, %v2350
          %v2360 = vstv %s2332
          %v2361 = vmul.f32 %v2360, %v275
          %v2362 = vmul.f32 %v2360, %v277
          %v2363 = vmul.f32 %v2360, %v279
          %v2367 = vrot.slane %v2361, 2
          %v2368 = vrot.slane %v2362, 2
          %v2369 = vsel %vm398, %v2367, %v2368
          %v2370 = vrot.slane %v2363, 2
          %v2371 = vsel %vm398, %v2368, %v2370
          %2372 = vrot.lane.b32.xlu0 %v2369, 124
          %v2373 = vpop.permute.xlu0 %2372
          %2374 = vrot.lane.b32.xlu0 %v2371, 124
          %v2375 = vpop.permute.xlu0 %2374
          %2376 = vrot.lane.b32.xlu0 %v2370, 124
          %v2377 = vpop.permute.xlu0 %2376
          %v2381 = vadd.f32 %v2325, %v2373
          %v2382 = vadd.f32 %v2326, %v2373
          %v2383 = vadd.f32 %v2327, %v2375
          %v2384 = vadd.f32 %v2328, %v2375
          %v2385 = vadd.f32 %v2329, %v2377
          %v2386 = vadd.f32 %v2330, %v2377
          %s2387 = sld [smem:[#allocation8 + $0x19]]
          %s2388 = sld [smem:[#allocation8 + $0x4a]]
          %v2389 = vstv %s2387
          %v2390 = vmul.f32 %v2389, %v269
          %v2391 = vmul.f32 %v2389, %v271
          %v2394 = vrot.slane %v2390, 3
          %v2395 = vrot.slane %v2391, 3
          %v2396 = vsel %vm467, %v2394, %v2395
          %2397 = vrot.lane.b32.xlu0 %v2394, 124
          %v2398 = vpop.permute.xlu0 %2397
          %2399 = vrot.lane.b32.xlu0 %v2396, 124
          %v2400 = vpop.permute.xlu0 %2399
          %2401 = vrot.lane.b32.xlu0 %v2395, 124
          %v2402 = vpop.permute.xlu0 %2401
          %v2406 = vadd.f32 %v2354, %v2398
          %v2407 = vadd.f32 %v2355, %v2398
          %v2408 = vadd.f32 %v2356, %v2400
          %v2409 = vadd.f32 %v2357, %v2400
          %v2410 = vadd.f32 %v2358, %v2402
          %v2411 = vadd.f32 %v2359, %v2402
          %v2412 = vstv %s2388
          %v2413 = vmul.f32 %v2412, %v277
          %v2414 = vmul.f32 %v2412, %v279
          %v2417 = vrot.slane %v2413, 3
          %v2418 = vrot.slane %v2414, 3
          %v2419 = vsel %vm467, %v2417, %v2418
          %2420 = vrot.lane.b32.xlu0 %v2417, 124
          %v2421 = vpop.permute.xlu0 %2420
          %2422 = vrot.lane.b32.xlu0 %v2419, 124
          %v2423 = vpop.permute.xlu0 %2422
          %2424 = vrot.lane.b32.xlu0 %v2418, 124
          %v2425 = vpop.permute.xlu0 %2424
          %v2429 = vadd.f32 %v2381, %v2421
          %v2430 = vadd.f32 %v2382, %v2421
          %v2431 = vadd.f32 %v2383, %v2423
          %v2432 = vadd.f32 %v2384, %v2423
          %v2433 = vadd.f32 %v2385, %v2425
          %v2434 = vadd.f32 %v2386, %v2425
          %s2435 = sld [smem:[#allocation8 + $0x20]]
          %s2436 = sld [smem:[#allocation8 + $0x51]]
          %v2437 = vstv %s2435
          %v2438 = vmul.f32 %v2437, %v269
          %v2439 = vmul.f32 %v2437, %v271
          %v2440 = vmul.f32 %v2437, %v273
          %v2444 = vrot.slane %v2438, 4
          %v2445 = vrot.slane %v2439, 4
          %v2446 = vsel %vm528, %v2444, %v2445
          %v2447 = vrot.slane %v2440, 4
          %v2448 = vsel %vm528, %v2445, %v2447
          %2449 = vrot.lane.b32.xlu0 %v2444, 124
          %v2450 = vpop.permute.xlu0 %2449
          %2451 = vrot.lane.b32.xlu0 %v2446, 124
          %v2452 = vpop.permute.xlu0 %2451
          %2453 = vrot.lane.b32.xlu0 %v2448, 124
          %v2454 = vpop.permute.xlu0 %2453
          %v2458 = vadd.f32 %v2406, %v2450
          %v2459 = vadd.f32 %v2407, %v2450
          %v2460 = vadd.f32 %v2408, %v2452
          %v2461 = vadd.f32 %v2409, %v2452
          %v2462 = vadd.f32 %v2410, %v2454
          %v2463 = vadd.f32 %v2411, %v2454
          %v2464 = vstv %s2436
          %v2465 = vmul.f32 %v2464, %v277
          %v2466 = vmul.f32 %v2464, %v279
          %v2467 = vmul.f32 %v2464, %v281
          %v2471 = vrot.slane %v2465, 4
          %v2472 = vrot.slane %v2466, 4
          %v2473 = vsel %vm528, %v2471, %v2472
          %v2474 = vrot.slane %v2467, 4
          %v2475 = vsel %vm528, %v2472, %v2474
          %2476 = vrot.lane.b32.xlu0 %v2471, 124
          %v2477 = vpop.permute.xlu0 %2476
          %2478 = vrot.lane.b32.xlu0 %v2473, 124
          %v2479 = vpop.permute.xlu0 %2478
          %2480 = vrot.lane.b32.xlu0 %v2475, 124
          %v2481 = vpop.permute.xlu0 %2480
          %v2485 = vadd.f32 %v2429, %v2477
          %v2486 = vadd.f32 %v2430, %v2477
          %v2487 = vadd.f32 %v2431, %v2479
          %v2488 = vadd.f32 %v2432, %v2479
          %v2489 = vadd.f32 %v2433, %v2481
          %v2490 = vadd.f32 %v2434, %v2481
          %s2491 = sld [smem:[#allocation8 + $0x27]]
          %s2492 = sld [smem:[#allocation8 + $0x58]]
          %v2493 = vstv %s2491
          %v2494 = vmul.f32 %v2493, %v269
          %v2495 = vmul.f32 %v2493, %v271
          %v2496 = vmul.f32 %v2493, %v273
          %v2500 = vrot.slane %v2494, 5
          %v2501 = vrot.slane %v2495, 5
          %v2502 = vsel %vm601, %v2500, %v2501
          %v2503 = vrot.slane %v2496, 5
          %v2504 = vsel %vm601, %v2501, %v2503
          %2505 = vrot.lane.b32.xlu0 %v2500, 124
          %v2506 = vpop.permute.xlu0 %2505
          %2507 = vrot.lane.b32.xlu0 %v2502, 124
          %v2508 = vpop.permute.xlu0 %2507
          %2509 = vrot.lane.b32.xlu0 %v2504, 124
          %v2510 = vpop.permute.xlu0 %2509
          %v2514 = vadd.f32 %v2458, %v2506
          %v2515 = vadd.f32 %v2459, %v2506
          %v2516 = vadd.f32 %v2460, %v2508
          %v2517 = vadd.f32 %v2461, %v2508
          %v2518 = vadd.f32 %v2462, %v2510
          %v2519 = vadd.f32 %v2463, %v2510
          %v2520 = vstv %s2492
          %v2521 = vmul.f32 %v2520, %v277
          %v2522 = vmul.f32 %v2520, %v279
          %v2523 = vmul.f32 %v2520, %v281
          %v2527 = vrot.slane %v2521, 5
          %v2528 = vrot.slane %v2522, 5
          %v2529 = vsel %vm601, %v2527, %v2528
          %v2530 = vrot.slane %v2523, 5
          %v2531 = vsel %vm601, %v2528, %v2530
          %2532 = vrot.lane.b32.xlu0 %v2527, 124
          %v2533 = vpop.permute.xlu0 %2532
          %2534 = vrot.lane.b32.xlu0 %v2529, 124
          %v2535 = vpop.permute.xlu0 %2534
          %2536 = vrot.lane.b32.xlu0 %v2531, 124
          %v2537 = vpop.permute.xlu0 %2536
          %v2541 = vadd.f32 %v2485, %v2533
          %v2542 = vadd.f32 %v2486, %v2533
          %v2543 = vadd.f32 %v2487, %v2535
          %v2544 = vadd.f32 %v2488, %v2535
          %v2545 = vadd.f32 %v2489, %v2537
          %v2546 = vadd.f32 %v2490, %v2537
          %s2547 = sld [smem:[#allocation8 + $0x2e]]
          %s2548 = sld [smem:[#allocation8 + $0x5f]]
          %v2549 = vstv %s2547
          %v2550 = vmul.f32 %v2549, %v269
          %v2551 = vmul.f32 %v2549, %v271
          %v2552 = vmul.f32 %v2549, %v273
          %v2556 = vrot.slane %v2550, 6
          %v2557 = vrot.slane %v2551, 6
          %v2558 = vsel %vm674, %v2556, %v2557
          %v2559 = vrot.slane %v2552, 6
          %v2560 = vsel %vm674, %v2557, %v2559
          %2561 = vrot.lane.b32.xlu0 %v2556, 124
          %v2562 = vpop.permute.xlu0 %2561
          %2563 = vrot.lane.b32.xlu0 %v2558, 124
          %v2564 = vpop.permute.xlu0 %2563
          %2565 = vrot.lane.b32.xlu0 %v2560, 124
          %v2566 = vpop.permute.xlu0 %2565
          %v2570 = vadd.f32 %v2514, %v2562
          %v2571 = vadd.f32 %v2515, %v2562
          %v2572 = vadd.f32 %v2516, %v2564
          %v2573 = vadd.f32 %v2517, %v2564
          %v2574 = vadd.f32 %v2518, %v2566
          %v2575 = vadd.f32 %v2519, %v2566
          %v2576 = vstv %s2548
          %v2577 = vmul.f32 %v2576, %v277
          %v2578 = vmul.f32 %v2576, %v279
          %v2579 = vmul.f32 %v2576, %v281
          %v2583 = vrot.slane %v2577, 6
          %v2584 = vrot.slane %v2578, 6
          %v2585 = vsel %vm674, %v2583, %v2584
          %v2586 = vrot.slane %v2579, 6
          %v2587 = vsel %vm674, %v2584, %v2586
          %2588 = vrot.lane.b32.xlu0 %v2583, 124
          %v2589 = vpop.permute.xlu0 %2588
          %2590 = vrot.lane.b32.xlu0 %v2585, 124
          %v2591 = vpop.permute.xlu0 %2590
          %2592 = vrot.lane.b32.xlu0 %v2587, 124
          %v2593 = vpop.permute.xlu0 %2592
          %v2597 = vadd.f32 %v2541, %v2589
          %v2598 = vadd.f32 %v2542, %v2589
          %v2599 = vadd.f32 %v2543, %v2591
          %v2600 = vadd.f32 %v2544, %v2591
          %v2601 = vadd.f32 %v2545, %v2593
          %v2602 = vadd.f32 %v2546, %v2593
          %s2603 = sld [smem:[#allocation8 + $0x5]]
          %s2604 = sld [smem:[#allocation8 + $0x36]]
          %v2605 = vstv %s2603
          %v2606 = vmul.f32 %v2605, %v267
          %v2607 = vmul.f32 %v2605, %v269
          %v2608 = vmul.f32 %v2605, %v271
          %2612 = vrot.lane.b32.xlu0 %v2606, 124
          %v2613 = vpop.permute.xlu0 %2612
          %2614 = vrot.lane.b32.xlu0 %v2607, 124
          %v2615 = vpop.permute.xlu0 %2614
          %2616 = vrot.lane.b32.xlu0 %v2608, 124
          %v2617 = vpop.permute.xlu0 %2616
          %v2621 = vadd.f32 %v2196, %v2613
          %v2622 = vadd.f32 %v2197, %v2613
          %v2623 = vadd.f32 %v2198, %v2615
          %v2624 = vadd.f32 %v2199, %v2615
          %v2625 = vadd.f32 %v2200, %v2617
          %v2626 = vadd.f32 %v2201, %v2617
          %v2627 = vstv %s2604
          %v2628 = vmul.f32 %v2627, %v275
          %v2629 = vmul.f32 %v2627, %v277
          %v2630 = vmul.f32 %v2627, %v279
          %2634 = vrot.lane.b32.xlu0 %v2628, 124
          %v2635 = vpop.permute.xlu0 %2634
          %2636 = vrot.lane.b32.xlu0 %v2629, 124
          %v2637 = vpop.permute.xlu0 %2636
          %2638 = vrot.lane.b32.xlu0 %v2630, 124
          %v2639 = vpop.permute.xlu0 %2638
          %v2643 = vadd.f32 %v2223, %v2635
          %v2644 = vadd.f32 %v2224, %v2635
          %v2645 = vadd.f32 %v2225, %v2637
          %v2646 = vadd.f32 %v2226, %v2637
          %v2647 = vadd.f32 %v2227, %v2639
          %v2648 = vadd.f32 %v2228, %v2639
          %s2649 = sld [smem:[#allocation8 + $0xc]]
          %s2650 = sld [smem:[#allocation8 + $0x3d]]
          %v2651 = vstv %s2649
          %v2652 = vmul.f32 %v2651, %v267
          %v2653 = vmul.f32 %v2651, %v269
          %v2654 = vmul.f32 %v2651, %v271
          %v2658 = vrot.slane %v2652, 1
          %v2659 = vrot.slane %v2653, 1
          %v2660 = vsel %vm325, %v2658, %v2659
          %v2661 = vrot.slane %v2654, 1
          %v2662 = vsel %vm325, %v2659, %v2661
          %2663 = vrot.lane.b32.xlu0 %v2660, 124
          %v2664 = vpop.permute.xlu0 %2663
          %2665 = vrot.lane.b32.xlu0 %v2662, 124
          %v2666 = vpop.permute.xlu0 %2665
          %2667 = vrot.lane.b32.xlu0 %v2661, 124
          %v2668 = vpop.permute.xlu0 %2667
          %v2672 = vadd.f32 %v2621, %v2664
          %v2673 = vadd.f32 %v2622, %v2664
          %v2674 = vadd.f32 %v2623, %v2666
          %v2675 = vadd.f32 %v2624, %v2666
          %v2676 = vadd.f32 %v2625, %v2668
          %v2677 = vadd.f32 %v2626, %v2668
          %v2678 = vstv %s2650
          %v2679 = vmul.f32 %v2678, %v275
          %v2680 = vmul.f32 %v2678, %v277
          %v2681 = vmul.f32 %v2678, %v279
          %v2685 = vrot.slane %v2679, 1
          %v2686 = vrot.slane %v2680, 1
          %v2687 = vsel %vm325, %v2685, %v2686
          %v2688 = vrot.slane %v2681, 1
          %v2689 = vsel %vm325, %v2686, %v2688
          %2690 = vrot.lane.b32.xlu0 %v2687, 124
          %v2691 = vpop.permute.xlu0 %2690
          %2692 = vrot.lane.b32.xlu0 %v2689, 124
          %v2693 = vpop.permute.xlu0 %2692
          %2694 = vrot.lane.b32.xlu0 %v2688, 124
          %v2695 = vpop.permute.xlu0 %2694
          %v2699 = vadd.f32 %v2643, %v2691
          %v2700 = vadd.f32 %v2644, %v2691
          %v2701 = vadd.f32 %v2645, %v2693
          %v2702 = vadd.f32 %v2646, %v2693
          %v2703 = vadd.f32 %v2647, %v2695
          %v2704 = vadd.f32 %v2648, %v2695
          %s2705 = sld [smem:[#allocation8 + $0x13]]
          %s2706 = sld [smem:[#allocation8 + $0x44]]
          %v2707 = vstv %s2705
          %v2708 = vmul.f32 %v2707, %v267
          %v2709 = vmul.f32 %v2707, %v269
          %v2710 = vmul.f32 %v2707, %v271
          %v2714 = vrot.slane %v2708, 2
          %v2715 = vrot.slane %v2709, 2
          %v2716 = vsel %vm398, %v2714, %v2715
          %v2717 = vrot.slane %v2710, 2
          %v2718 = vsel %vm398, %v2715, %v2717
          %2719 = vrot.lane.b32.xlu0 %v2716, 124
          %v2720 = vpop.permute.xlu0 %2719
          %2721 = vrot.lane.b32.xlu0 %v2718, 124
          %v2722 = vpop.permute.xlu0 %2721
          %2723 = vrot.lane.b32.xlu0 %v2717, 124
          %v2724 = vpop.permute.xlu0 %2723
          %v2728 = vadd.f32 %v2672, %v2720
          %v2729 = vadd.f32 %v2673, %v2720
          %v2730 = vadd.f32 %v2674, %v2722
          %v2731 = vadd.f32 %v2675, %v2722
          %v2732 = vadd.f32 %v2676, %v2724
          %v2733 = vadd.f32 %v2677, %v2724
          %v2734 = vstv %s2706
          %v2735 = vmul.f32 %v2734, %v275
          %v2736 = vmul.f32 %v2734, %v277
          %v2737 = vmul.f32 %v2734, %v279
          %v2741 = vrot.slane %v2735, 2
          %v2742 = vrot.slane %v2736, 2
          %v2743 = vsel %vm398, %v2741, %v2742
          %v2744 = vrot.slane %v2737, 2
          %v2745 = vsel %vm398, %v2742, %v2744
          %2746 = vrot.lane.b32.xlu0 %v2743, 124
          %v2747 = vpop.permute.xlu0 %2746
          %2748 = vrot.lane.b32.xlu0 %v2745, 124
          %v2749 = vpop.permute.xlu0 %2748
          %2750 = vrot.lane.b32.xlu0 %v2744, 124
          %v2751 = vpop.permute.xlu0 %2750
          %v2755 = vadd.f32 %v2699, %v2747
          %v2756 = vadd.f32 %v2700, %v2747
          %v2757 = vadd.f32 %v2701, %v2749
          %v2758 = vadd.f32 %v2702, %v2749
          %v2759 = vadd.f32 %v2703, %v2751
          %v2760 = vadd.f32 %v2704, %v2751
          %s2761 = sld [smem:[#allocation8 + $0x1a]]
          %s2762 = sld [smem:[#allocation8 + $0x4b]]
          %v2763 = vstv %s2761
          %v2764 = vmul.f32 %v2763, %v269
          %v2765 = vmul.f32 %v2763, %v271
          %v2768 = vrot.slane %v2764, 3
          %v2769 = vrot.slane %v2765, 3
          %v2770 = vsel %vm467, %v2768, %v2769
          %2771 = vrot.lane.b32.xlu0 %v2768, 124
          %v2772 = vpop.permute.xlu0 %2771
          %2773 = vrot.lane.b32.xlu0 %v2770, 124
          %v2774 = vpop.permute.xlu0 %2773
          %2775 = vrot.lane.b32.xlu0 %v2769, 124
          %v2776 = vpop.permute.xlu0 %2775
          %v2780 = vadd.f32 %v2728, %v2772
          %v2781 = vadd.f32 %v2729, %v2772
          %v2782 = vadd.f32 %v2730, %v2774
          %v2783 = vadd.f32 %v2731, %v2774
          %v2784 = vadd.f32 %v2732, %v2776
          %v2785 = vadd.f32 %v2733, %v2776
          %v2786 = vstv %s2762
          %v2787 = vmul.f32 %v2786, %v277
          %v2788 = vmul.f32 %v2786, %v279
          %v2791 = vrot.slane %v2787, 3
          %v2792 = vrot.slane %v2788, 3
          %v2793 = vsel %vm467, %v2791, %v2792
          %2794 = vrot.lane.b32.xlu0 %v2791, 124
          %v2795 = vpop.permute.xlu0 %2794
          %2796 = vrot.lane.b32.xlu0 %v2793, 124
          %v2797 = vpop.permute.xlu0 %2796
          %2798 = vrot.lane.b32.xlu0 %v2792, 124
          %v2799 = vpop.permute.xlu0 %2798
          %v2803 = vadd.f32 %v2755, %v2795
          %v2804 = vadd.f32 %v2756, %v2795
          %v2805 = vadd.f32 %v2757, %v2797
          %v2806 = vadd.f32 %v2758, %v2797
          %v2807 = vadd.f32 %v2759, %v2799
          %v2808 = vadd.f32 %v2760, %v2799
          %s2809 = sld [smem:[#allocation8 + $0x21]]
          %s2810 = sld [smem:[#allocation8 + $0x52]]
          %v2811 = vstv %s2809
          %v2812 = vmul.f32 %v2811, %v269
          %v2813 = vmul.f32 %v2811, %v271
          %v2814 = vmul.f32 %v2811, %v273
          %v2818 = vrot.slane %v2812, 4
          %v2819 = vrot.slane %v2813, 4
          %v2820 = vsel %vm528, %v2818, %v2819
          %v2821 = vrot.slane %v2814, 4
          %v2822 = vsel %vm528, %v2819, %v2821
          %2823 = vrot.lane.b32.xlu0 %v2818, 124
          %v2824 = vpop.permute.xlu0 %2823
          %2825 = vrot.lane.b32.xlu0 %v2820, 124
          %v2826 = vpop.permute.xlu0 %2825
          %2827 = vrot.lane.b32.xlu0 %v2822, 124
          %v2828 = vpop.permute.xlu0 %2827
          %v2832 = vadd.f32 %v2780, %v2824
          %v2833 = vadd.f32 %v2781, %v2824
          %v2834 = vadd.f32 %v2782, %v2826
          %v2835 = vadd.f32 %v2783, %v2826
          %v2836 = vadd.f32 %v2784, %v2828
          %v2837 = vadd.f32 %v2785, %v2828
          %v2838 = vstv %s2810
          %v2839 = vmul.f32 %v2838, %v277
          %v2840 = vmul.f32 %v2838, %v279
          %v2841 = vmul.f32 %v2838, %v281
          %v2845 = vrot.slane %v2839, 4
          %v2846 = vrot.slane %v2840, 4
          %v2847 = vsel %vm528, %v2845, %v2846
          %v2848 = vrot.slane %v2841, 4
          %v2849 = vsel %vm528, %v2846, %v2848
          %2850 = vrot.lane.b32.xlu0 %v2845, 124
          %v2851 = vpop.permute.xlu0 %2850
          %2852 = vrot.lane.b32.xlu0 %v2847, 124
          %v2853 = vpop.permute.xlu0 %2852
          %2854 = vrot.lane.b32.xlu0 %v2849, 124
          %v2855 = vpop.permute.xlu0 %2854
          %v2859 = vadd.f32 %v2803, %v2851
          %v2860 = vadd.f32 %v2804, %v2851
          %v2861 = vadd.f32 %v2805, %v2853
          %v2862 = vadd.f32 %v2806, %v2853
          %v2863 = vadd.f32 %v2807, %v2855
          %v2864 = vadd.f32 %v2808, %v2855
          %s2865 = sld [smem:[#allocation8 + $0x28]]
          %s2866 = sld [smem:[#allocation8 + $0x59]]
          %v2867 = vstv %s2865
          %v2868 = vmul.f32 %v2867, %v269
          %v2869 = vmul.f32 %v2867, %v271
          %v2870 = vmul.f32 %v2867, %v273
          %v2874 = vrot.slane %v2868, 5
          %v2875 = vrot.slane %v2869, 5
          %v2876 = vsel %vm601, %v2874, %v2875
          %v2877 = vrot.slane %v2870, 5
          %v2878 = vsel %vm601, %v2875, %v2877
          %2879 = vrot.lane.b32.xlu0 %v2874, 124
          %v2880 = vpop.permute.xlu0 %2879
          %2881 = vrot.lane.b32.xlu0 %v2876, 124
          %v2882 = vpop.permute.xlu0 %2881
          %2883 = vrot.lane.b32.xlu0 %v2878, 124
          %v2884 = vpop.permute.xlu0 %2883
          %v2888 = vadd.f32 %v2832, %v2880
          %v2889 = vadd.f32 %v2833, %v2880
          %v2890 = vadd.f32 %v2834, %v2882
          %v2891 = vadd.f32 %v2835, %v2882
          %v2892 = vadd.f32 %v2836, %v2884
          %v2893 = vadd.f32 %v2837, %v2884
          %v2894 = vstv %s2866
          %v2895 = vmul.f32 %v2894, %v277
          %v2896 = vmul.f32 %v2894, %v279
          %v2897 = vmul.f32 %v2894, %v281
          %v2901 = vrot.slane %v2895, 5
          %v2902 = vrot.slane %v2896, 5
          %v2903 = vsel %vm601, %v2901, %v2902
          %v2904 = vrot.slane %v2897, 5
          %v2905 = vsel %vm601, %v2902, %v2904
          %2906 = vrot.lane.b32.xlu0 %v2901, 124
          %v2907 = vpop.permute.xlu0 %2906
          %2908 = vrot.lane.b32.xlu0 %v2903, 124
          %v2909 = vpop.permute.xlu0 %2908
          %2910 = vrot.lane.b32.xlu0 %v2905, 124
          %v2911 = vpop.permute.xlu0 %2910
          %v2915 = vadd.f32 %v2859, %v2907
          %v2916 = vadd.f32 %v2860, %v2907
          %v2917 = vadd.f32 %v2861, %v2909
          %v2918 = vadd.f32 %v2862, %v2909
          %v2919 = vadd.f32 %v2863, %v2911
          %v2920 = vadd.f32 %v2864, %v2911
          %s2921 = sld [smem:[#allocation8 + $0x2f]]
          %s2922 = sld [smem:[#allocation8 + $0x60]]
          %v2923 = vstv %s2921
          %v2924 = vmul.f32 %v2923, %v269
          %v2925 = vmul.f32 %v2923, %v271
          %v2926 = vmul.f32 %v2923, %v273
          %v2930 = vrot.slane %v2924, 6
          %v2931 = vrot.slane %v2925, 6
          %v2932 = vsel %vm674, %v2930, %v2931
          %v2933 = vrot.slane %v2926, 6
          %v2934 = vsel %vm674, %v2931, %v2933
          %2935 = vrot.lane.b32.xlu0 %v2930, 124
          %v2936 = vpop.permute.xlu0 %2935
          %2937 = vrot.lane.b32.xlu0 %v2932, 124
          %v2938 = vpop.permute.xlu0 %2937
          %2939 = vrot.lane.b32.xlu0 %v2934, 124
          %v2940 = vpop.permute.xlu0 %2939
          %v2944 = vadd.f32 %v2888, %v2936
          %v2945 = vadd.f32 %v2889, %v2936
          %v2946 = vadd.f32 %v2890, %v2938
          %v2947 = vadd.f32 %v2891, %v2938
          %v2948 = vadd.f32 %v2892, %v2940
          %v2949 = vadd.f32 %v2893, %v2940
          %v2950 = vstv %s2922
          %v2951 = vmul.f32 %v2950, %v277
          %v2952 = vmul.f32 %v2950, %v279
          %v2953 = vmul.f32 %v2950, %v281
          %v2957 = vrot.slane %v2951, 6
          %v2958 = vrot.slane %v2952, 6
          %v2959 = vsel %vm674, %v2957, %v2958
          %v2960 = vrot.slane %v2953, 6
          %v2961 = vsel %vm674, %v2958, %v2960
          %2962 = vrot.lane.b32.xlu0 %v2957, 124
          %v2963 = vpop.permute.xlu0 %2962
          %2964 = vrot.lane.b32.xlu0 %v2959, 124
          %v2965 = vpop.permute.xlu0 %2964
          %2966 = vrot.lane.b32.xlu0 %v2961, 124
          %v2967 = vpop.permute.xlu0 %2966
          %v2971 = vadd.f32 %v2915, %v2963
          %v2972 = vadd.f32 %v2916, %v2963
          %v2973 = vadd.f32 %v2917, %v2965
          %v2974 = vadd.f32 %v2918, %v2965
          %v2975 = vadd.f32 %v2919, %v2967
          %v2976 = vadd.f32 %v2920, %v2967
          %s2977 = sld [smem:[#allocation8 + $0x6]]
          %s2978 = sld [smem:[#allocation8 + $0x37]]
          %v2979 = vstv %s2977
          %v2980 = vmul.f32 %v2979, %v267
          %v2981 = vmul.f32 %v2979, %v269
          %v2982 = vmul.f32 %v2979, %v271
          %2986 = vrot.lane.b32.xlu0 %v2980, 122
          %v2987 = vpop.permute.xlu0 %2986
          %2988 = vrot.lane.b32.xlu0 %v2981, 122
          %v2989 = vpop.permute.xlu0 %2988
          %2990 = vrot.lane.b32.xlu0 %v2982, 122
          %v2991 = vpop.permute.xlu0 %2990
          %v2995 = vadd.f32 %v2570, %v2987
          %v2996 = vadd.f32 %v2571, %v2987
          %v2997 = vadd.f32 %v2572, %v2989
          %v2998 = vadd.f32 %v2573, %v2989
          %v2999 = vadd.f32 %v2574, %v2991
          %v3000 = vadd.f32 %v2575, %v2991
          %v3001 = vstv %s2978
          %v3002 = vmul.f32 %v3001, %v275
          %v3003 = vmul.f32 %v3001, %v277
          %v3004 = vmul.f32 %v3001, %v279
          %3008 = vrot.lane.b32.xlu0 %v3002, 122
          %v3009 = vpop.permute.xlu0 %3008
          %3010 = vrot.lane.b32.xlu0 %v3003, 122
          %v3011 = vpop.permute.xlu0 %3010
          %3012 = vrot.lane.b32.xlu0 %v3004, 122
          %v3013 = vpop.permute.xlu0 %3012
          %v3017 = vadd.f32 %v2597, %v3009
          %v3018 = vadd.f32 %v2598, %v3009
          %v3019 = vadd.f32 %v2599, %v3011
          %v3020 = vadd.f32 %v2600, %v3011
          %v3021 = vadd.f32 %v2601, %v3013
          %v3022 = vadd.f32 %v2602, %v3013
          %s3023 = sld [smem:[#allocation8 + $0xd]]
          %s3024 = sld [smem:[#allocation8 + $0x3e]]
          %v3025 = vstv %s3023
          %v3026 = vmul.f32 %v3025, %v267
          %v3027 = vmul.f32 %v3025, %v269
          %v3028 = vmul.f32 %v3025, %v271
          %v3032 = vrot.slane %v3026, 1
          %v3033 = vrot.slane %v3027, 1
          %v3034 = vsel %vm325, %v3032, %v3033
          %v3035 = vrot.slane %v3028, 1
          %v3036 = vsel %vm325, %v3033, %v3035
          %3037 = vrot.lane.b32.xlu0 %v3034, 122
          %v3038 = vpop.permute.xlu0 %3037
          %3039 = vrot.lane.b32.xlu0 %v3036, 122
          %v3040 = vpop.permute.xlu0 %3039
          %3041 = vrot.lane.b32.xlu0 %v3035, 122
          %v3042 = vpop.permute.xlu0 %3041
          %v3046 = vadd.f32 %v2995, %v3038
          %v3047 = vadd.f32 %v2996, %v3038
          %v3048 = vadd.f32 %v2997, %v3040
          %v3049 = vadd.f32 %v2998, %v3040
          %v3050 = vadd.f32 %v2999, %v3042
          %v3051 = vadd.f32 %v3000, %v3042
          %v3052 = vstv %s3024
          %v3053 = vmul.f32 %v3052, %v275
          %v3054 = vmul.f32 %v3052, %v277
          %v3055 = vmul.f32 %v3052, %v279
          %v3059 = vrot.slane %v3053, 1
          %v3060 = vrot.slane %v3054, 1
          %v3061 = vsel %vm325, %v3059, %v3060
          %v3062 = vrot.slane %v3055, 1
          %v3063 = vsel %vm325, %v3060, %v3062
          %3064 = vrot.lane.b32.xlu0 %v3061, 122
          %v3065 = vpop.permute.xlu0 %3064
          %3066 = vrot.lane.b32.xlu0 %v3063, 122
          %v3067 = vpop.permute.xlu0 %3066
          %3068 = vrot.lane.b32.xlu0 %v3062, 122
          %v3069 = vpop.permute.xlu0 %3068
          %v3073 = vadd.f32 %v3017, %v3065
          %v3074 = vadd.f32 %v3018, %v3065
          %v3075 = vadd.f32 %v3019, %v3067
          %v3076 = vadd.f32 %v3020, %v3067
          %v3077 = vadd.f32 %v3021, %v3069
          %v3078 = vadd.f32 %v3022, %v3069
          %s3079 = sld [smem:[#allocation8 + $0x14]]
          %s3080 = sld [smem:[#allocation8 + $0x45]]
          %v3081 = vstv %s3079
          %v3082 = vmul.f32 %v3081, %v267
          %v3083 = vmul.f32 %v3081, %v269
          %v3084 = vmul.f32 %v3081, %v271
          %v3088 = vrot.slane %v3082, 2
          %v3089 = vrot.slane %v3083, 2
          %v3090 = vsel %vm398, %v3088, %v3089
          %v3091 = vrot.slane %v3084, 2
          %v3092 = vsel %vm398, %v3089, %v3091
          %3093 = vrot.lane.b32.xlu0 %v3090, 122
          %v3094 = vpop.permute.xlu0 %3093
          %3095 = vrot.lane.b32.xlu0 %v3092, 122
          %v3096 = vpop.permute.xlu0 %3095
          %3097 = vrot.lane.b32.xlu0 %v3091, 122
          %v3098 = vpop.permute.xlu0 %3097
          %v3102 = vadd.f32 %v3046, %v3094
          %v3103 = vadd.f32 %v3047, %v3094
          %v3104 = vadd.f32 %v3048, %v3096
          %v3105 = vadd.f32 %v3049, %v3096
          %v3106 = vadd.f32 %v3050, %v3098
          %v3107 = vadd.f32 %v3051, %v3098
          %v3108 = vstv %s3080
          %v3109 = vmul.f32 %v3108, %v275
          %v3110 = vmul.f32 %v3108, %v277
          %v3111 = vmul.f32 %v3108, %v279
          %v3115 = vrot.slane %v3109, 2
          %v3116 = vrot.slane %v3110, 2
          %v3117 = vsel %vm398, %v3115, %v3116
          %v3118 = vrot.slane %v3111, 2
          %v3119 = vsel %vm398, %v3116, %v3118
          %3120 = vrot.lane.b32.xlu0 %v3117, 122
          %v3121 = vpop.permute.xlu0 %3120
          %3122 = vrot.lane.b32.xlu0 %v3119, 122
          %v3123 = vpop.permute.xlu0 %3122
          %3124 = vrot.lane.b32.xlu0 %v3118, 122
          %v3125 = vpop.permute.xlu0 %3124
          %v3129 = vadd.f32 %v3073, %v3121
          %v3130 = vadd.f32 %v3074, %v3121
          %v3131 = vadd.f32 %v3075, %v3123
          %v3132 = vadd.f32 %v3076, %v3123
          %v3133 = vadd.f32 %v3077, %v3125
          %v3134 = vadd.f32 %v3078, %v3125
          %s3135 = sld [smem:[#allocation8 + $0x1b]]
          %s3136 = sld [smem:[#allocation8 + $0x4c]]
          %v3137 = vstv %s3135
          %v3138 = vmul.f32 %v3137, %v269
          %v3139 = vmul.f32 %v3137, %v271
          %v3142 = vrot.slane %v3138, 3
          %v3143 = vrot.slane %v3139, 3
          %v3144 = vsel %vm467, %v3142, %v3143
          %3145 = vrot.lane.b32.xlu0 %v3142, 122
          %v3146 = vpop.permute.xlu0 %3145
          %3147 = vrot.lane.b32.xlu0 %v3144, 122
          %v3148 = vpop.permute.xlu0 %3147
          %3149 = vrot.lane.b32.xlu0 %v3143, 122
          %v3150 = vpop.permute.xlu0 %3149
          %v3154 = vadd.f32 %v3102, %v3146
          %v3155 = vadd.f32 %v3103, %v3146
          %v3156 = vadd.f32 %v3104, %v3148
          %v3157 = vadd.f32 %v3105, %v3148
          %v3158 = vadd.f32 %v3106, %v3150
          %v3159 = vadd.f32 %v3107, %v3150
          %v3160 = vstv %s3136
          %v3161 = vmul.f32 %v3160, %v277
          %v3162 = vmul.f32 %v3160, %v279
          %v3165 = vrot.slane %v3161, 3
          %v3166 = vrot.slane %v3162, 3
          %v3167 = vsel %vm467, %v3165, %v3166
          %3168 = vrot.lane.b32.xlu0 %v3165, 122
          %v3169 = vpop.permute.xlu0 %3168
          %3170 = vrot.lane.b32.xlu0 %v3167, 122
          %v3171 = vpop.permute.xlu0 %3170
          %3172 = vrot.lane.b32.xlu0 %v3166, 122
          %v3173 = vpop.permute.xlu0 %3172
          %v3177 = vadd.f32 %v3129, %v3169
          %v3178 = vadd.f32 %v3130, %v3169
          %v3179 = vadd.f32 %v3131, %v3171
          %v3180 = vadd.f32 %v3132, %v3171
          %v3181 = vadd.f32 %v3133, %v3173
          %v3182 = vadd.f32 %v3134, %v3173
          %s3183 = sld [smem:[#allocation8 + $0x22]]
          %s3184 = sld [smem:[#allocation8 + $0x53]]
          %v3185 = vstv %s3183
          %v3186 = vmul.f32 %v3185, %v269
          %v3187 = vmul.f32 %v3185, %v271
          %v3188 = vmul.f32 %v3185, %v273
          %v3192 = vrot.slane %v3186, 4
          %v3193 = vrot.slane %v3187, 4
          %v3194 = vsel %vm528, %v3192, %v3193
          %v3195 = vrot.slane %v3188, 4
          %v3196 = vsel %vm528, %v3193, %v3195
          %3197 = vrot.lane.b32.xlu0 %v3192, 122
          %v3198 = vpop.permute.xlu0 %3197
          %3199 = vrot.lane.b32.xlu0 %v3194, 122
          %v3200 = vpop.permute.xlu0 %3199
          %3201 = vrot.lane.b32.xlu0 %v3196, 122
          %v3202 = vpop.permute.xlu0 %3201
          %v3206 = vadd.f32 %v3154, %v3198
          %v3207 = vadd.f32 %v3155, %v3198
          %v3208 = vadd.f32 %v3156, %v3200
          %v3209 = vadd.f32 %v3157, %v3200
          %v3210 = vadd.f32 %v3158, %v3202
          %v3211 = vadd.f32 %v3159, %v3202
          %v3212 = vstv %s3184
          %v3213 = vmul.f32 %v3212, %v277
          %v3214 = vmul.f32 %v3212, %v279
          %v3215 = vmul.f32 %v3212, %v281
          %v3219 = vrot.slane %v3213, 4
          %v3220 = vrot.slane %v3214, 4
          %v3221 = vsel %vm528, %v3219, %v3220
          %v3222 = vrot.slane %v3215, 4
          %v3223 = vsel %vm528, %v3220, %v3222
          %3224 = vrot.lane.b32.xlu0 %v3219, 122
          %v3225 = vpop.permute.xlu0 %3224
          %3226 = vrot.lane.b32.xlu0 %v3221, 122
          %v3227 = vpop.permute.xlu0 %3226
          %3228 = vrot.lane.b32.xlu0 %v3223, 122
          %v3229 = vpop.permute.xlu0 %3228
          %v3233 = vadd.f32 %v3177, %v3225
          %v3234 = vadd.f32 %v3178, %v3225
          %v3235 = vadd.f32 %v3179, %v3227
          %v3236 = vadd.f32 %v3180, %v3227
          %v3237 = vadd.f32 %v3181, %v3229
          %v3238 = vadd.f32 %v3182, %v3229
          %s3239 = sld [smem:[#allocation8 + $0x29]]
          %s3240 = sld [smem:[#allocation8 + $0x5a]]
          %v3241 = vstv %s3239
          %v3242 = vmul.f32 %v3241, %v269
          %v3243 = vmul.f32 %v3241, %v271
          %v3244 = vmul.f32 %v3241, %v273
          %v3248 = vrot.slane %v3242, 5
          %v3249 = vrot.slane %v3243, 5
          %v3250 = vsel %vm601, %v3248, %v3249
          %v3251 = vrot.slane %v3244, 5
          %v3252 = vsel %vm601, %v3249, %v3251
          %3253 = vrot.lane.b32.xlu0 %v3248, 122
          %v3254 = vpop.permute.xlu0 %3253
          %3255 = vrot.lane.b32.xlu0 %v3250, 122
          %v3256 = vpop.permute.xlu0 %3255
          %3257 = vrot.lane.b32.xlu0 %v3252, 122
          %v3258 = vpop.permute.xlu0 %3257
          %v3262 = vadd.f32 %v3206, %v3254
          %v3263 = vadd.f32 %v3207, %v3254
          %v3264 = vadd.f32 %v3208, %v3256
          %v3265 = vadd.f32 %v3209, %v3256
          %v3266 = vadd.f32 %v3210, %v3258
          %v3267 = vadd.f32 %v3211, %v3258
          %v3268 = vstv %s3240
          %v3269 = vmul.f32 %v3268, %v277
          %v3270 = vmul.f32 %v3268, %v279
          %v3271 = vmul.f32 %v3268, %v281
          %v3275 = vrot.slane %v3269, 5
          %v3276 = vrot.slane %v3270, 5
          %v3277 = vsel %vm601, %v3275, %v3276
          %v3278 = vrot.slane %v3271, 5
          %v3279 = vsel %vm601, %v3276, %v3278
          %3280 = vrot.lane.b32.xlu0 %v3275, 122
          %v3281 = vpop.permute.xlu0 %3280
          %3282 = vrot.lane.b32.xlu0 %v3277, 122
          %v3283 = vpop.permute.xlu0 %3282
          %3284 = vrot.lane.b32.xlu0 %v3279, 122
          %v3285 = vpop.permute.xlu0 %3284
          %v3289 = vadd.f32 %v3233, %v3281
          %v3290 = vadd.f32 %v3234, %v3281
          %v3291 = vadd.f32 %v3235, %v3283
          %v3292 = vadd.f32 %v3236, %v3283
          %v3293 = vadd.f32 %v3237, %v3285
          %v3294 = vadd.f32 %v3238, %v3285
          %s3295 = sld [smem:[#allocation8 + $0x30]]
          %s3296 = sld [smem:[#allocation8 + $0x61]]
          %v3297 = vstv %s3295
          %v3298 = vmul.f32 %v3297, %v269
          %v3299 = vmul.f32 %v3297, %v271
          %v3300 = vmul.f32 %v3297, %v273
          %v3304 = vrot.slane %v3298, 6
          %v3305 = vrot.slane %v3299, 6
          %v3306 = vsel %vm674, %v3304, %v3305
          %v3307 = vrot.slane %v3300, 6
          %v3308 = vsel %vm674, %v3305, %v3307
          %3309 = vrot.lane.b32.xlu0 %v3304, 122
          %v3310 = vpop.permute.xlu0 %3309
          %3311 = vrot.lane.b32.xlu0 %v3306, 122
          %v3312 = vpop.permute.xlu0 %3311
          %3313 = vrot.lane.b32.xlu0 %v3308, 122
          %v3314 = vpop.permute.xlu0 %3313
          %v3318 = vadd.f32 %v3262, %v3310
          %v3319 = vadd.f32 %v3263, %v3310
          %v3320 = vadd.f32 %v3264, %v3312
          %v3321 = vadd.f32 %v3265, %v3312
          %v3322 = vadd.f32 %v3266, %v3314
          %v3323 = vadd.f32 %v3267, %v3314
          %v3324 = vstv %s3296
          %v3325 = vmul.f32 %v3324, %v277
          %v3326 = vmul.f32 %v3324, %v279
          %v3327 = vmul.f32 %v3324, %v281
          %v3331 = vrot.slane %v3325, 6
          %v3332 = vrot.slane %v3326, 6
          %v3333 = vsel %vm674, %v3331, %v3332
          %v3334 = vrot.slane %v3327, 6
          %v3335 = vsel %vm674, %v3332, %v3334
          %3336 = vrot.lane.b32.xlu0 %v3331, 122
          %v3337 = vpop.permute.xlu0 %3336
          %3338 = vrot.lane.b32.xlu0 %v3333, 122
          %v3339 = vpop.permute.xlu0 %3338
          %3340 = vrot.lane.b32.xlu0 %v3335, 122
          %v3341 = vpop.permute.xlu0 %3340
          %v3345 = vadd.f32 %v3289, %v3337
          %v3346 = vadd.f32 %v3290, %v3337
          %v3347 = vadd.f32 %v3291, %v3339
          %v3348 = vadd.f32 %v3292, %v3339
          %v3349 = vadd.f32 %v3293, %v3341
          %v3350 = vadd.f32 %v3294, %v3341
          %v3351 = vadd.f32 %v3318, %v3345
          %v3352 = vadd.f32 %v3319, %v3346
          %v3353 = vadd.f32 %v3320, %v3347
          %v3354 = vadd.f32 %v3321, %v3348
          %v3355 = vadd.f32 %v3322, %v3349
          %v3356 = vadd.f32 %v3323, %v3350
          %v3357 = vadd.f32 %v2944, %v2971
          %v3358 = vadd.f32 %v2945, %v2972
          %v3359 = vadd.f32 %v2946, %v2973
          %v3360 = vadd.f32 %v2947, %v2974
          %v3361 = vadd.f32 %v2948, %v2975
          %v3362 = vadd.f32 %v2949, %v2976
          %3369 = vrot.lane.b32.xlu0 %v3357, 127
          %v3370 = vpop.permute.xlu0 %3369
          %3371 = vrot.lane.b32.xlu0 %v3358, 127
          %v3372 = vpop.permute.xlu0 %3371
          %3373 = vrot.lane.b32.xlu0 %v3359, 127
          %v3374 = vpop.permute.xlu0 %3373
          %3375 = vrot.lane.b32.xlu0 %v3360, 127
          %v3376 = vpop.permute.xlu0 %3375
          %3377 = vrot.lane.b32.xlu0 %v3361, 127
          %v3378 = vpop.permute.xlu0 %3377
          %3379 = vrot.lane.b32.xlu0 %v3362, 127
          %v3380 = vpop.permute.xlu0 %3379
          %vm3381 = vcmask 1039360
          %v3382 = vsel %vm3381, %v3370, %v3372
          %v3383 = vsel %vm3381, %v3374, %v3376
          %v3384 = vsel %vm3381, %v3378, %v3380
          %v3391 = vadd.f32 %v3351, %v3382
          %v3392 = vadd.f32 %v3352, %v3372
          %v3393 = vadd.f32 %v3353, %v3383
          %v3394 = vadd.f32 %v3354, %v3376
          %v3395 = vadd.f32 %v3355, %v3384
          %v3396 = vadd.f32 %v3356, %v3380
          %v3397 = vxor.u32 %v3391, 2147483648
          %v3398 = vxor.u32 %v3392, 2147483648
          %v3399 = vxor.u32 %v3393, 2147483648
          %v3400 = vxor.u32 %v3394, 2147483648
          %v3401 = vxor.u32 %v3395, 2147483648
          %v3402 = vxor.u32 %v3396, 2147483648
          %v3403 = vmul.f32 %v3397, 1.442695
          %v3404 = vpow.pop %v3403
          %v3405 = vmul.f32 %v3398, 1.442695
          %v3406 = vpow.pop %v3405
          %v3407 = vmul.f32 %v3399, 1.442695
          %v3408 = vpow.pop %v3407
          %v3409 = vmul.f32 %v3400, 1.442695
          %v3410 = vpow.pop %v3409
          %v3411 = vmul.f32 %v3401, 1.442695
          %v3412 = vpow.pop %v3411
          %v3413 = vmul.f32 %v3402, 1.442695
          %v3414 = vpow.pop %v3413
          %v3415 = vadd.f32 %v3404, 1.0
          %v3416 = vadd.f32 %v3406, 1.0
          %v3417 = vadd.f32 %v3408, 1.0
          %v3418 = vadd.f32 %v3410, 1.0
          %v3419 = vadd.f32 %v3412, 1.0
          %v3420 = vadd.f32 %v3414, 1.0
          %v3421 = vrcp.pop %v3415
          %v3422 = vmul.f32 %v3415, %v3421
          %v3423 = vsub.f32 1.0, %v3422
          %v3424 = vmul.f32 %v3421, %v3423
          %v3425 = vadd.f32 %v3421, %v3424
          %vm3426 = vweird.f32 %v3415
          %vm3427 = vweird.f32 %v3421
          %vm3428 = vmor %vm3426, %vm3427
          %v3429 = vsel %vm3428, %v3421, %v3425
          %v3430 = vand.u32 2147483647, %v3415
          %vm3431 = vcmp.eq.f32.partialorder %v3430, 8.507059e+37
          %v3432 = vand.u32 %v3415, 2147483648
          %v3433 = vor.u32 1.1754944e-38, %v3432
          %v3434 = vsel %vm3431, %v3433, %v3429
          %v3435 = vmul.f32 1.0, %v3434
          %v3436 = vrcp.pop %v3416
          %v3437 = vmul.f32 %v3416, %v3436
          %v3438 = vsub.f32 1.0, %v3437
          %v3439 = vmul.f32 %v3436, %v3438
          %v3440 = vadd.f32 %v3436, %v3439
          %vm3441 = vweird.f32 %v3416
          %vm3442 = vweird.f32 %v3436
          %vm3443 = vmor %vm3441, %vm3442
          %v3444 = vsel %vm3443, %v3436, %v3440
          %v3445 = vand.u32 2147483647, %v3416
          %vm3446 = vcmp.eq.f32.partialorder %v3445, 8.507059e+37
          %v3447 = vand.u32 %v3416, 2147483648
          %v3448 = vor.u32 1.1754944e-38, %v3447
          %v3449 = vsel %vm3446, %v3448, %v3444
          %v3450 = vmul.f32 1.0, %v3449
          %v3451 = vrcp.pop %v3417
          %v3452 = vmul.f32 %v3417, %v3451
          %v3453 = vsub.f32 1.0, %v3452
          %v3454 = vmul.f32 %v3451, %v3453
          %v3455 = vadd.f32 %v3451, %v3454
          %vm3456 = vweird.f32 %v3417
          %vm3457 = vweird.f32 %v3451
          %vm3458 = vmor %vm3456, %vm3457
          %v3459 = vsel %vm3458, %v3451, %v3455
          %v3460 = vand.u32 2147483647, %v3417
          %vm3461 = vcmp.eq.f32.partialorder %v3460, 8.507059e+37
          %v3462 = vand.u32 %v3417, 2147483648
          %v3463 = vor.u32 1.1754944e-38, %v3462
          %v3464 = vsel %vm3461, %v3463, %v3459
          %v3465 = vmul.f32 1.0, %v3464
          %v3466 = vrcp.pop %v3418
          %v3467 = vmul.f32 %v3418, %v3466
          %v3468 = vsub.f32 1.0, %v3467
          %v3469 = vmul.f32 %v3466, %v3468
          %v3470 = vadd.f32 %v3466, %v3469
          %vm3471 = vweird.f32 %v3418
          %vm3472 = vweird.f32 %v3466
          %vm3473 = vmor %vm3471, %vm3472
          %v3474 = vsel %vm3473, %v3466, %v3470
          %v3475 = vand.u32 2147483647, %v3418
          %vm3476 = vcmp.eq.f32.partialorder %v3475, 8.507059e+37
          %v3477 = vand.u32 %v3418, 2147483648
          %v3478 = vor.u32 1.1754944e-38, %v3477
          %v3479 = vsel %vm3476, %v3478, %v3474
          %v3480 = vmul.f32 1.0, %v3479
          %v3481 = vrcp.pop %v3419
          %v3482 = vmul.f32 %v3419, %v3481
          %v3483 = vsub.f32 1.0, %v3482
          %v3484 = vmul.f32 %v3481, %v3483
          %v3485 = vadd.f32 %v3481, %v3484
          %vm3486 = vweird.f32 %v3419
          %vm3487 = vweird.f32 %v3481
          %vm3488 = vmor %vm3486, %vm3487
          %v3489 = vsel %vm3488, %v3481, %v3485
          %v3490 = vand.u32 2147483647, %v3419
          %vm3491 = vcmp.eq.f32.partialorder %v3490, 8.507059e+37
          %v3492 = vand.u32 %v3419, 2147483648
          %v3493 = vor.u32 1.1754944e-38, %v3492
          %v3494 = vsel %vm3491, %v3493, %v3489
          %v3495 = vmul.f32 1.0, %v3494
          %v3496 = vrcp.pop %v3420
          %v3497 = vmul.f32 %v3420, %v3496
          %v3498 = vsub.f32 1.0, %v3497
          %v3499 = vmul.f32 %v3496, %v3498
          %v3500 = vadd.f32 %v3496, %v3499
          %vm3501 = vweird.f32 %v3420
          %vm3502 = vweird.f32 %v3496
          %vm3503 = vmor %vm3501, %vm3502
          %v3504 = vsel %vm3503, %v3496, %v3500
          %v3505 = vand.u32 2147483647, %v3420
          %vm3506 = vcmp.eq.f32.partialorder %v3505, 8.507059e+37
          %v3507 = vand.u32 %v3420, 2147483648
          %v3508 = vor.u32 1.1754944e-38, %v3507
          %v3509 = vsel %vm3506, %v3508, %v3504
          %v3510 = vmul.f32 1.0, %v3509
          %3517 = vrot.lane.b32.xlu0 %v3435, 3
          %v3518 = vpop.permute.xlu0 %3517
          %3519 = vrot.lane.b32.xlu0 %v3450, 3
          %v3520 = vpop.permute.xlu0 %3519
          %3521 = vrot.lane.b32.xlu0 %v3465, 3
          %v3522 = vpop.permute.xlu0 %3521
          %3523 = vrot.lane.b32.xlu0 %v3480, 3
          %v3524 = vpop.permute.xlu0 %3523
          %3525 = vrot.lane.b32.xlu0 %v3495, 3
          %v3526 = vpop.permute.xlu0 %3525
          %3527 = vrot.lane.b32.xlu0 %v3510, 3
          %v3528 = vpop.permute.xlu0 %3527
          %vm3529 = vcmask 23552
          %v3530 = vsel %vm3529, %v3518, %v3520
          %v3531 = vsel %vm3529, %v3522, %v3524
          %v3532 = vsel %vm3529, %v3526, %v3528
          %vm3536 = vcmask 130053
          %3537 = vst.msk [vmem:[%s194 - $0x5] sm:$0xe0] %vm3536, %v3530
          %vm3538 = vcmask 130048
          %3539 = vst.msk [vmem:[%s194 + $0x3] sm:$0xff] %vm3538, %v3531
          %vm3540 = vcmask 126976
          %3541 = vst.msk [vmem:[%s194 + $0xb] sm:$0x1f] %vm3540, %v3532
        $region48: #{tpu_custom_call.1} parent=27 // pred_fallthru
          _
        %s3542 = sand.u32 %s89, 1
        %s3543 = scalar_lea.sflag [#allocation6], %s3542
        %s3544 = sand.u32 %s89, 1
        %s3545 = smul.addr %s3544, 16
        %s3546 = scalar_lea.vmem [#allocation9], %s3545
        // Predicated region
        $region49: #{tpu_custom_call.1} parent=27 // pred_check
          %p3547 = pneg %p99
        $region50: #{tpu_custom_call.1} parent=27 // pred_check_branch
          %3549 = sbr.rel (%p3547) target = $region52
        $region51: #{tpu_custom_call.1} parent=27 // pred_region
          %3551 = vsyncadd %s3543, 0
          %s3552 = smul.addr %s24, 2
          %s3553 = smul.addr %s3552, 8
          %s3554 = scalar_lea.hbm %s2, %s3553
          %s3555 = sshll.u32 %s3546, 4
          %s3556 = int_to_ptr.vmem [resolvable:$true] %s3555
          %s3557 = sshll.u32 %s3554, 4
          %s3558 = int_to_ptr.hbm [resolvable:$true] %s3557
          %3563 = dma.vmem_to_hbm [thread:$0]  %s3556, 256, %s3558, %s3543, 128, 128, 8
        $region52: #{tpu_custom_call.1} parent=27 // pred_fallthru
          _
      $region28: #{tpu_custom_call.1} parent=5 // pred_fallthru
        _
      %p3564 = scmp.le.s32.totalorder 2, %s15
      // Predicated region
      $region53: #{tpu_custom_call.1} parent=5 // pred_check
        %p3565 = pneg %p3564
      $region54: #{tpu_custom_call.1} parent=5 // pred_check_branch
        %3567 = sbr.rel (%p3565) target = $region56
      $region55: #{tpu_custom_call.1} parent=5 // pred_region
        %s3568 = ssub.s32 %s15, 2
        // Predicated region
        $region57: #{tpu_custom_call.1} parent=55 // pred_check
          %p3569 = pneg %p105
        $region58: #{tpu_custom_call.1} parent=55 // pred_check_branch
          %3571 = sbr.rel (%p3569) target = $region60
        $region59: #{tpu_custom_call.1} parent=55 // pred_region
          %s3572 = sand.u32 %s90, 1
          %s3573 = scalar_lea.sflag [#allocation6], %s3572
          %s3574 = sand.u32 %s90, 1
          %s3575 = smul.addr %s3574, 16
          %s3576 = scalar_lea.vmem [#allocation9], %s3575
          %3578 = dma.done %s3573, 256
        $region60: #{tpu_custom_call.1} parent=55 // pred_fallthru
          _
      $region56: #{tpu_custom_call.1} parent=5 // pred_fallthru
        _
    $region6: #{tpu_custom_call.1} parent=1 // loop_footer
      %s19 = sadd.s32 1, %s15
    $region7: #{tpu_custom_call.1} parent=1 // loop_footer_branch
      %14 = sbr.rel target = $region3
    $region8: #{tpu_custom_call.1} parent=1 // loop_exit
      _
    %3579 = vsyncpa [#allocation5], 1
    %s3580 = scalar_lea.sflag [#allocation5], 1
    %3581 = vsyncpa %s3580, 1
    %3582 = vsyncpa [#allocation6], 1
    %s3583 = scalar_lea.sflag [#allocation6], 1
    %3584 = vsyncpa %s3583, 1
    %3585 = vsyncpa [#allocation7], 1
    %s3586 = scalar_lea.sflag [#allocation7], 1
    %3587 = vsyncpa %s3586, 1

</llo_original>
